<compile_context>
chip_gen: v7x
topology: tpu7x:2x2x1
jax: 0.10.0
libtpu: 0.0.40
codegen_flags: <defaults>
</compile_context>

<pallas_src>
import functools

import jax
import jax.numpy as jnp
import numpy as np
from jax.experimental import pallas as pl
from jax.experimental.pallas import tpu as pltpu

EPS = 1e-5


# --------------------------------------------------------------------------- #
# small helpers
# --------------------------------------------------------------------------- #
def _round_up(n, m):
    return ((n + m - 1) // m) * m


def _vmem_budget_bytes():
    """Generation-aware scoped-VMEM budget (v5e/v6e: 128 MiB phys, v7x: 64)."""
    try:
        phys = int(pltpu.get_tpu_info().vmem_capacity_bytes)
    except Exception:
        phys = 64 << 20                     # conservative (v7x-sized) fallback
    return max(32 << 20, min(phys - (16 << 20), 100 << 20))


def _row_cap_for_vmem(ci, cm, co, act_b, has_res, budget):
    """Largest row tile whose double-buffered activation tiles + single-buffered
    resident weights fit inside the scoped VMEM budget (worst stage governs)."""
    per_row = 2 * max(
        (ci + cm) * act_b,                  # stage 1: x in, h1 out
        2 * cm * act_b + 4 * cm * 4,        # stage 2 (+ f32 temporaries)
        (cm + co) * act_b,                  # stage 3
        (co + ci) * act_b + co * 4,         # finalize
    )
    wmax = max(ci * cm, 3 * cm * cm, cm * co, (ci * co) if has_res else 0) * act_b
    avail = budget - wmax - (4 << 20)       # headroom: stats, sems, scratch
    return int(max(64, avail // per_row))


def _pick_plain_tile(m, target):
    """8-aligned divisor of m, <= target if possible, preferring >= 2 tiles."""
    divs = [d for d in range(8, m + 1, 8) if m % d == 0]
    if not divs:
        return m                            # tiny m: single full block (legal)
    good = [d for d in divs if d <= target and m // d >= 2]
    if good:
        return max(good)
    multi = [d for d in divs if m // d >= 2]
    return min(multi) if multi else min(divs)


def _pick_sample_tile(n, ls, target):
    """Whole-sample row tile (k=3 halo never crosses tiles), prefer >= 2 tiles."""
    cands = [t for t in range(1, n + 1) if n % t == 0 and (t * ls) % 8 == 0]
    if not cands:
        # TODO(synk): pad rows to %8 with masked stats instead of one big block.
        return n * ls
    good = [t for t in cands if t * ls <= target and n // t >= 2]
    if good:
        return max(good) * ls
    multi = [t for t in cands if n // t >= 2]
    return (min(multi) if multi else min(cands)) * ls


def _const_spec(shape):
    """Constant-index input: single pipeline buffer (its block never changes)."""
    imap = lambda t: (0,) * len(shape)
    try:
        return pl.BlockSpec(shape, imap, pipeline_mode=pl.Buffered(1))
    except TypeError:                        # BlockSpec without pipeline_mode
        return pl.BlockSpec(shape, imap)


def _tile_stats(h):
    """(rows, C) f32 tile -> (1, 2, C): per-channel [sum, sum of squares]."""
    s = jnp.sum(h, axis=0, keepdims=True)
    ss = jnp.sum(h * h, axis=0, keepdims=True)
    return jnp.concatenate([s, ss], axis=0)[None]


def _bn_fold(stats, count, gamma, beta, c_real, c_pad):
    """Reduce per-tile partials, fold BN into per-channel scale/shift (f32).

    Only real channels enter the statistics; padded channels get a=c=0 so they
    stay exactly zero through ReLU and the next (zero-padded) conv.
    NOTE: single-pass E[x^2]-E[x]^2 in f32 (cancellation-prone for extreme
    mean/std ratios; fine at these scales).
    """
    s = jnp.sum(stats, axis=0)                        # (2, c_pad)
    mean = s[0, :c_real] / count
    var = s[1, :c_real] / count - mean * mean         # biased (PyTorch training)
    a = gamma * jax.lax.rsqrt(var + EPS)
    c = beta - mean * a
    a = jnp.pad(a, (0, c_pad - c_real)).reshape(1, c_pad)
    c = jnp.pad(c, (0, c_pad - c_real)).reshape(1, c_pad)
    return a, c


# --------------------------------------------------------------------------- #
# stage kernels
# --------------------------------------------------------------------------- #
def _stage1_kernel(x_ref, w1_ref, b1_ref, h1_ref, s1_ref):
    """conv1 (1x1): h1 = x @ W1^T + b1, plus per-tile BN partial stats."""
    h = jnp.dot(x_ref[...], w1_ref[...],
                preferred_element_type=jnp.float32) + b1_ref[...]
    hs = h.astype(h1_ref.dtype)
    h1_ref[...] = hs
    s1_ref[...] = _tile_stats(hs.astype(jnp.float32))   # stats of stored values


def _stage2_kernel(h1_ref, a1_ref, c1_ref, w2_ref, b2_ref, lm_ref, rm_ref,
                   h2_ref, s2_ref, *, compute_dtype, cm):
    """bn1+relu, then conv2 (k=3, pad=1) as ONE wide matmul + shifted combine."""
    z = jnp.maximum(h1_ref[...] * a1_ref[...] + c1_ref[...], 0.0)
    y = jnp.dot(z.astype(compute_dtype), w2_ref[...],
                preferred_element_type=jnp.float32)      # (rows, 3*cm)
    rows = y.shape[0]
    # taps: [j-1 | j | j+1] along lanes; sequential accumulation, masked edges
    h2 = y[:, cm:2 * cm] + b2_ref[...]
    h2 = h2 + pltpu.roll(y[:, :cm], shift=1, axis=0) * lm_ref[...]
    h2 = h2 + pltpu.roll(y[:, 2 * cm:], shift=rows - 1, axis=0) * rm_ref[...]
    hs = h2.astype(h2_ref.dtype)
    h2_ref[...] = hs
    s2_ref[...] = _tile_stats(hs.astype(jnp.float32))


def _stage3_kernel(h2_ref, a2_ref, c2_ref, w3_ref, b3_ref, h3_ref, s3_ref, *,
                   compute_dtype):
    """bn2+relu, then conv3 (1x1), plus per-tile BN partial stats."""
    z = jnp.maximum(h2_ref[...] * a2_ref[...] + c2_ref[...], 0.0)
    h = jnp.dot(z.astype(compute_dtype), w3_ref[...],
                preferred_element_type=jnp.float32) + b3_ref[...]
    hs = h.astype(h3_ref.dtype)
    h3_ref[...] = hs
    s3_ref[...] = _tile_stats(hs.astype(jnp.float32))


def _finalize_kernel(h3_ref, a3_ref, c3_ref, x_ref, *rest, has_res):
    """bn3+relu and add the residual (projection conv or identity)."""
    if has_res:
        wr_ref, br_ref, o_ref = rest
    else:
        (o_ref,) = rest
    y = jnp.maximum(h3_ref[...] * a3_ref[...] + c3_ref[...], 0.0)
    if has_res:
        r = jnp.dot(x_ref[...], wr_ref[...],
                    preferred_element_type=jnp.float32) + br_ref[...]
    else:
        r = x_ref[...].astype(jnp.float32)
    o_ref[...] = (y + r).astype(o_ref.dtype)


# --------------------------------------------------------------------------- #
# flattened channels-last (M, Cpad) interface — chains across stacked blocks
# --------------------------------------------------------------------------- #
def bottleneck_forward_2d(x2d, params, *, seq_len, has_res, tile_rows=None,
                          compute_dtype=jnp.bfloat16):
    """x2d: (N*seq_len, Ci_pad) in `compute_dtype`; returns (M, Co_pad) same dtype."""
    M, Ci = x2d.shape
    assert M % seq_len == 0
    N = M // seq_len
    Cin = params['w1'].shape[1]
    Cmed = params['w1'].shape[0]
    Cout = params['w3'].shape[0]
    assert Ci == _round_up(Cin, 128)
    Cm, Co = _round_up(Cmed, 128), _round_up(Cout, 128)
    act_b = jnp.dtype(compute_dtype).itemsize

    # --- tile sizing against the generation-aware VMEM budget --- #
    budget = _vmem_budget_bytes()
    row_cap = _row_cap_for_vmem(Ci, Cm, Co, act_b, has_res, budget)
    target = int(min(tile_rows if tile_rows is not None else 1024, row_cap))
    tile_p = _pick_plain_tile(M, target)          # stages 1 / 3 / finalize
    tile_s2 = _pick_sample_tile(N, seq_len, target)  # stage 2 (k=3 halo)
    nt_p, nt_s2 = M // tile_p, M // tile_s2

    cp = pltpu.CompilerParams(dimension_semantics=("parallel",),
                              vmem_limit_bytes=int(budget))

    # --- weights: pre-transposed to (C_in, C_out), zero-padded, cast once --- #
    def pad_mat(w, rows, cols):
        return jnp.pad(w, ((0, rows - w.shape[0]),
                           (0, cols - w.shape[1]))).astype(compute_dtype)

    def pad_vec(v, cols):                          # biases / BN consts stay f32
        return jnp.pad(v, (0, cols - v.shape[0])).reshape(1, cols).astype(jnp.float32)

    w1T = pad_mat(params['w1'].T, Ci, Cm)
    b1p = pad_vec(params['b1'], Cm)
    # fused k=3 taps: (Cm, 3*Cm) = [tap j-1 | tap j | tap j+1] along lanes
    w2cat = jnp.concatenate(
        [pad_mat(params['w2'][:, :, k].T, Cm, Cm) for k in range(3)], axis=1)
    b2p = pad_vec(params['b2'], Cm)
    w3T = pad_mat(params['w3'].T, Cm, Co)
    b3p = pad_vec(params['b3'], Co)
    if has_res:
        wrT = pad_mat(params['wr'].T, Ci, Co)
        brp = pad_vec(params['br'], Co)

    # --- stage-2 edge masks (identical for every tile: whole samples/tile) --- #
    pos = np.arange(tile_s2) % seq_len
    lmask = jnp.asarray((pos != 0).astype(np.float32).reshape(tile_s2, 1))
    rmask = jnp.asarray((pos != seq_len - 1).astype(np.float32).reshape(tile_s2, 1))

    # --- specs --- #
    def act_spec(tile, c):
        return pl.BlockSpec((tile, c), lambda t: (t, 0))

    def stats_spec(c):
        return pl.BlockSpec((1, 2, c), lambda t: (t, 0, 0))

    # --- stage 1: conv1 + stats --- #
    h1, s1 = pl.pallas_call(
        _stage1_kernel,
        grid=(nt_p,),
        in_specs=[act_spec(tile_p, Ci), _const_spec((Ci, Cm)), _const_spec((1, Cm))],
        out_specs=(act_spec(tile_p, Cm), stats_spec(Cm)),
        out_shape=(jax.ShapeDtypeStruct((M, Cm), compute_dtype),
                   jax.ShapeDtypeStruct((nt_p, 2, Cm), jnp.float32)),
        compiler_params=cp,
    )(x2d, w1T, b1p)
    a1, c1 = _bn_fold(s1, M, params['g1'], params['be1'], Cmed, Cm)

    # --- stage 2: bn1+relu -> conv2 (k=3, fused taps) + stats --- #
    h2, s2 = pl.pallas_call(
        functools.partial(_stage2_kernel, compute_dtype=compute_dtype, cm=Cm),
        grid=(nt_s2,),
        in_specs=[act_spec(tile_s2, Cm), _const_spec((1, Cm)), _const_spec((1, Cm)),
                  _const_spec((Cm, 3 * Cm)), _const_spec((1, Cm)),
                  _const_spec((tile_s2, 1)), _const_spec((tile_s2, 1))],
        out_specs=(act_spec(tile_s2, Cm), stats_spec(Cm)),
        out_shape=(jax.ShapeDtypeStruct((M, Cm), compute_dtype),
                   jax.ShapeDtypeStruct((nt_s2, 2, Cm), jnp.float32)),
        compiler_params=cp,
    )(h1, a1, c1, w2cat, b2p, lmask, rmask)
    a2, c2 = _bn_fold(s2, M, params['g2'], params['be2'], Cmed, Cm)

    # --- stage 3: bn2+relu -> conv3 + stats --- #
    h3, s3 = pl.pallas_call(
        functools.partial(_stage3_kernel, compute_dtype=compute_dtype),
        grid=(nt_p,),
        in_specs=[act_spec(tile_p, Cm), _const_spec((1, Cm)), _const_spec((1, Cm)),
                  _const_spec((Cm, Co)), _const_spec((1, Co))],
        out_specs=(act_spec(tile_p, Co), stats_spec(Co)),
        out_shape=(jax.ShapeDtypeStruct((M, Co), compute_dtype),
                   jax.ShapeDtypeStruct((nt_p, 2, Co), jnp.float32)),
        compiler_params=cp,
    )(h2, a2, c2, w3T, b3p)
    a3, c3 = _bn_fold(s3, M, params['g3'], params['be3'], Cout, Co)

    # --- finalize: bn3+relu + residual --- #
    fin_args = [h3, a3, c3, x2d]
    fin_specs = [act_spec(tile_p, Co), _const_spec((1, Co)), _const_spec((1, Co)),
                 act_spec(tile_p, Ci)]
    if has_res:
        fin_args += [wrT, brp]
        fin_specs += [_const_spec((Ci, Co)), _const_spec((1, Co))]
    out2d = pl.pallas_call(
        functools.partial(_finalize_kernel, has_res=has_res),
        grid=(nt_p,),
        in_specs=fin_specs,
        out_specs=act_spec(tile_p, Co),
        out_shape=jax.ShapeDtypeStruct((M, Co), compute_dtype),
        compiler_params=cp,
    )(*fin_args)
    return out2d


# --------------------------------------------------------------------------- #
# PyTorch-layout wrappers
# --------------------------------------------------------------------------- #
def bottleneck_forward(x_ncl, params, *, stride=1, has_res=True,
                       tile_rows=None, compute_dtype=jnp.bfloat16):
    """Single Bottlrneck. x_ncl: (N, Cin, L) f32 in PyTorch Conv1d layout."""
    N, Cin, L = x_ncl.shape
    Cout = params['w3'].shape[0]
    if not has_res:
        assert Cin == Cout and stride == 1   # PyTorch identity-residual contract
    xs = x_ncl if stride == 1 else x_ncl[:, :, ::stride]
    Ls = xs.shape[2]
    Ci = _round_up(Cin, 128)
    x2d = jnp.transpose(xs, (0, 2, 1)).reshape(N * Ls, Cin)
    x2d = jnp.pad(x2d, ((0, 0), (0, Ci - Cin))).astype(compute_dtype)
    out2d = bottleneck_forward_2d(x2d, params, seq_len=Ls, has_res=has_res,
                                  tile_rows=tile_rows, compute_dtype=compute_dtype)
    return (out2d[:, :Cout].astype(jnp.float32)
            .reshape(N, Ls, Cout).transpose(0, 2, 1))


def bottleneck_stack_forward(x_ncl, params_list, *, tile_rows=None,
                             compute_dtype=jnp.bfloat16):
    """Stack of stride-1 Bottlrnecks; activations stay in the flattened
    channels-last layout between blocks (no per-block NCL<->NLC transposes)."""
    N, Cin, L = x_ncl.shape
    Ci = _round_up(Cin, 128)
    h = jnp.transpose(x_ncl, (0, 2, 1)).reshape(N * L, Cin)
    h = jnp.pad(h, ((0, 0), (0, Ci - Cin))).astype(compute_dtype)
    for p in params_list:
        has_res = p['w1'].shape[1] != p['w3'].shape[0]
        h = bottleneck_forward_2d(h, p, seq_len=L, has_res=has_res,
                                  tile_rows=tile_rows, compute_dtype=compute_dtype)
    Cout = params_list[-1]['w3'].shape[0]
    return (h[:, :Cout].astype(jnp.float32)
            .reshape(N, L, Cout).transpose(0, 2, 1))


# --------------------------------------------------------------------------- #
# pure-JAX reference (same semantics) for verification
# --------------------------------------------------------------------------- #
def reference_forward(x, p, *, stride, has_res):
    xs = x[:, :, ::stride] if stride > 1 else x

    def conv1x1(z, w, b):
        return jnp.einsum('ncl,oc->nol', z, w) + b[None, :, None]

    def bn_relu(z, g, be):
        mean = z.mean(axis=(0, 2), keepdims=True)
        var = ((z - mean) ** 2).mean(axis=(0, 2), keepdims=True)
        z = (z - mean) / jnp.sqrt(var + EPS) * g[None, :, None] + be[None, :, None]
        return jnp.maximum(z, 0.0)

    h = bn_relu(conv1x1(xs, p['w1'], p['b1']), p['g1'], p['be1'])
    Lh = h.shape[2]
    hp = jnp.pad(h, ((0, 0), (0, 0), (1, 1)))
    h2 = sum(jnp.einsum('ncl,oc->nol', hp[:, :, k:k + Lh], p['w2'][:, :, k])
             for k in range(3)) + p['b2'][None, :, None]
    h2 = bn_relu(h2, p['g2'], p['be2'])
    h3 = bn_relu(conv1x1(h2, p['w3'], p['b3']), p['g3'], p['be3'])
    res = conv1x1(xs, p['wr'], p['br']) if has_res else xs
    return h3 + res


def init_params(key, cin, cmed, cout):
    """PyTorch-style init: U(-1/sqrt(fan_in), 1/sqrt(fan_in))."""
    ks = jax.random.split(key, 8)
    u = lambda k, shape, fan: jax.random.uniform(
        k, shape, jnp.float32, -1.0 / np.sqrt(fan), 1.0 / np.sqrt(fan))
    return {
        'w1': u(ks[0], (cmed, cin), cin),          'b1': u(ks[1], (cmed,), cin),
        'g1': jnp.ones((cmed,), jnp.float32),      'be1': jnp.zeros((cmed,), jnp.float32),
        'w2': u(ks[2], (cmed, cmed, 3), cmed * 3), 'b2': u(ks[3], (cmed,), cmed * 3),
        'g2': jnp.ones((cmed,), jnp.float32),      'be2': jnp.zeros((cmed,), jnp.float32),
        'w3': u(ks[4], (cout, cmed), cmed),        'b3': u(ks[5], (cout,), cmed),
        'g3': jnp.ones((cout,), jnp.float32),      'be3': jnp.zeros((cout,), jnp.float32),
        'wr': u(ks[6], (cout, cin), cin),          'br': u(ks[7], (cout,), cin),
    }


# --------------------------------------------------------------------------- #
# test
# --------------------------------------------------------------------------- #
if __name__ == "__main__":
    base_key = jax.random.PRNGKey(0)

    def make_x(seed, N, Cin, L):
        kx, kp = jax.random.split(jax.random.fold_in(base_key, seed))
        return jax.random.normal(kx, (N, Cin, L), jnp.float32), kp

    def run_block_case(seed, *, N, Cin, Cmed, Cout, L, downsample,
                       compute_dtype, strict, tile_rows=None):
        stride = 2 if downsample else 1
        has_res = Cin != Cout
        x, kp = make_x(seed, N, Cin, L)
        params = init_params(kp, Cin, Cmed, Cout)
        fwd = jax.jit(functools.partial(
            bottleneck_forward, stride=stride, has_res=has_res,
            tile_rows=tile_rows, compute_dtype=compute_dtype))
        out = jax.block_until_ready(fwd(x, params))
        Ls = -(-L // stride)
        assert out.shape == (N, Cout, Ls)
        out_np = np.asarray(out)
        if strict:
            ref = np.asarray(reference_forward(x, params, stride=stride,
                                               has_res=has_res))
            np.testing.assert_allclose(out_np, ref, rtol=1e-3, atol=1e-3)
        else:
            assert np.isfinite(out_np).all()

    # Bottlrneck(64, 64, 256, False): projection residual, exact f32 check.
    run_block_case(0, N=4, Cin=64, Cmed=64, Cout=256, L=32, downsample=False,
                   compute_dtype=jnp.float32, strict=True)
    # Bottlrneck(256, 64, 256, False): identity residual, cross-tile BN stats.
    run_block_case(1, N=2, Cin=256, Cmed=64, Cout=256, L=32, downsample=False,
                   compute_dtype=jnp.float32, strict=True)
    # downsample=True variant (projection residual, stride 2).
    run_block_case(2, N=2, Cin=64, Cmed=64, Cout=256, L=32, downsample=True,
                   compute_dtype=jnp.float32, strict=True)
    # default bf16 MXU-operand / bf16-intermediate path; sanity check only.
    run_block_case(3, N=4, Cin=64, Cmed=64, Cout=256, L=32, downsample=False,
                   compute_dtype=jnp.bfloat16, strict=False)

    # ResNet core: three stacked Bottlrnecks chained in the flattened
    # channels-last layout (single transpose in / out), exact f32 check.
    x, kp = make_x(4, 2, 64, 32)
    kps = jax.random.split(kp, 3)
    plist = [init_params(kps[0], 64, 64, 256),
             init_params(kps[1], 256, 64, 256),
             init_params(kps[2], 256, 64, 256)]
    stack = jax.jit(functools.partial(bottleneck_stack_forward,
                                      compute_dtype=jnp.float32))
    out = jax.block_until_ready(stack(x, plist))
    ref = x
    for p in plist:
        hres = p['w1'].shape[1] != p['w3'].shape[0]
        ref = reference_forward(ref, p, stride=1, has_res=hres)
    np.testing.assert_allclose(np.asarray(out), np.asarray(ref),
                               rtol=1e-3, atol=2e-3)

    print("KERNEL_OK")
</pallas_src>

<mosaic_0001>
module attributes {stable_mosaic.version = 11 : i64} {
  func.func @_stage1_kernel(%arg0: i32, %arg1: memref<64x128xf32, #tpu.memory_space<vmem>>, %arg2: memref<128x128xf32, #tpu.memory_space<vmem>>, %arg3: memref<1x128xf32, #tpu.memory_space<vmem>>, %arg4: memref<64x128xf32, #tpu.memory_space<vmem>>, %arg5: memref<1x2x128xf32, #tpu.memory_space<vmem>>) attributes {dimension_semantics = [#tpu.dimension_semantics<parallel>], iteration_bounds = array<i64: 2>, scalar_prefetch = 0 : i64, scratch_operands = 0 : i64, tpu.core_type = #tpu.core_type<tc>, window_params = [{transform_indices = @transform_0, window_bounds = array<i64: 64, 128>}, {pipeline_mode = #tpu.pipeline_mode<synchronous>, transform_indices = @transform_1, window_bounds = array<i64: 128, 128>}, {pipeline_mode = #tpu.pipeline_mode<synchronous>, transform_indices = @transform_2, window_bounds = array<i64: 1, 128>}, {transform_indices = @transform_3, window_bounds = array<i64: 64, 128>}, {transform_indices = @transform_4, window_bounds = array<i64: 1, 2, 128>}]} {
    %c0 = arith.constant 0 : index
    %c0_0 = arith.constant 0 : index
    %0 = vector.load %arg1[%c0, %c0_0] : memref<64x128xf32, #tpu.memory_space<vmem>>, vector<64x128xf32>
    %c0_1 = arith.constant 0 : index
    %c0_2 = arith.constant 0 : index
    %1 = vector.load %arg2[%c0_1, %c0_2] : memref<128x128xf32, #tpu.memory_space<vmem>>, vector<128x128xf32>
    %cst = arith.constant dense<0.000000e+00> : vector<64x128xf32>
    %2 = tpu.matmul %0, %1, %cst {dimension_numbers = #tpu.dot_dimension_numbers<[1], [0], [0], [1], [0, 0, 1, 1], [], []>} : vector<64x128xf32>, vector<128x128xf32>, vector<64x128xf32> -> vector<64x128xf32>
    %c0_3 = arith.constant 0 : index
    %c0_4 = arith.constant 0 : index
    %3 = vector.load %arg3[%c0_3, %c0_4] : memref<1x128xf32, #tpu.memory_space<vmem>>, vector<1x128xf32>
    %4 = vector.broadcast %3 : vector<1x128xf32> to vector<64x128xf32>
    %5 = arith.addf %2, %4 : vector<64x128xf32>
    %c0_5 = arith.constant 0 : index
    %c0_6 = arith.constant 0 : index
    %6 = vector.load %arg4[%c0_5, %c0_6] : memref<64x128xf32, #tpu.memory_space<vmem>>, vector<64x128xf32>
    tpu.vector_store %arg4[%c0_5, %c0_6], %5 {strides = array<i32>} : memref<64x128xf32, #tpu.memory_space<vmem>>, vector<64x128xf32>,
    %cst_7 = arith.constant dense<0.000000e+00> : vector<128xf32>
    %7 = vector.multi_reduction <add>, %5, %cst_7 [0] : vector<64x128xf32> to vector<128xf32>
    %8 = vector.shape_cast %7 : vector<128xf32> to vector<1x128xf32>
    %9 = arith.mulf %5, %5 : vector<64x128xf32>
    %cst_8 = arith.constant dense<0.000000e+00> : vector<128xf32>
    %10 = vector.multi_reduction <add>, %9, %cst_8 [0] : vector<64x128xf32> to vector<128xf32>
    %11 = vector.shape_cast %10 : vector<128xf32> to vector<1x128xf32>
    %12 = tpu.concatenate %8, %11 in 0 : vector<1x128xf32>, vector<1x128xf32> -> vector<2x128xf32>
    %13 = vector.shape_cast %12 : vector<2x128xf32> to vector<1x2x128xf32>
    %c0_9 = arith.constant 0 : index
    %c0_10 = arith.constant 0 : index
    %c0_11 = arith.constant 0 : index
    %14 = vector.load %arg5[%c0_9, %c0_10, %c0_11] : memref<1x2x128xf32, #tpu.memory_space<vmem>>, vector<1x2x128xf32>
    tpu.vector_store %arg5[%c0_9, %c0_10, %c0_11], %13 {strides = array<i32>} : memref<1x2x128xf32, #tpu.memory_space<vmem>>, vector<1x2x128xf32>,
    return
  }
  func.func @transform_0(%arg0: i32) -> (i32, i32) {
    %c0_i32 = arith.constant 0 : i32
    %c0_i32_0 = arith.constant 0 : i32
    return %arg0, %c0_i32 : i32, i32
  }
  func.func @transform_1(%arg0: i32) -> (i32, i32) {
    %c0_i32 = arith.constant 0 : i32
    %c0_i32_0 = arith.constant 0 : i32
    %c0_i32_1 = arith.constant 0 : i32
    return %c0_i32, %c0_i32_0 : i32, i32
  }
  func.func @transform_2(%arg0: i32) -> (i32, i32) {
    %c0_i32 = arith.constant 0 : i32
    %c0_i32_0 = arith.constant 0 : i32
    %c0_i32_1 = arith.constant 0 : i32
    return %c0_i32, %c0_i32_0 : i32, i32
  }
  func.func @transform_3(%arg0: i32) -> (i32, i32) {
    %c0_i32 = arith.constant 0 : i32
    %c0_i32_0 = arith.constant 0 : i32
    return %arg0, %c0_i32 : i32, i32
  }
  func.func @transform_4(%arg0: i32) -> (i32, i32, i32) {
    %c0_i32 = arith.constant 0 : i32
    %c0_i32_0 = arith.constant 0 : i32
    %c0_i32_1 = arith.constant 0 : i32
    return %arg0, %c0_i32, %c0_i32_0 : i32, i32, i32
  }
}

module attributes {stable_mosaic.version = 11 : i64} {
  func.func @_stage2_kernel(%arg0: i32, %arg1: memref<64x128xf32, #tpu.memory_space<vmem>>, %arg2: memref<1x128xf32, #tpu.memory_space<vmem>>, %arg3: memref<1x128xf32, #tpu.memory_space<vmem>>, %arg4: memref<128x384xf32, #tpu.memory_space<vmem>>, %arg5: memref<1x128xf32, #tpu.memory_space<vmem>>, %arg6: memref<64x1xf32, #tpu.memory_space<vmem>>, %arg7: memref<64x1xf32, #tpu.memory_space<vmem>>, %arg8: memref<64x128xf32, #tpu.memory_space<vmem>>, %arg9: memref<1x2x128xf32, #tpu.memory_space<vmem>>) attributes {dimension_semantics = [#tpu.dimension_semantics<parallel>], iteration_bounds = array<i64: 2>, scalar_prefetch = 0 : i64, scratch_operands = 0 : i64, tpu.core_type = #tpu.core_type<tc>, window_params = [{transform_indices = @transform_0, window_bounds = array<i64: 64, 128>}, {pipeline_mode = #tpu.pipeline_mode<synchronous>, transform_indices = @transform_1, window_bounds = array<i64: 1, 128>}, {pipeline_mode = #tpu.pipeline_mode<synchronous>, transform_indices = @transform_2, window_bounds = array<i64: 1, 128>}, {pipeline_mode = #tpu.pipeline_mode<synchronous>, transform_indices = @transform_3, window_bounds = array<i64: 128, 384>}, {pipeline_mode = #tpu.pipeline_mode<synchronous>, transform_indices = @transform_4, window_bounds = array<i64: 1, 128>}, {pipeline_mode = #tpu.pipeline_mode<synchronous>, transform_indices = @transform_5, window_bounds = array<i64: 64, 1>}, {pipeline_mode = #tpu.pipeline_mode<synchronous>, transform_indices = @transform_6, window_bounds = array<i64: 64, 1>}, {transform_indices = @transform_7, window_bounds = array<i64: 64, 128>}, {transform_indices = @transform_8, window_bounds = array<i64: 1, 2, 128>}]} {
    %c0 = arith.constant 0 : index
    %c0_0 = arith.constant 0 : index
    %0 = vector.load %arg1[%c0, %c0_0] : memref<64x128xf32, #tpu.memory_space<vmem>>, vector<64x128xf32>
    %c0_1 = arith.constant 0 : index
    %c0_2 = arith.constant 0 : index
    %1 = vector.load %arg2[%c0_1, %c0_2] : memref<1x128xf32, #tpu.memory_space<vmem>>, vector<1x128xf32>
    %2 = vector.broadcast %1 : vector<1x128xf32> to vector<64x128xf32>
    %3 = arith.mulf %0, %2 : vector<64x128xf32>
    %c0_3 = arith.constant 0 : index
    %c0_4 = arith.constant 0 : index
    %4 = vector.load %arg3[%c0_3, %c0_4] : memref<1x128xf32, #tpu.memory_space<vmem>>, vector<1x128xf32>
    %5 = vector.broadcast %4 : vector<1x128xf32> to vector<64x128xf32>
    %6 = arith.addf %3, %5 : vector<64x128xf32>
    %cst = arith.constant 0.000000e+00 : f32
    %7 = vector.broadcast %cst : f32 to vector<64x128xf32>
    %8 = arith.maximumf %6, %7 : vector<64x128xf32>
    %c0_5 = arith.constant 0 : index
    %c0_6 = arith.constant 0 : index
    %9 = vector.load %arg4[%c0_5, %c0_6] : memref<128x384xf32, #tpu.memory_space<vmem>>, vector<128x384xf32>
    %cst_7 = arith.constant dense<0.000000e+00> : vector<64x384xf32>
    %10 = tpu.matmul %8, %9, %cst_7 {dimension_numbers = #tpu.dot_dimension_numbers<[1], [0], [0], [1], [0, 0, 1, 1], [], []>} : vector<64x128xf32>, vector<128x384xf32>, vector<64x384xf32> -> vector<64x384xf32>
    %11 = vector.extract_strided_slice %10 {offsets = [0, 128], sizes = [64, 128], strides = [1, 1]} : vector<64x384xf32> to vector<64x128xf32>
    %c0_8 = arith.constant 0 : index
    %c0_9 = arith.constant 0 : index
    %12 = vector.load %arg5[%c0_8, %c0_9] : memref<1x128xf32, #tpu.memory_space<vmem>>, vector<1x128xf32>
    %13 = vector.broadcast %12 : vector<1x128xf32> to vector<64x128xf32>
    %14 = arith.addf %11, %13 : vector<64x128xf32>
    %15 = vector.extract_strided_slice %10 {offsets = [0, 0], sizes = [64, 128], strides = [1, 1]} : vector<64x384xf32> to vector<64x128xf32>
    %c1_i32 = arith.constant 1 : i32
    %16 = tpu.dynamic_rotate %15 by %c1_i32 dim 0 : vector<64x128xf32>, i32 -> vector<64x128xf32>
    %c0_10 = arith.constant 0 : index
    %c0_11 = arith.constant 0 : index
    %17 = vector.load %arg6[%c0_10, %c0_11] : memref<64x1xf32, #tpu.memory_space<vmem>>, vector<64x1xf32>
    %18 = vector.broadcast %17 : vector<64x1xf32> to vector<64x128xf32>
    %19 = arith.mulf %16, %18 : vector<64x128xf32>
    %20 = arith.addf %14, %19 : vector<64x128xf32>
    %21 = vector.extract_strided_slice %10 {offsets = [0, 256], sizes = [64, 128], strides = [1, 1]} : vector<64x384xf32> to vector<64x128xf32>
    %c63_i32 = arith.constant 63 : i32
    %22 = tpu.dynamic_rotate %21 by %c63_i32 dim 0 : vector<64x128xf32>, i32 -> vector<64x128xf32>
    %c0_12 = arith.constant 0 : index
    %c0_13 = arith.constant 0 : index
    %23 = vector.load %arg7[%c0_12, %c0_13] : memref<64x1xf32, #tpu.memory_space<vmem>>, vector<64x1xf32>
    %24 = vector.broadcast %23 : vector<64x1xf32> to vector<64x128xf32>
    %25 = arith.mulf %22, %24 : vector<64x128xf32>
    %26 = arith.addf %20, %25 : vector<64x128xf32>
    %c0_14 = arith.constant 0 : index
    %c0_15 = arith.constant 0 : index
    %27 = vector.load %arg8[%c0_14, %c0_15] : memref<64x128xf32, #tpu.memory_space<vmem>>, vector<64x128xf32>
    tpu.vector_store %arg8[%c0_14, %c0_15], %26 {strides = array<i32>} : memref<64x128xf32, #tpu.memory_space<vmem>>, vector<64x128xf32>,
    %cst_16 = arith.constant dense<0.000000e+00> : vector<128xf32>
    %28 = vector.multi_reduction <add>, %26, %cst_16 [0] : vector<64x128xf32> to vector<128xf32>
    %29 = vector.shape_cast %28 : vector<128xf32> to vector<1x128xf32>
    %30 = arith.mulf %26, %26 : vector<64x128xf32>
    %cst_17 = arith.constant dense<0.000000e+00> : vector<128xf32>
    %31 = vector.multi_reduction <add>, %30, %cst_17 [0] : vector<64x128xf32> to vector<128xf32>
    %32 = vector.shape_cast %31 : vector<128xf32> to vector<1x128xf32>
    %33 = tpu.concatenate %29, %32 in 0 : vector<1x128xf32>, vector<1x128xf32> -> vector<2x128xf32>
    %34 = vector.shape_cast %33 : vector<2x128xf32> to vector<1x2x128xf32>
    %c0_18 = arith.constant 0 : index
    %c0_19 = arith.constant 0 : index
    %c0_20 = arith.constant 0 : index
    %35 = vector.load %arg9[%c0_18, %c0_19, %c0_20] : memref<1x2x128xf32, #tpu.memory_space<vmem>>, vector<1x2x128xf32>
    tpu.vector_store %arg9[%c0_18, %c0_19, %c0_20], %34 {strides = array<i32>} : memref<1x2x128xf32, #tpu.memory_space<vmem>>, vector<1x2x128xf32>,
    return
  }
  func.func @transform_0(%arg0: i32) -> (i32, i32) {
    %c0_i32 = arith.constant 0 : i32
    %c0_i32_0 = arith.constant 0 : i32
    return %arg0, %c0_i32 : i32, i32
  }
  func.func @transform_1(%arg0: i32) -> (i32, i32) {
    %c0_i32 = arith.constant 0 : i32
    %c0_i32_0 = arith.constant 0 : i32
    %c0_i32_1 = arith.constant 0 : i32
    return %c0_i32, %c0_i32_0 : i32, i32
  }
  func.func @transform_2(%arg0: i32) -> (i32, i32) {
    %c0_i32 = arith.constant 0 : i32
    %c0_i32_0 = arith.constant 0 : i32
    %c0_i32_1 = arith.constant 0 : i32
    return %c0_i32, %c0_i32_0 : i32, i32
  }
  func.func @transform_3(%arg0: i32) -> (i32, i32) {
    %c0_i32 = arith.constant 0 : i32
    %c0_i32_0 = arith.constant 0 : i32
    %c0_i32_1 = arith.constant 0 : i32
    return %c0_i32, %c0_i32_0 : i32, i32
  }
  func.func @transform_4(%arg0: i32) -> (i32, i32) {
    %c0_i32 = arith.constant 0 : i32
    %c0_i32_0 = arith.constant 0 : i32
    %c0_i32_1 = arith.constant 0 : i32
    return %c0_i32, %c0_i32_0 : i32, i32
  }
  func.func @transform_5(%arg0: i32) -> (i32, i32) {
    %c0_i32 = arith.constant 0 : i32
    %c0_i32_0 = arith.constant 0 : i32
    %c0_i32_1 = arith.constant 0 : i32
    return %c0_i32, %c0_i32_0 : i32, i32
  }
  func.func @transform_6(%arg0: i32) -> (i32, i32) {
    %c0_i32 = arith.constant 0 : i32
    %c0_i32_0 = arith.constant 0 : i32
    %c0_i32_1 = arith.constant 0 : i32
    return %c0_i32, %c0_i32_0 : i32, i32
  }
  func.func @transform_7(%arg0: i32) -> (i32, i32) {
    %c0_i32 = arith.constant 0 : i32
    %c0_i32_0 = arith.constant 0 : i32
    return %arg0, %c0_i32 : i32, i32
  }
  func.func @transform_8(%arg0: i32) -> (i32, i32, i32) {
    %c0_i32 = arith.constant 0 : i32
    %c0_i32_0 = arith.constant 0 : i32
    %c0_i32_1 = arith.constant 0 : i32
    return %arg0, %c0_i32, %c0_i32_0 : i32, i32, i32
  }
}

module attributes {stable_mosaic.version = 11 : i64} {
  func.func @_stage3_kernel(%arg0: i32, %arg1: memref<64x128xf32, #tpu.memory_space<vmem>>, %arg2: memref<1x128xf32, #tpu.memory_space<vmem>>, %arg3: memref<1x128xf32, #tpu.memory_space<vmem>>, %arg4: memref<128x256xf32, #tpu.memory_space<vmem>>, %arg5: memref<1x256xf32, #tpu.memory_space<vmem>>, %arg6: memref<64x256xf32, #tpu.memory_space<vmem>>, %arg7: memref<1x2x256xf32, #tpu.memory_space<vmem>>) attributes {dimension_semantics = [#tpu.dimension_semantics<parallel>], iteration_bounds = array<i64: 2>, scalar_prefetch = 0 : i64, scratch_operands = 0 : i64, tpu.core_type = #tpu.core_type<tc>, window_params = [{transform_indices = @transform_0, window_bounds = array<i64: 64, 128>}, {pipeline_mode = #tpu.pipeline_mode<synchronous>, transform_indices = @transform_1, window_bounds = array<i64: 1, 128>}, {pipeline_mode = #tpu.pipeline_mode<synchronous>, transform_indices = @transform_2, window_bounds = array<i64: 1, 128>}, {pipeline_mode = #tpu.pipeline_mode<synchronous>, transform_indices = @transform_3, window_bounds = array<i64: 128, 256>}, {pipeline_mode = #tpu.pipeline_mode<synchronous>, transform_indices = @transform_4, window_bounds = array<i64: 1, 256>}, {transform_indices = @transform_5, window_bounds = array<i64: 64, 256>}, {transform_indices = @transform_6, window_bounds = array<i64: 1, 2, 256>}]} {
    %c0 = arith.constant 0 : index
    %c0_0 = arith.constant 0 : index
    %0 = vector.load %arg1[%c0, %c0_0] : memref<64x128xf32, #tpu.memory_space<vmem>>, vector<64x128xf32>
    %c0_1 = arith.constant 0 : index
    %c0_2 = arith.constant 0 : index
    %1 = vector.load %arg2[%c0_1, %c0_2] : memref<1x128xf32, #tpu.memory_space<vmem>>, vector<1x128xf32>
    %2 = vector.broadcast %1 : vector<1x128xf32> to vector<64x128xf32>
    %3 = arith.mulf %0, %2 : vector<64x128xf32>
    %c0_3 = arith.constant 0 : index
    %c0_4 = arith.constant 0 : index
    %4 = vector.load %arg3[%c0_3, %c0_4] : memref<1x128xf32, #tpu.memory_space<vmem>>, vector<1x128xf32>
    %5 = vector.broadcast %4 : vector<1x128xf32> to vector<64x128xf32>
    %6 = arith.addf %3, %5 : vector<64x128xf32>
    %cst = arith.constant 0.000000e+00 : f32
    %7 = vector.broadcast %cst : f32 to vector<64x128xf32>
    %8 = arith.maximumf %6, %7 : vector<64x128xf32>
    %c0_5 = arith.constant 0 : index
    %c0_6 = arith.constant 0 : index
    %9 = vector.load %arg4[%c0_5, %c0_6] : memref<128x256xf32, #tpu.memory_space<vmem>>, vector<128x256xf32>
    %cst_7 = arith.constant dense<0.000000e+00> : vector<64x256xf32>
    %10 = tpu.matmul %8, %9, %cst_7 {dimension_numbers = #tpu.dot_dimension_numbers<[1], [0], [0], [1], [0, 0, 1, 1], [], []>} : vector<64x128xf32>, vector<128x256xf32>, vector<64x256xf32> -> vector<64x256xf32>
    %c0_8 = arith.constant 0 : index
    %c0_9 = arith.constant 0 : index
    %11 = vector.load %arg5[%c0_8, %c0_9] : memref<1x256xf32, #tpu.memory_space<vmem>>, vector<1x256xf32>
    %12 = vector.broadcast %11 : vector<1x256xf32> to vector<64x256xf32>
    %13 = arith.addf %10, %12 : vector<64x256xf32>
    %c0_10 = arith.constant 0 : index
    %c0_11 = arith.constant 0 : index
    %14 = vector.load %arg6[%c0_10, %c0_11] : memref<64x256xf32, #tpu.memory_space<vmem>>, vector<64x256xf32>
    tpu.vector_store %arg6[%c0_10, %c0_11], %13 {strides = array<i32>} : memref<64x256xf32, #tpu.memory_space<vmem>>, vector<64x256xf32>,
    %cst_12 = arith.constant dense<0.000000e+00> : vector<256xf32>
    %15 = vector.multi_reduction <add>, %13, %cst_12 [0] : vector<64x256xf32> to vector<256xf32>
    %16 = vector.shape_cast %15 : vector<256xf32> to vector<1x256xf32>
    %17 = arith.mulf %13, %13 : vector<64x256xf32>
    %cst_13 = arith.constant dense<0.000000e+00> : vector<256xf32>
    %18 = vector.multi_reduction <add>, %17, %cst_13 [0] : vector<64x256xf32> to vector<256xf32>
    %19 = vector.shape_cast %18 : vector<256xf32> to vector<1x256xf32>
    %20 = tpu.concatenate %16, %19 in 0 : vector<1x256xf32>, vector<1x256xf32> -> vector<2x256xf32>
    %21 = vector.shape_cast %20 : vector<2x256xf32> to vector<1x2x256xf32>
    %c0_14 = arith.constant 0 : index
    %c0_15 = arith.constant 0 : index
    %c0_16 = arith.constant 0 : index
    %22 = vector.load %arg7[%c0_14, %c0_15, %c0_16] : memref<1x2x256xf32, #tpu.memory_space<vmem>>, vector<1x2x256xf32>
    tpu.vector_store %arg7[%c0_14, %c0_15, %c0_16], %21 {strides = array<i32>} : memref<1x2x256xf32, #tpu.memory_space<vmem>>, vector<1x2x256xf32>,
    return
  }
  func.func @transform_0(%arg0: i32) -> (i32, i32) {
    %c0_i32 = arith.constant 0 : i32
    %c0_i32_0 = arith.constant 0 : i32
    return %arg0, %c0_i32 : i32, i32
  }
  func.func @transform_1(%arg0: i32) -> (i32, i32) {
    %c0_i32 = arith.constant 0 : i32
    %c0_i32_0 = arith.constant 0 : i32
    %c0_i32_1 = arith.constant 0 : i32
    return %c0_i32, %c0_i32_0 : i32, i32
  }
  func.func @transform_2(%arg0: i32) -> (i32, i32) {
    %c0_i32 = arith.constant 0 : i32
    %c0_i32_0 = arith.constant 0 : i32
    %c0_i32_1 = arith.constant 0 : i32
    return %c0_i32, %c0_i32_0 : i32, i32
  }
  func.func @transform_3(%arg0: i32) -> (i32, i32) {
    %c0_i32 = arith.constant 0 : i32
    %c0_i32_0 = arith.constant 0 : i32
    %c0_i32_1 = arith.constant 0 : i32
    return %c0_i32, %c0_i32_0 : i32, i32
  }
  func.func @transform_4(%arg0: i32) -> (i32, i32) {
    %c0_i32 = arith.constant 0 : i32
    %c0_i32_0 = arith.constant 0 : i32
    %c0_i32_1 = arith.constant 0 : i32
    return %c0_i32, %c0_i32_0 : i32, i32
  }
  func.func @transform_5(%arg0: i32) -> (i32, i32) {
    %c0_i32 = arith.constant 0 : i32
    %c0_i32_0 = arith.constant 0 : i32
    return %arg0, %c0_i32 : i32, i32
  }
  func.func @transform_6(%arg0: i32) -> (i32, i32, i32) {
    %c0_i32 = arith.constant 0 : i32
    %c0_i32_0 = arith.constant 0 : i32
    %c0_i32_1 = arith.constant 0 : i32
    return %arg0, %c0_i32, %c0_i32_0 : i32, i32, i32
  }
}

module attributes {stable_mosaic.version = 11 : i64} {
  func.func @_finalize_kernel(%arg0: i32, %arg1: memref<64x256xf32, #tpu.memory_space<vmem>>, %arg2: memref<1x256xf32, #tpu.memory_space<vmem>>, %arg3: memref<1x256xf32, #tpu.memory_space<vmem>>, %arg4: memref<64x128xf32, #tpu.memory_space<vmem>>, %arg5: memref<128x256xf32, #tpu.memory_space<vmem>>, %arg6: memref<1x256xf32, #tpu.memory_space<vmem>>, %arg7: memref<64x256xf32, #tpu.memory_space<vmem>>) attributes {dimension_semantics = [#tpu.dimension_semantics<parallel>], iteration_bounds = array<i64: 2>, scalar_prefetch = 0 : i64, scratch_operands = 0 : i64, tpu.core_type = #tpu.core_type<tc>, window_params = [{transform_indices = @transform_0, window_bounds = array<i64: 64, 256>}, {pipeline_mode = #tpu.pipeline_mode<synchronous>, transform_indices = @transform_1, window_bounds = array<i64: 1, 256>}, {pipeline_mode = #tpu.pipeline_mode<synchronous>, transform_indices = @transform_2, window_bounds = array<i64: 1, 256>}, {transform_indices = @transform_3, window_bounds = array<i64: 64, 128>}, {pipeline_mode = #tpu.pipeline_mode<synchronous>, transform_indices = @transform_4, window_bounds = array<i64: 128, 256>}, {pipeline_mode = #tpu.pipeline_mode<synchronous>, transform_indices = @transform_5, window_bounds = array<i64: 1, 256>}, {transform_indices = @transform_6, window_bounds = array<i64: 64, 256>}]} {
    %c0 = arith.constant 0 : index
    %c0_0 = arith.constant 0 : index
    %0 = vector.load %arg1[%c0, %c0_0] : memref<64x256xf32, #tpu.memory_space<vmem>>, vector<64x256xf32>
    %c0_1 = arith.constant 0 : index
    %c0_2 = arith.constant 0 : index
    %1 = vector.load %arg2[%c0_1, %c0_2] : memref<1x256xf32, #tpu.memory_space<vmem>>, vector<1x256xf32>
    %2 = vector.broadcast %1 : vector<1x256xf32> to vector<64x256xf32>
    %3 = arith.mulf %0, %2 : vector<64x256xf32>
    %c0_3 = arith.constant 0 : index
    %c0_4 = arith.constant 0 : index
    %4 = vector.load %arg3[%c0_3, %c0_4] : memref<1x256xf32, #tpu.memory_space<vmem>>, vector<1x256xf32>
    %5 = vector.broadcast %4 : vector<1x256xf32> to vector<64x256xf32>
    %6 = arith.addf %3, %5 : vector<64x256xf32>
    %cst = arith.constant 0.000000e+00 : f32
    %7 = vector.broadcast %cst : f32 to vector<64x256xf32>
    %8 = arith.maximumf %6, %7 : vector<64x256xf32>
    %c0_5 = arith.constant 0 : index
    %c0_6 = arith.constant 0 : index
    %9 = vector.load %arg4[%c0_5, %c0_6] : memref<64x128xf32, #tpu.memory_space<vmem>>, vector<64x128xf32>
    %c0_7 = arith.constant 0 : index
    %c0_8 = arith.constant 0 : index
    %10 = vector.load %arg5[%c0_7, %c0_8] : memref<128x256xf32, #tpu.memory_space<vmem>>, vector<128x256xf32>
    %cst_9 = arith.constant dense<0.000000e+00> : vector<64x256xf32>
    %11 = tpu.matmul %9, %10, %cst_9 {dimension_numbers = #tpu.dot_dimension_numbers<[1], [0], [0], [1], [0, 0, 1, 1], [], []>} : vector<64x128xf32>, vector<128x256xf32>, vector<64x256xf32> -> vector<64x256xf32>
    %c0_10 = arith.constant 0 : index
    %c0_11 = arith.constant 0 : index
    %12 = vector.load %arg6[%c0_10, %c0_11] : memref<1x256xf32, #tpu.memory_space<vmem>>, vector<1x256xf32>
    %13 = vector.broadcast %12 : vector<1x256xf32> to vector<64x256xf32>
    %14 = arith.addf %11, %13 : vector<64x256xf32>
    %15 = arith.addf %8, %14 : vector<64x256xf32>
    %c0_12 = arith.constant 0 : index
    %c0_13 = arith.constant 0 : index
    %16 = vector.load %arg7[%c0_12, %c0_13] : memref<64x256xf32, #tpu.memory_space<vmem>>, vector<64x256xf32>
    tpu.vector_store %arg7[%c0_12, %c0_13], %15 {strides = array<i32>} : memref<64x256xf32, #tpu.memory_space<vmem>>, vector<64x256xf32>,
    return
  }
  func.func @transform_0(%arg0: i32) -> (i32, i32) {
    %c0_i32 = arith.constant 0 : i32
    %c0_i32_0 = arith.constant 0 : i32
    return %arg0, %c0_i32 : i32, i32
  }
  func.func @transform_1(%arg0: i32) -> (i32, i32) {
    %c0_i32 = arith.constant 0 : i32
    %c0_i32_0 = arith.constant 0 : i32
    %c0_i32_1 = arith.constant 0 : i32
    return %c0_i32, %c0_i32_0 : i32, i32
  }
  func.func @transform_2(%arg0: i32) -> (i32, i32) {
    %c0_i32 = arith.constant 0 : i32
    %c0_i32_0 = arith.constant 0 : i32
    %c0_i32_1 = arith.constant 0 : i32
    return %c0_i32, %c0_i32_0 : i32, i32
  }
  func.func @transform_3(%arg0: i32) -> (i32, i32) {
    %c0_i32 = arith.constant 0 : i32
    %c0_i32_0 = arith.constant 0 : i32
    return %arg0, %c0_i32 : i32, i32
  }
  func.func @transform_4(%arg0: i32) -> (i32, i32) {
    %c0_i32 = arith.constant 0 : i32
    %c0_i32_0 = arith.constant 0 : i32
    %c0_i32_1 = arith.constant 0 : i32
    return %c0_i32, %c0_i32_0 : i32, i32
  }
  func.func @transform_5(%arg0: i32) -> (i32, i32) {
    %c0_i32 = arith.constant 0 : i32
    %c0_i32_0 = arith.constant 0 : i32
    %c0_i32_1 = arith.constant 0 : i32
    return %c0_i32, %c0_i32_0 : i32, i32
  }
  func.func @transform_6(%arg0: i32) -> (i32, i32) {
    %c0_i32 = arith.constant 0 : i32
    %c0_i32_0 = arith.constant 0 : i32
    return %arg0, %c0_i32 : i32, i32
  }
}

</mosaic_0001>

<llo_original>
// kernel: bottleneck_forward.6
$region0: #{bottleneck_forward.6}
  #allocation0 [shape = 'u32[]', space=smem, size = 0x4, offset = 0x4, fixed_abs, tag = 'smem constant byte address 0x4 - core index']
  #allocation1 [shape = 'u32[144,128]{1,0:T(1,128)}', space=vmem, size = 0x12000, scoped, tag = 'internal scratch']
  %s0 = inlined_call_operand.vmem [shape: f32[128,128], index: 0, kind: input, shape index: {}]
  %s1 = inlined_call_operand.vmem [shape: f32[1,128], index: 1, kind: input, shape index: {}]
  %s2 = inlined_call_operand.vmem [shape: f32[1,128], index: 2, kind: input, shape index: {}]
  %s3 = inlined_call_operand.vmem [shape: f32[128,256], index: 3, kind: input, shape index: {}]
  %s4 = inlined_call_operand.vmem [shape: f32[1,256], index: 4, kind: input, shape index: {}]
  %s5 = inlined_call_operand.vmem [shape: f32[128,256], index: 5, kind: output, shape index: {0}]
  %s6 = inlined_call_operand.vmem [shape: f32[2,2,256], index: 6, kind: output, shape index: {1}]
  %7 = xla_tuple %s5, %s6
  %s8 = sld [smem:[#allocation0]]
  $region61: #{bottleneck_forward.6} parent=0
    _
  %s10 = ssub.s32 1, %s8
  %s11 = scalar_select 0, %s10, %s8
  loop: start=0, step=1, limit=4
  $region2: #{bottleneck_forward.6} parent=0 // loop_pre_header
    _
  $region3: #{bottleneck_forward.6} parent=0 // loop_header
    %s13 = sphi 0, %s17
    %p14 = scmp.ge.s32.totalorder %s13, 4
    %s23 = sphi 0, %s25
    %s26 = sphi 0, %s23
    %s27 = sphi 0, %s26
    %s43 = sphi 0, %s27
    %s47 = sphi 0, %s47
    %s49 = sphi 0, %s47
    %s50 = sphi 0, %s49
    %s64 = sphi 0, %s50
    %s68 = sphi 0, %s68
    %s70 = sphi 0, %s68
    %s71 = sphi 0, %s70
    %s85 = sphi 0, %s71
    %s89 = sphi 0, %s89
    %s91 = sphi 0, %s89
    %s92 = sphi 0, %s91
    %s106 = sphi 0, %s92
    %s110 = sphi 0, %s110
    %s112 = sphi 0, %s110
    %s113 = sphi 0, %s112
    %s127 = sphi 0, %s113
    %s133 = sphi 0, %s135
    %s136 = sphi 0, %s133
    %s137 = sphi 0, %s136
    %s153 = sphi 0, %s137
    %s159 = sphi 0, %s161
    %s162 = sphi 0, %s159
    %s163 = sphi 0, %s162
    %s179 = sphi 0, %s163
  $region4: #{bottleneck_forward.6} parent=0 // loop_header_branch
    %16 = sbr.rel (%p14) target = $region8
  $region5: #{bottleneck_forward.6} parent=0 // loop_body
    %s18 = ssub.s32 %s13, 1
    %s19 = ssub.s32 %s13, 2
    %s20 = sadd.s32 %s13, 1
    %s21 = ssub.s32 %s13, %s20
    %p22 = scmp.eq.s32.totalorder %s21, 0
    %s24 = sadd.s32 %s23, 1
    %s25 = scalar_select %p22, %s23, %s24
    %p28 = pneg %p22
    %p29 = scmp.eq.s32.totalorder %s13, 1
    %p30 = por %p28, %p29
    %p31 = scmp.ne.s32.totalorder %s23, %s26
    %p32 = scmp.eq.s32.totalorder %s13, 0
    %p33 = por %p31, %p32
    %p34 = scmp.ne.s32.totalorder %s23, %s26
    %p35 = scmp.eq.s32.totalorder %s18, 1
    %p36 = por %p34, %p35
    %p37 = scmp.ne.s32.totalorder %s26, %s27
    %p38 = scmp.eq.s32.totalorder %s18, 0
    %p39 = por %p37, %p38
    %p40 = scmp.ne.s32.totalorder %s26, %s27
    %p41 = scmp.eq.s32.totalorder %s19, 1
    %p42 = por %p40, %p41
    %p44 = scmp.ne.s32.totalorder %s27, %s43
    %p45 = scmp.eq.s32.totalorder %s19, 0
    %p46 = por %p44, %p45
    %s48 = sadd.s32 %s47, 1
    %p51 = scmp.eq.s32.totalorder %s13, 1
    %p52 = scmp.ne.s32.totalorder %s47, %s49
    %p53 = scmp.eq.s32.totalorder %s13, 0
    %p54 = por %p52, %p53
    %p55 = scmp.ne.s32.totalorder %s47, %s49
    %p56 = scmp.eq.s32.totalorder %s18, 1
    %p57 = por %p55, %p56
    %p58 = scmp.ne.s32.totalorder %s49, %s50
    %p59 = scmp.eq.s32.totalorder %s18, 0
    %p60 = por %p58, %p59
    %p61 = scmp.ne.s32.totalorder %s49, %s50
    %p62 = scmp.eq.s32.totalorder %s19, 1
    %p63 = por %p61, %p62
    %p65 = scmp.ne.s32.totalorder %s50, %s64
    %p66 = scmp.eq.s32.totalorder %s19, 0
    %p67 = por %p65, %p66
    %s69 = sadd.s32 %s68, 1
    %p72 = scmp.eq.s32.totalorder %s13, 1
    %p73 = scmp.ne.s32.totalorder %s68, %s70
    %p74 = scmp.eq.s32.totalorder %s13, 0
    %p75 = por %p73, %p74
    %p76 = scmp.ne.s32.totalorder %s68, %s70
    %p77 = scmp.eq.s32.totalorder %s18, 1
    %p78 = por %p76, %p77
    %p79 = scmp.ne.s32.totalorder %s70, %s71
    %p80 = scmp.eq.s32.totalorder %s18, 0
    %p81 = por %p79, %p80
    %p82 = scmp.ne.s32.totalorder %s70, %s71
    %p83 = scmp.eq.s32.totalorder %s19, 1
    %p84 = por %p82, %p83
    %p86 = scmp.ne.s32.totalorder %s71, %s85
    %p87 = scmp.eq.s32.totalorder %s19, 0
    %p88 = por %p86, %p87
    %s90 = sadd.s32 %s89, 1
    %p93 = scmp.eq.s32.totalorder %s13, 1
    %p94 = scmp.ne.s32.totalorder %s89, %s91
    %p95 = scmp.eq.s32.totalorder %s13, 0
    %p96 = por %p94, %p95
    %p97 = scmp.ne.s32.totalorder %s89, %s91
    %p98 = scmp.eq.s32.totalorder %s18, 1
    %p99 = por %p97, %p98
    %p100 = scmp.ne.s32.totalorder %s91, %s92
    %p101 = scmp.eq.s32.totalorder %s18, 0
    %p102 = por %p100, %p101
    %p103 = scmp.ne.s32.totalorder %s91, %s92
    %p104 = scmp.eq.s32.totalorder %s19, 1
    %p105 = por %p103, %p104
    %p107 = scmp.ne.s32.totalorder %s92, %s106
    %p108 = scmp.eq.s32.totalorder %s19, 0
    %p109 = por %p107, %p108
    %s111 = sadd.s32 %s110, 1
    %p114 = scmp.eq.s32.totalorder %s13, 1
    %p115 = scmp.ne.s32.totalorder %s110, %s112
    %p116 = scmp.eq.s32.totalorder %s13, 0
    %p117 = por %p115, %p116
    %p118 = scmp.ne.s32.totalorder %s110, %s112
    %p119 = scmp.eq.s32.totalorder %s18, 1
    %p120 = por %p118, %p119
    %p121 = scmp.ne.s32.totalorder %s112, %s113
    %p122 = scmp.eq.s32.totalorder %s18, 0
    %p123 = por %p121, %p122
    %p124 = scmp.ne.s32.totalorder %s112, %s113
    %p125 = scmp.eq.s32.totalorder %s19, 1
    %p126 = por %p124, %p125
    %p128 = scmp.ne.s32.totalorder %s113, %s127
    %p129 = scmp.eq.s32.totalorder %s19, 0
    %p130 = por %p128, %p129
    %s131 = ssub.s32 %s13, %s20
    %p132 = scmp.eq.s32.totalorder %s131, 0
    %s134 = sadd.s32 %s133, 1
    %s135 = scalar_select %p132, %s133, %s134
    %p138 = pneg %p132
    %p139 = scmp.eq.s32.totalorder %s13, 1
    %p140 = por %p138, %p139
    %p141 = scmp.ne.s32.totalorder %s133, %s136
    %p142 = scmp.eq.s32.totalorder %s13, 0
    %p143 = por %p141, %p142
    %p144 = scmp.ne.s32.totalorder %s133, %s136
    %p145 = scmp.eq.s32.totalorder %s18, 1
    %p146 = por %p144, %p145
    %p147 = scmp.ne.s32.totalorder %s136, %s137
    %p148 = scmp.eq.s32.totalorder %s18, 0
    %p149 = por %p147, %p148
    %p150 = scmp.ne.s32.totalorder %s136, %s137
    %p151 = scmp.eq.s32.totalorder %s19, 1
    %p152 = por %p150, %p151
    %p154 = scmp.ne.s32.totalorder %s137, %s153
    %p155 = scmp.eq.s32.totalorder %s19, 0
    %p156 = por %p154, %p155
    %s157 = ssub.s32 %s13, %s20
    %p158 = scmp.eq.s32.totalorder %s157, 0
    %s160 = sadd.s32 %s159, 1
    %s161 = scalar_select %p158, %s159, %s160
    %p164 = pneg %p158
    %p165 = scmp.eq.s32.totalorder %s13, 1
    %p166 = por %p164, %p165
    %p167 = scmp.ne.s32.totalorder %s159, %s162
    %p168 = scmp.eq.s32.totalorder %s13, 0
    %p169 = por %p167, %p168
    %p170 = scmp.ne.s32.totalorder %s159, %s162
    %p171 = scmp.eq.s32.totalorder %s18, 1
    %p172 = por %p170, %p171
    %p173 = scmp.ne.s32.totalorder %s162, %s163
    %p174 = scmp.eq.s32.totalorder %s18, 0
    %p175 = por %p173, %p174
    %p176 = scmp.ne.s32.totalorder %s162, %s163
    %p177 = scmp.eq.s32.totalorder %s19, 1
    %p178 = por %p176, %p177
    %p180 = scmp.ne.s32.totalorder %s163, %s179
    %p181 = scmp.eq.s32.totalorder %s19, 0
    %p182 = por %p180, %p181
    %p183 = scmp.le.s32.totalorder 1, %s13
    %p184 = scmp.lt.s32.totalorder %s13, 3
    %p185 = pnand %p183, %p184
    %p186 = pneg %p185
    // Predicated region
    $region9: #{bottleneck_forward.6} parent=5 // pred_check
      _
    $region10: #{bottleneck_forward.6} parent=5 // pred_check_branch
      %188 = sbr.rel (%p185) target = $region12
    $region11: #{bottleneck_forward.6} parent=5 // pred_region
      %s189 = ssub.s32 %s13, 1
      // Predicated region
      $region13: #{bottleneck_forward.6} parent=11 // pred_check
        %p190 = pneg %p60
      $region14: #{bottleneck_forward.6} parent=11 // pred_check_branch
        %192 = sbr.rel (%p190) target = $region16
      $region15: #{bottleneck_forward.6} parent=11 // pred_region
        _
      $region16: #{bottleneck_forward.6} parent=11 // pred_fallthru
        _
      // Predicated region
      $region17: #{bottleneck_forward.6} parent=11 // pred_check
        %p193 = pneg %p81
      $region18: #{bottleneck_forward.6} parent=11 // pred_check_branch
        %195 = sbr.rel (%p193) target = $region20
      $region19: #{bottleneck_forward.6} parent=11 // pred_region
        _
      $region20: #{bottleneck_forward.6} parent=11 // pred_fallthru
        _
      // Predicated region
      $region21: #{bottleneck_forward.6} parent=11 // pred_check
        %p196 = pneg %p102
      $region22: #{bottleneck_forward.6} parent=11 // pred_check_branch
        %198 = sbr.rel (%p196) target = $region24
      $region23: #{bottleneck_forward.6} parent=11 // pred_region
        _
      $region24: #{bottleneck_forward.6} parent=11 // pred_fallthru
        _
      // Predicated region
      $region25: #{bottleneck_forward.6} parent=11 // pred_check
        %p199 = pneg %p123
      $region26: #{bottleneck_forward.6} parent=11 // pred_check_branch
        %201 = sbr.rel (%p199) target = $region28
      $region27: #{bottleneck_forward.6} parent=11 // pred_region
        _
      $region28: #{bottleneck_forward.6} parent=11 // pred_fallthru
        _
    $region12: #{bottleneck_forward.6} parent=5 // pred_fallthru
      _
    %p202 = scmp.lt.s32.totalorder %s13, 2
    // Predicated region
    $region29: #{bottleneck_forward.6} parent=5 // pred_check
      %p203 = pneg %p202
    $region30: #{bottleneck_forward.6} parent=5 // pred_check_branch
      %205 = sbr.rel (%p203) target = $region32
    $region31: #{bottleneck_forward.6} parent=5 // pred_region
      // Predicated region
      $region33: #{bottleneck_forward.6} parent=31 // pred_check
        %p206 = pneg %p33
      $region34: #{bottleneck_forward.6} parent=31 // pred_check_branch
        %208 = sbr.rel (%p206) target = $region36
      $region35: #{bottleneck_forward.6} parent=31 // pred_region
        %s209 = smul.u32 8, %s13
        %p210 = scmp.lt.s32.totalorder %s209, 15
        %s211 = scalar_select %p210, %s209, 15
        %s212 = smul.addr %s211, 8
        %s213 = scalar_lea.vmem %s0, %s212
        %s214 = smul.u32 8, %s13
      $region36: #{bottleneck_forward.6} parent=31 // pred_fallthru
        _
    $region32: #{bottleneck_forward.6} parent=5 // pred_fallthru
      _
    %p215 = scmp.le.s32.totalorder 1, %s13
    %p216 = scmp.lt.s32.totalorder %s13, 3
    %p217 = pnand %p215, %p216
    %p218 = pneg %p217
    // Predicated region
    $region37: #{bottleneck_forward.6} parent=5 // pred_check
      _
    $region38: #{bottleneck_forward.6} parent=5 // pred_check_branch
      %220 = sbr.rel (%p217) target = $region40
    $region39: #{bottleneck_forward.6} parent=5 // pred_region
      %s221 = ssub.s32 %s13, 1
      %s222 = smul.u32 8, %s18
      %p223 = scmp.lt.s32.totalorder %s222, 15
      %s224 = scalar_select %p223, %s222, 15
      %s225 = smul.addr %s224, 8
      %s226 = scalar_lea.vmem %s0, %s225
      %p227 = pneg %p39
      %p228 = pneg %p36
      %p229 = pneg %p60
      %p230 = pneg %p57
      %p231 = pneg %p81
      %p232 = pneg %p78
      %p233 = pneg %p102
      %p234 = pneg %p99
      %p235 = pneg %p123
      %p236 = pneg %p120
      %p237 = pneg %p149
      %p238 = pneg %p146
      %s239 = smul.u32 8, %s18
      %p240 = scmp.lt.s32.totalorder %s239, 15
      %s241 = scalar_select %p240, %s239, 15
      %s242 = smul.addr %s241, 2
      %s243 = smul.addr %s242, 8
      %s244 = scalar_lea.vmem %s5, %s243
      %p245 = pneg %p175
      %p246 = pneg %p172
      %p247 = scmp.lt.s32.totalorder %s18, 1
      %s248 = scalar_select %p247, %s18, 1
      %s249 = smul.addr %s248, 2
      %s250 = smul.addr %s249, 2
      %s251 = scalar_lea.vmem %s6, %s250
      %s252 = smul.u32 8, %s18
      %p253 = scmp.lt.s32.totalorder %s252, 15
      %s254 = scalar_select %p253, %s252, 15
      %s255 = smul.addr %s254, 8
      %s256 = scalar_lea.vmem %s0, %s255
      %s257 = smul.u32 8, %s18
      %s258 = smul.u32 8, %s18
      %p259 = scmp.lt.s32.totalorder %s258, 15
      %s260 = scalar_select %p259, %s258, 15
      %s261 = smul.addr %s260, 2
      %s262 = smul.addr %s261, 8
      %s263 = scalar_lea.vmem %s5, %s262
      %s264 = smul.u32 8, %s18
      %p265 = scmp.lt.s32.totalorder %s18, 1
      %s266 = scalar_select %p265, %s18, 1
      %s267 = smul.addr %s266, 2
      %s268 = smul.addr %s267, 2
      %s269 = scalar_lea.vmem %s6, %s268
      %v270 = vld [vmem:[%s256] sm:$0xff]
      %v271 = vld [vmem:[%s256 + $0x8] sm:$0xff]
      %v272 = vld [vmem:[%s256 + $0x10] sm:$0xff]
      %v273 = vld [vmem:[%s256 + $0x18] sm:$0xff]
      %v274 = vld [vmem:[%s256 + $0x20] sm:$0xff]
      %v275 = vld [vmem:[%s256 + $0x28] sm:$0xff]
      %v276 = vld [vmem:[%s256 + $0x30] sm:$0xff]
      %v277 = vld [vmem:[%s256 + $0x38] sm:$0xff]
      %v278 = vld [vmem:[%s1] sm:$0x1]
      %v280 = vlaneseq
      %v281 = vshrl.u32 %v280, 7
      %v282 = vsub.s32 0, %v281
      %v283 = vrot.slane %v278, %v282
      %v285 = vmul.f32 %v270, %v283
      %v286 = vmul.f32 %v271, %v283
      %v287 = vmul.f32 %v272, %v283
      %v288 = vmul.f32 %v273, %v283
      %v289 = vmul.f32 %v274, %v283
      %v290 = vmul.f32 %v275, %v283
      %v291 = vmul.f32 %v276, %v283
      %v292 = vmul.f32 %v277, %v283
      %v293 = vld [vmem:[%s2] sm:$0x1]
      %v295 = vlaneseq
      %v296 = vshrl.u32 %v295, 7
      %v297 = vsub.s32 0, %v296
      %v298 = vrot.slane %v293, %v297
      %v300 = vadd.f32 %v285, %v298
      %v301 = vadd.f32 %v286, %v298
      %v302 = vadd.f32 %v287, %v298
      %v303 = vadd.f32 %v288, %v298
      %v304 = vadd.f32 %v289, %v298
      %v305 = vadd.f32 %v290, %v298
      %v306 = vadd.f32 %v291, %v298
      %v307 = vadd.f32 %v292, %v298
      %v308 = vmax.f32 %v300, 0.0
      %v309 = vmax.f32 %v301, 0.0
      %v310 = vmax.f32 %v302, 0.0
      %v311 = vmax.f32 %v303, 0.0
      %v312 = vmax.f32 %v304, 0.0
      %v313 = vmax.f32 %v305, 0.0
      %v314 = vmax.f32 %v306, 0.0
      %v315 = vmax.f32 %v307, 0.0
      %v316 = vld [vmem:[%s3] sm:$0xff]
      %v317 = vld [vmem:[%s3 + $0x8] sm:$0xff]
      %v318 = vld [vmem:[%s3 + $0x10] sm:$0xff]
      %v319 = vld [vmem:[%s3 + $0x18] sm:$0xff]
      %v320 = vld [vmem:[%s3 + $0x20] sm:$0xff]
      %v321 = vld [vmem:[%s3 + $0x28] sm:$0xff]
      %v322 = vld [vmem:[%s3 + $0x30] sm:$0xff]
      %v323 = vld [vmem:[%s3 + $0x38] sm:$0xff]
      %v324 = vld [vmem:[%s3 + $0x40] sm:$0xff]
      %v325 = vld [vmem:[%s3 + $0x48] sm:$0xff]
      %v326 = vld [vmem:[%s3 + $0x50] sm:$0xff]
      %v327 = vld [vmem:[%s3 + $0x58] sm:$0xff]
      %v328 = vld [vmem:[%s3 + $0x60] sm:$0xff]
      %v329 = vld [vmem:[%s3 + $0x68] sm:$0xff]
      %v330 = vld [vmem:[%s3 + $0x70] sm:$0xff]
      %v331 = vld [vmem:[%s3 + $0x78] sm:$0xff]
      %v332 = vld [vmem:[%s3 + $0x80] sm:$0xff]
      %v333 = vld [vmem:[%s3 + $0x88] sm:$0xff]
      %v334 = vld [vmem:[%s3 + $0x90] sm:$0xff]
      %v335 = vld [vmem:[%s3 + $0x98] sm:$0xff]
      %v336 = vld [vmem:[%s3 + $0xa0] sm:$0xff]
      %v337 = vld [vmem:[%s3 + $0xa8] sm:$0xff]
      %v338 = vld [vmem:[%s3 + $0xb0] sm:$0xff]
      %v339 = vld [vmem:[%s3 + $0xb8] sm:$0xff]
      %v340 = vld [vmem:[%s3 + $0xc0] sm:$0xff]
      %v341 = vld [vmem:[%s3 + $0xc8] sm:$0xff]
      %v342 = vld [vmem:[%s3 + $0xd0] sm:$0xff]
      %v343 = vld [vmem:[%s3 + $0xd8] sm:$0xff]
      %v344 = vld [vmem:[%s3 + $0xe0] sm:$0xff]
      %v345 = vld [vmem:[%s3 + $0xe8] sm:$0xff]
      %v346 = vld [vmem:[%s3 + $0xf0] sm:$0xff]
      %v347 = vld [vmem:[%s3 + $0xf8] sm:$0xff]
      %v348 = vld [vmem:[%s4] sm:$0x3]
      %v350 = vlaneseq
      %v351 = vshrl.u32 %v350, 7
      %v352 = vsub.s32 0, %v351
      %v353 = vrot.slane %v348, %v352
      %v354 = vlaneseq
      %v355 = vshrl.u32 %v354, 7
      %v356 = vsub.s32 1, %v355
      %v357 = vrot.slane %v348, %v356
      %360 = vmatprep.subr.mxu0 %v317
      %361 = vmatpush1.msra.mxu0 %v316
      %362 = vmatprep.subr.mxu0 %v319
      %363 = vmatpush1.msra.mxu0 %v318
      %364 = vmatprep.subr.mxu0 %v321
      %365 = vmatpush1.msra.mxu0 %v320
      %366 = vmatprep.subr.mxu0 %v323
      %367 = vmatpush1.msra.mxu0 %v322
      %368 = vmatprep.subr.mxu0 %v325
      %369 = vmatpush1.msra.mxu0 %v324
      %370 = vmatprep.subr.mxu0 %v327
      %371 = vmatpush1.msra.mxu0 %v326
      %372 = vmatprep.subr.mxu0 %v329
      %373 = vmatpush1.msra.mxu0 %v328
      %374 = vmatprep.subr.mxu0 %v331
      %375 = vmatpush1.msra.mxu0 %v330
      %376 = vmatprep.subr.mxu0 %v333
      %377 = vmatpush1.msra.mxu0 %v332
      %378 = vmatprep.subr.mxu0 %v335
      %379 = vmatpush1.msra.mxu0 %v334
      %380 = vmatprep.subr.mxu0 %v337
      %381 = vmatpush1.msra.mxu0 %v336
      %382 = vmatprep.subr.mxu0 %v339
      %383 = vmatpush1.msra.mxu0 %v338
      %384 = vmatprep.subr.mxu0 %v341
      %385 = vmatpush1.msra.mxu0 %v340
      %386 = vmatprep.subr.mxu0 %v343
      %387 = vmatpush1.msra.mxu0 %v342
      %388 = vmatprep.subr.mxu0 %v345
      %389 = vmatpush1.msra.mxu0 %v344
      %390 = vmatprep.subr.mxu0 %v347
      %391 = vmatpush1.msra.mxu0 %v346
      %392 = vmatprep.subr.mxu0 0.0
      %393 = vmatpush1.msra.mxu0 0.0
      %394 = vmatprep.subr.mxu0 0.0
      %395 = vmatpush1.msra.mxu0 0.0
      %396 = vmatprep.subr.mxu0 0.0
      %397 = vmatpush1.msra.mxu0 0.0
      %398 = vmatprep.subr.mxu0 0.0
      %399 = vmatpush1.msra.mxu0 0.0
      %400 = vmatprep.subr.mxu0 0.0
      %401 = vmatpush1.msra.mxu0 0.0
      %402 = vmatprep.subr.mxu0 0.0
      %403 = vmatpush1.msra.mxu0 0.0
      %404 = vmatprep.subr.mxu0 0.0
      %405 = vmatpush1.msra.mxu0 0.0
      %406 = vmatprep.subr.mxu0 0.0
      %407 = vmatpush1.msra.mxu0 0.0
      %408 = vmatprep.subr.mxu0 0.0
      %409 = vmatpush1.msra.mxu0 0.0
      %410 = vmatprep.subr.mxu0 0.0
      %411 = vmatpush1.msra.mxu0 0.0
      %412 = vmatprep.subr.mxu0 0.0
      %413 = vmatpush1.msra.mxu0 0.0
      %414 = vmatprep.subr.mxu0 0.0
      %415 = vmatpush1.msra.mxu0 0.0
      %416 = vmatprep.subr.mxu0 0.0
      %417 = vmatpush1.msra.mxu0 0.0
      %418 = vmatprep.subr.mxu0 0.0
      %419 = vmatpush1.msra.mxu0 0.0
      %420 = vmatprep.subr.mxu0 0.0
      %421 = vmatpush1.msra.mxu0 0.0
      %422 = vmatprep.subr.mxu0 0.0
      %423 = vmatpush1.msra.mxu0 0.0
      %424 = vmatprep.mubr.f32.mxu0 0.0
      %425 = vmatmul.mubr.f32.gmra.mrb[0].mxu0 %v308
      %v426 = vpop.f32.mrb[0].mxu0
      %v427 = vadd.f32 %v353, %v426
      %v428 = vpop.f32.mrb[0].mxu0
      %v429 = vadd.f32 %v357, %v428
      %430 = vmatprep.mubr.f32.mxu0 0.0
      %431 = vmatmul.mubr.f32.gmra.mrb[0].mxu0 %v309
      %v432 = vpop.f32.mrb[0].mxu0
      %v433 = vadd.f32 %v353, %v432
      %v434 = vpop.f32.mrb[0].mxu0
      %v435 = vadd.f32 %v357, %v434
      %436 = vmatprep.mubr.f32.mxu0 0.0
      %437 = vmatmul.mubr.f32.gmra.mrb[0].mxu0 %v310
      %v438 = vpop.f32.mrb[0].mxu0
      %v439 = vadd.f32 %v353, %v438
      %v440 = vpop.f32.mrb[0].mxu0
      %v441 = vadd.f32 %v357, %v440
      %442 = vmatprep.mubr.f32.mxu0 0.0
      %443 = vmatmul.mubr.f32.gmra.mrb[0].mxu0 %v311
      %v444 = vpop.f32.mrb[0].mxu0
      %v445 = vadd.f32 %v353, %v444
      %v446 = vpop.f32.mrb[0].mxu0
      %v447 = vadd.f32 %v357, %v446
      %448 = vmatprep.mubr.f32.mxu0 0.0
      %449 = vmatmul.mubr.f32.gmra.mrb[0].mxu0 %v312
      %v450 = vpop.f32.mrb[0].mxu0
      %v451 = vadd.f32 %v353, %v450
      %v452 = vpop.f32.mrb[0].mxu0
      %v453 = vadd.f32 %v357, %v452
      %454 = vmatprep.mubr.f32.mxu0 0.0
      %455 = vmatmul.mubr.f32.gmra.mrb[0].mxu0 %v313
      %v456 = vpop.f32.mrb[0].mxu0
      %v457 = vadd.f32 %v353, %v456
      %v458 = vpop.f32.mrb[0].mxu0
      %v459 = vadd.f32 %v357, %v458
      %460 = vmatprep.mubr.f32.mxu0 0.0
      %461 = vmatmul.mubr.f32.gmra.mrb[0].mxu0 %v314
      %v462 = vpop.f32.mrb[0].mxu0
      %v463 = vadd.f32 %v353, %v462
      %v464 = vpop.f32.mrb[0].mxu0
      %v465 = vadd.f32 %v357, %v464
      %466 = vmatprep.mubr.f32.mxu0 0.0
      %467 = vmatmul.mubr.f32.gmra.mrb[0].mxu0 %v315
      %v468 = vpop.f32.mrb[0].mxu0
      %v469 = vadd.f32 %v353, %v468
      %v470 = vpop.f32.mrb[0].mxu0
      %v471 = vadd.f32 %v357, %v470
      %472 = vdwg.mxu0
      %473 = vst [vmem:[%s263] sm:$0xff] %v427
      %474 = vst [vmem:[%s263 + $0x8] sm:$0xff] %v429
      %475 = vst [vmem:[%s263 + $0x10] sm:$0xff] %v433
      %476 = vst [vmem:[%s263 + $0x18] sm:$0xff] %v435
      %477 = vst [vmem:[%s263 + $0x20] sm:$0xff] %v439
      %478 = vst [vmem:[%s263 + $0x28] sm:$0xff] %v441
      %479 = vst [vmem:[%s263 + $0x30] sm:$0xff] %v445
      %480 = vst [vmem:[%s263 + $0x38] sm:$0xff] %v447
      %481 = vst [vmem:[%s263 + $0x40] sm:$0xff] %v451
      %482 = vst [vmem:[%s263 + $0x48] sm:$0xff] %v453
      %483 = vst [vmem:[%s263 + $0x50] sm:$0xff] %v457
      %484 = vst [vmem:[%s263 + $0x58] sm:$0xff] %v459
      %485 = vst [vmem:[%s263 + $0x60] sm:$0xff] %v463
      %486 = vst [vmem:[%s263 + $0x68] sm:$0xff] %v465
      %487 = vst [vmem:[%s263 + $0x70] sm:$0xff] %v469
      %488 = vst [vmem:[%s263 + $0x78] sm:$0xff] %v471
      %v489 = vadd.f32 %v427, %v433
      %v490 = vadd.f32 %v489, %v439
      %v491 = vadd.f32 %v490, %v445
      %v492 = vadd.f32 %v491, %v451
      %v493 = vadd.f32 %v492, %v457
      %v494 = vadd.f32 %v493, %v463
      %v495 = vadd.f32 %v494, %v469
      %v496 = vrot.slane %v495, 4
      %v497 = vadd.f32 %v495, %v496
      %v498 = vrot.slane %v497, 2
      %v499 = vadd.f32 %v497, %v498
      %v500 = vrot.slane %v499, 1
      %v501 = vadd.f32 %v499, %v500
      %v502 = vadd.f32 %v429, %v435
      %v503 = vadd.f32 %v502, %v441
      %v504 = vadd.f32 %v503, %v447
      %v505 = vadd.f32 %v504, %v453
      %v506 = vadd.f32 %v505, %v459
      %v507 = vadd.f32 %v506, %v465
      %v508 = vadd.f32 %v507, %v471
      %v509 = vrot.slane %v508, 4
      %v510 = vadd.f32 %v508, %v509
      %v511 = vrot.slane %v510, 2
      %v512 = vadd.f32 %v510, %v511
      %v513 = vrot.slane %v512, 1
      %v514 = vadd.f32 %v512, %v513
      %v515 = vmul.f32 %v427, %v427
      %v516 = vmul.f32 %v429, %v429
      %v517 = vmul.f32 %v433, %v433
      %v518 = vmul.f32 %v435, %v435
      %v519 = vmul.f32 %v439, %v439
      %v520 = vmul.f32 %v441, %v441
      %v521 = vmul.f32 %v445, %v445
      %v522 = vmul.f32 %v447, %v447
      %v523 = vmul.f32 %v451, %v451
      %v524 = vmul.f32 %v453, %v453
      %v525 = vmul.f32 %v457, %v457
      %v526 = vmul.f32 %v459, %v459
      %v527 = vmul.f32 %v463, %v463
      %v528 = vmul.f32 %v465, %v465
      %v529 = vmul.f32 %v469, %v469
      %v530 = vmul.f32 %v471, %v471
      %v531 = vadd.f32 %v515, %v517
      %v532 = vadd.f32 %v531, %v519
      %v533 = vadd.f32 %v532, %v521
      %v534 = vadd.f32 %v533, %v523
      %v535 = vadd.f32 %v534, %v525
      %v536 = vadd.f32 %v535, %v527
      %v537 = vadd.f32 %v536, %v529
      %v538 = vrot.slane %v537, 4
      %v539 = vadd.f32 %v537, %v538
      %v540 = vrot.slane %v539, 2
      %v541 = vadd.f32 %v539, %v540
      %v542 = vrot.slane %v541, 1
      %v543 = vadd.f32 %v541, %v542
      %v544 = vadd.f32 %v516, %v518
      %v545 = vadd.f32 %v544, %v520
      %v546 = vadd.f32 %v545, %v522
      %v547 = vadd.f32 %v546, %v524
      %v548 = vadd.f32 %v547, %v526
      %v549 = vadd.f32 %v548, %v528
      %v550 = vadd.f32 %v549, %v530
      %v551 = vrot.slane %v550, 4
      %v552 = vadd.f32 %v550, %v551
      %v553 = vrot.slane %v552, 2
      %v554 = vadd.f32 %v552, %v553
      %v555 = vrot.slane %v554, 1
      %v556 = vadd.f32 %v554, %v555
      %vm557 = vcmask 1040384
      %v558 = vsel %vm557, %v501, %v543
      %v559 = vsel %vm557, %v514, %v556
      %v562 = vcombine.low %v558, %v559
      %v564 = vunpack.c.l.s4 1983009808
      %v565 = vunpack.c.0.s8 %v564
      %v566 = vlaneseq
      %v567 = vshrl.u32 %v566, 7
      %v568 = vsub.s32 %v565, %v567
      %v569 = vrot.slane %v562, %v568
      %571 = vst [vmem:[%s269] sm:$0xf] %v569
      %s572 = smul.u32 8, %s18
      %p573 = scmp.lt.s32.totalorder %s572, 15
      %s574 = scalar_select %p573, %s572, 15
      %s575 = smul.addr %s574, 2
      %s576 = smul.addr %s575, 8
      %s577 = scalar_lea.vmem %s5, %s576
      %p578 = scmp.lt.s32.totalorder %s18, 1
      %s579 = scalar_select %p578, %s18, 1
      %s580 = smul.addr %s579, 2
      %s581 = smul.addr %s580, 2
      %s582 = scalar_lea.vmem %s6, %s581
      // Predicated region
      $region41: #{bottleneck_forward.6} parent=39 // pred_check
        %p583 = pneg %p146
      $region42: #{bottleneck_forward.6} parent=39 // pred_check_branch
        %585 = sbr.rel (%p583) target = $region44
      $region43: #{bottleneck_forward.6} parent=39 // pred_region
        %s586 = smul.u32 8, %s18
      $region44: #{bottleneck_forward.6} parent=39 // pred_fallthru
        _
      // Predicated region
      $region45: #{bottleneck_forward.6} parent=39 // pred_check
        %p587 = pneg %p172
      $region46: #{bottleneck_forward.6} parent=39 // pred_check_branch
        %589 = sbr.rel (%p587) target = $region48
      $region47: #{bottleneck_forward.6} parent=39 // pred_region
        _
      $region48: #{bottleneck_forward.6} parent=39 // pred_fallthru
        _
    $region40: #{bottleneck_forward.6} parent=5 // pred_fallthru
      _
    %p590 = scmp.le.s32.totalorder 2, %s13
    // Predicated region
    $region49: #{bottleneck_forward.6} parent=5 // pred_check
      %p591 = pneg %p590
    $region50: #{bottleneck_forward.6} parent=5 // pred_check_branch
      %593 = sbr.rel (%p591) target = $region52
    $region51: #{bottleneck_forward.6} parent=5 // pred_region
      %s594 = ssub.s32 %s13, 2
      // Predicated region
      $region53: #{bottleneck_forward.6} parent=51 // pred_check
        %p595 = pneg %p152
      $region54: #{bottleneck_forward.6} parent=51 // pred_check_branch
        %597 = sbr.rel (%p595) target = $region56
      $region55: #{bottleneck_forward.6} parent=51 // pred_region
        %s598 = smul.u32 8, %s19
        %p599 = scmp.lt.s32.totalorder %s598, 15
        %s600 = scalar_select %p599, %s598, 15
        %s601 = smul.addr %s600, 2
        %s602 = smul.addr %s601, 8
        %s603 = scalar_lea.vmem %s5, %s602
      $region56: #{bottleneck_forward.6} parent=51 // pred_fallthru
        _
      // Predicated region
      $region57: #{bottleneck_forward.6} parent=51 // pred_check
        %p604 = pneg %p178
      $region58: #{bottleneck_forward.6} parent=51 // pred_check_branch
        %606 = sbr.rel (%p604) target = $region60
      $region59: #{bottleneck_forward.6} parent=51 // pred_region
        %p607 = scmp.lt.s32.totalorder %s19, 1
        %s608 = scalar_select %p607, %s19, 1
        %s609 = smul.addr %s608, 2
        %s610 = smul.addr %s609, 2
        %s611 = scalar_lea.vmem %s6, %s610
      $region60: #{bottleneck_forward.6} parent=51 // pred_fallthru
        _
    $region52: #{bottleneck_forward.6} parent=5 // pred_fallthru
      _
  $region6: #{bottleneck_forward.6} parent=0 // loop_footer
    %s17 = sadd.s32 1, %s13
  $region7: #{bottleneck_forward.6} parent=0 // loop_footer_branch
    %12 = sbr.rel target = $region3
  $region8: #{bottleneck_forward.6} parent=0 // loop_exit
    _

// kernel: bottleneck_forward.4
$region0: #{bottleneck_forward.4}
  #allocation0 [shape = 'u32[]', space=smem, size = 0x4, offset = 0x4, fixed_abs, tag = 'smem constant byte address 0x4 - core index']
  #allocation1 [shape = 'u32[144,128]{1,0:T(1,128)}', space=vmem, size = 0x12000, scoped, tag = 'internal scratch']
  %s0 = inlined_call_operand.vmem [shape: f32[128,128], index: 0, kind: input, shape index: {}]
  %s1 = inlined_call_operand.vmem [shape: f32[128,128], index: 1, kind: input, shape index: {}]
  %s2 = inlined_call_operand.vmem [shape: f32[1,128], index: 2, kind: input, shape index: {}]
  %s3 = inlined_call_operand.vmem [shape: f32[128,128], index: 3, kind: output, shape index: {0}]
  %s4 = inlined_call_operand.vmem [shape: f32[2,2,128], index: 4, kind: output, shape index: {1}]
  %5 = xla_tuple %s3, %s4
  %s6 = sld [smem:[#allocation0]]
  $region53: #{bottleneck_forward.4} parent=0
    _
  %s8 = ssub.s32 1, %s6
  %s9 = scalar_select 0, %s8, %s6
  loop: start=0, step=1, limit=4
  $region2: #{bottleneck_forward.4} parent=0 // loop_pre_header
    _
  $region3: #{bottleneck_forward.4} parent=0 // loop_header
    %s11 = sphi 0, %s15
    %p12 = scmp.ge.s32.totalorder %s11, 4
    %s21 = sphi 0, %s23
    %s24 = sphi 0, %s21
    %s25 = sphi 0, %s24
    %s41 = sphi 0, %s25
    %s45 = sphi 0, %s45
    %s47 = sphi 0, %s45
    %s48 = sphi 0, %s47
    %s62 = sphi 0, %s48
    %s66 = sphi 0, %s66
    %s68 = sphi 0, %s66
    %s69 = sphi 0, %s68
    %s83 = sphi 0, %s69
    %s89 = sphi 0, %s91
    %s92 = sphi 0, %s89
    %s93 = sphi 0, %s92
    %s109 = sphi 0, %s93
    %s115 = sphi 0, %s117
    %s118 = sphi 0, %s115
    %s119 = sphi 0, %s118
    %s135 = sphi 0, %s119
  $region4: #{bottleneck_forward.4} parent=0 // loop_header_branch
    %14 = sbr.rel (%p12) target = $region8
  $region5: #{bottleneck_forward.4} parent=0 // loop_body
    %s16 = ssub.s32 %s11, 1
    %s17 = ssub.s32 %s11, 2
    %s18 = sadd.s32 %s11, 1
    %s19 = ssub.s32 %s11, %s18
    %p20 = scmp.eq.s32.totalorder %s19, 0
    %s22 = sadd.s32 %s21, 1
    %s23 = scalar_select %p20, %s21, %s22
    %p26 = pneg %p20
    %p27 = scmp.eq.s32.totalorder %s11, 1
    %p28 = por %p26, %p27
    %p29 = scmp.ne.s32.totalorder %s21, %s24
    %p30 = scmp.eq.s32.totalorder %s11, 0
    %p31 = por %p29, %p30
    %p32 = scmp.ne.s32.totalorder %s21, %s24
    %p33 = scmp.eq.s32.totalorder %s16, 1
    %p34 = por %p32, %p33
    %p35 = scmp.ne.s32.totalorder %s24, %s25
    %p36 = scmp.eq.s32.totalorder %s16, 0
    %p37 = por %p35, %p36
    %p38 = scmp.ne.s32.totalorder %s24, %s25
    %p39 = scmp.eq.s32.totalorder %s17, 1
    %p40 = por %p38, %p39
    %p42 = scmp.ne.s32.totalorder %s25, %s41
    %p43 = scmp.eq.s32.totalorder %s17, 0
    %p44 = por %p42, %p43
    %s46 = sadd.s32 %s45, 1
    %p49 = scmp.eq.s32.totalorder %s11, 1
    %p50 = scmp.ne.s32.totalorder %s45, %s47
    %p51 = scmp.eq.s32.totalorder %s11, 0
    %p52 = por %p50, %p51
    %p53 = scmp.ne.s32.totalorder %s45, %s47
    %p54 = scmp.eq.s32.totalorder %s16, 1
    %p55 = por %p53, %p54
    %p56 = scmp.ne.s32.totalorder %s47, %s48
    %p57 = scmp.eq.s32.totalorder %s16, 0
    %p58 = por %p56, %p57
    %p59 = scmp.ne.s32.totalorder %s47, %s48
    %p60 = scmp.eq.s32.totalorder %s17, 1
    %p61 = por %p59, %p60
    %p63 = scmp.ne.s32.totalorder %s48, %s62
    %p64 = scmp.eq.s32.totalorder %s17, 0
    %p65 = por %p63, %p64
    %s67 = sadd.s32 %s66, 1
    %p70 = scmp.eq.s32.totalorder %s11, 1
    %p71 = scmp.ne.s32.totalorder %s66, %s68
    %p72 = scmp.eq.s32.totalorder %s11, 0
    %p73 = por %p71, %p72
    %p74 = scmp.ne.s32.totalorder %s66, %s68
    %p75 = scmp.eq.s32.totalorder %s16, 1
    %p76 = por %p74, %p75
    %p77 = scmp.ne.s32.totalorder %s68, %s69
    %p78 = scmp.eq.s32.totalorder %s16, 0
    %p79 = por %p77, %p78
    %p80 = scmp.ne.s32.totalorder %s68, %s69
    %p81 = scmp.eq.s32.totalorder %s17, 1
    %p82 = por %p80, %p81
    %p84 = scmp.ne.s32.totalorder %s69, %s83
    %p85 = scmp.eq.s32.totalorder %s17, 0
    %p86 = por %p84, %p85
    %s87 = ssub.s32 %s11, %s18
    %p88 = scmp.eq.s32.totalorder %s87, 0
    %s90 = sadd.s32 %s89, 1
    %s91 = scalar_select %p88, %s89, %s90
    %p94 = pneg %p88
    %p95 = scmp.eq.s32.totalorder %s11, 1
    %p96 = por %p94, %p95
    %p97 = scmp.ne.s32.totalorder %s89, %s92
    %p98 = scmp.eq.s32.totalorder %s11, 0
    %p99 = por %p97, %p98
    %p100 = scmp.ne.s32.totalorder %s89, %s92
    %p101 = scmp.eq.s32.totalorder %s16, 1
    %p102 = por %p100, %p101
    %p103 = scmp.ne.s32.totalorder %s92, %s93
    %p104 = scmp.eq.s32.totalorder %s16, 0
    %p105 = por %p103, %p104
    %p106 = scmp.ne.s32.totalorder %s92, %s93
    %p107 = scmp.eq.s32.totalorder %s17, 1
    %p108 = por %p106, %p107
    %p110 = scmp.ne.s32.totalorder %s93, %s109
    %p111 = scmp.eq.s32.totalorder %s17, 0
    %p112 = por %p110, %p111
    %s113 = ssub.s32 %s11, %s18
    %p114 = scmp.eq.s32.totalorder %s113, 0
    %s116 = sadd.s32 %s115, 1
    %s117 = scalar_select %p114, %s115, %s116
    %p120 = pneg %p114
    %p121 = scmp.eq.s32.totalorder %s11, 1
    %p122 = por %p120, %p121
    %p123 = scmp.ne.s32.totalorder %s115, %s118
    %p124 = scmp.eq.s32.totalorder %s11, 0
    %p125 = por %p123, %p124
    %p126 = scmp.ne.s32.totalorder %s115, %s118
    %p127 = scmp.eq.s32.totalorder %s16, 1
    %p128 = por %p126, %p127
    %p129 = scmp.ne.s32.totalorder %s118, %s119
    %p130 = scmp.eq.s32.totalorder %s16, 0
    %p131 = por %p129, %p130
    %p132 = scmp.ne.s32.totalorder %s118, %s119
    %p133 = scmp.eq.s32.totalorder %s17, 1
    %p134 = por %p132, %p133
    %p136 = scmp.ne.s32.totalorder %s119, %s135
    %p137 = scmp.eq.s32.totalorder %s17, 0
    %p138 = por %p136, %p137
    %p139 = scmp.le.s32.totalorder 1, %s11
    %p140 = scmp.lt.s32.totalorder %s11, 3
    %p141 = pnand %p139, %p140
    %p142 = pneg %p141
    // Predicated region
    $region9: #{bottleneck_forward.4} parent=5 // pred_check
      _
    $region10: #{bottleneck_forward.4} parent=5 // pred_check_branch
      %144 = sbr.rel (%p141) target = $region12
    $region11: #{bottleneck_forward.4} parent=5 // pred_region
      %s145 = ssub.s32 %s11, 1
      // Predicated region
      $region13: #{bottleneck_forward.4} parent=11 // pred_check
        %p146 = pneg %p58
      $region14: #{bottleneck_forward.4} parent=11 // pred_check_branch
        %148 = sbr.rel (%p146) target = $region16
      $region15: #{bottleneck_forward.4} parent=11 // pred_region
        _
      $region16: #{bottleneck_forward.4} parent=11 // pred_fallthru
        _
      // Predicated region
      $region17: #{bottleneck_forward.4} parent=11 // pred_check
        %p149 = pneg %p79
      $region18: #{bottleneck_forward.4} parent=11 // pred_check_branch
        %151 = sbr.rel (%p149) target = $region20
      $region19: #{bottleneck_forward.4} parent=11 // pred_region
        _
      $region20: #{bottleneck_forward.4} parent=11 // pred_fallthru
        _
    $region12: #{bottleneck_forward.4} parent=5 // pred_fallthru
      _
    %p152 = scmp.lt.s32.totalorder %s11, 2
    // Predicated region
    $region21: #{bottleneck_forward.4} parent=5 // pred_check
      %p153 = pneg %p152
    $region22: #{bottleneck_forward.4} parent=5 // pred_check_branch
      %155 = sbr.rel (%p153) target = $region24
    $region23: #{bottleneck_forward.4} parent=5 // pred_region
      // Predicated region
      $region25: #{bottleneck_forward.4} parent=23 // pred_check
        %p156 = pneg %p31
      $region26: #{bottleneck_forward.4} parent=23 // pred_check_branch
        %158 = sbr.rel (%p156) target = $region28
      $region27: #{bottleneck_forward.4} parent=23 // pred_region
        %s159 = smul.u32 8, %s11
        %p160 = scmp.lt.s32.totalorder %s159, 15
        %s161 = scalar_select %p160, %s159, 15
        %s162 = smul.addr %s161, 8
        %s163 = scalar_lea.vmem %s0, %s162
        %s164 = smul.u32 8, %s11
      $region28: #{bottleneck_forward.4} parent=23 // pred_fallthru
        _
    $region24: #{bottleneck_forward.4} parent=5 // pred_fallthru
      _
    %p165 = scmp.le.s32.totalorder 1, %s11
    %p166 = scmp.lt.s32.totalorder %s11, 3
    %p167 = pnand %p165, %p166
    %p168 = pneg %p167
    // Predicated region
    $region29: #{bottleneck_forward.4} parent=5 // pred_check
      _
    $region30: #{bottleneck_forward.4} parent=5 // pred_check_branch
      %170 = sbr.rel (%p167) target = $region32
    $region31: #{bottleneck_forward.4} parent=5 // pred_region
      %s171 = ssub.s32 %s11, 1
      %s172 = smul.u32 8, %s16
      %p173 = scmp.lt.s32.totalorder %s172, 15
      %s174 = scalar_select %p173, %s172, 15
      %s175 = smul.addr %s174, 8
      %s176 = scalar_lea.vmem %s0, %s175
      %p177 = pneg %p37
      %p178 = pneg %p34
      %p179 = pneg %p58
      %p180 = pneg %p55
      %p181 = pneg %p79
      %p182 = pneg %p76
      %p183 = pneg %p105
      %p184 = pneg %p102
      %s185 = smul.u32 8, %s16
      %p186 = scmp.lt.s32.totalorder %s185, 15
      %s187 = scalar_select %p186, %s185, 15
      %s188 = smul.addr %s187, 8
      %s189 = scalar_lea.vmem %s3, %s188
      %p190 = pneg %p131
      %p191 = pneg %p128
      %p192 = scmp.lt.s32.totalorder %s16, 1
      %s193 = scalar_select %p192, %s16, 1
      %s194 = smul.addr %s193, 2
      %s195 = scalar_lea.vmem %s4, %s194
      %s196 = smul.u32 8, %s16
      %p197 = scmp.lt.s32.totalorder %s196, 15
      %s198 = scalar_select %p197, %s196, 15
      %s199 = smul.addr %s198, 8
      %s200 = scalar_lea.vmem %s0, %s199
      %s201 = smul.u32 8, %s16
      %s202 = smul.u32 8, %s16
      %p203 = scmp.lt.s32.totalorder %s202, 15
      %s204 = scalar_select %p203, %s202, 15
      %s205 = smul.addr %s204, 8
      %s206 = scalar_lea.vmem %s3, %s205
      %s207 = smul.u32 8, %s16
      %p208 = scmp.lt.s32.totalorder %s16, 1
      %s209 = scalar_select %p208, %s16, 1
      %s210 = smul.addr %s209, 2
      %s211 = scalar_lea.vmem %s4, %s210
      %v212 = vld [vmem:[%s200] sm:$0xff]
      %v213 = vld [vmem:[%s200 + $0x8] sm:$0xff]
      %v214 = vld [vmem:[%s200 + $0x10] sm:$0xff]
      %v215 = vld [vmem:[%s200 + $0x18] sm:$0xff]
      %v216 = vld [vmem:[%s200 + $0x20] sm:$0xff]
      %v217 = vld [vmem:[%s200 + $0x28] sm:$0xff]
      %v218 = vld [vmem:[%s200 + $0x30] sm:$0xff]
      %v219 = vld [vmem:[%s200 + $0x38] sm:$0xff]
      %v220 = vld [vmem:[%s1] sm:$0xff]
      %v221 = vld [vmem:[%s1 + $0x8] sm:$0xff]
      %v222 = vld [vmem:[%s1 + $0x10] sm:$0xff]
      %v223 = vld [vmem:[%s1 + $0x18] sm:$0xff]
      %v224 = vld [vmem:[%s1 + $0x20] sm:$0xff]
      %v225 = vld [vmem:[%s1 + $0x28] sm:$0xff]
      %v226 = vld [vmem:[%s1 + $0x30] sm:$0xff]
      %v227 = vld [vmem:[%s1 + $0x38] sm:$0xff]
      %v228 = vld [vmem:[%s1 + $0x40] sm:$0xff]
      %v229 = vld [vmem:[%s1 + $0x48] sm:$0xff]
      %v230 = vld [vmem:[%s1 + $0x50] sm:$0xff]
      %v231 = vld [vmem:[%s1 + $0x58] sm:$0xff]
      %v232 = vld [vmem:[%s1 + $0x60] sm:$0xff]
      %v233 = vld [vmem:[%s1 + $0x68] sm:$0xff]
      %v234 = vld [vmem:[%s1 + $0x70] sm:$0xff]
      %v235 = vld [vmem:[%s1 + $0x78] sm:$0xff]
      %v236 = vld [vmem:[%s2] sm:$0x1]
      %v238 = vlaneseq
      %v239 = vshrl.u32 %v238, 7
      %v240 = vsub.s32 0, %v239
      %v241 = vrot.slane %v236, %v240
      %243 = vmatprep.subr.mxu0 0.0
      %244 = vmatpush1.msra.mxu0 %v220
      %245 = vmatprep.subr.mxu0 0.0
      %246 = vmatpush1.msra.mxu0 %v221
      %247 = vmatprep.subr.mxu0 0.0
      %248 = vmatpush1.msra.mxu0 %v222
      %249 = vmatprep.subr.mxu0 0.0
      %250 = vmatpush1.msra.mxu0 %v223
      %251 = vmatprep.subr.mxu0 0.0
      %252 = vmatpush1.msra.mxu0 %v224
      %253 = vmatprep.subr.mxu0 0.0
      %254 = vmatpush1.msra.mxu0 %v225
      %255 = vmatprep.subr.mxu0 0.0
      %256 = vmatpush1.msra.mxu0 %v226
      %257 = vmatprep.subr.mxu0 0.0
      %258 = vmatpush1.msra.mxu0 %v227
      %259 = vmatprep.subr.mxu0 0.0
      %260 = vmatpush1.msra.mxu0 %v228
      %261 = vmatprep.subr.mxu0 0.0
      %262 = vmatpush1.msra.mxu0 %v229
      %263 = vmatprep.subr.mxu0 0.0
      %264 = vmatpush1.msra.mxu0 %v230
      %265 = vmatprep.subr.mxu0 0.0
      %266 = vmatpush1.msra.mxu0 %v231
      %267 = vmatprep.subr.mxu0 0.0
      %268 = vmatpush1.msra.mxu0 %v232
      %269 = vmatprep.subr.mxu0 0.0
      %270 = vmatpush1.msra.mxu0 %v233
      %271 = vmatprep.subr.mxu0 0.0
      %272 = vmatpush1.msra.mxu0 %v234
      %273 = vmatprep.subr.mxu0 0.0
      %274 = vmatpush1.msra.mxu0 %v235
      %275 = vmatprep.subr.mxu0 0.0
      %276 = vmatpush1.msra.mxu0 0.0
      %277 = vmatprep.subr.mxu0 0.0
      %278 = vmatpush1.msra.mxu0 0.0
      %279 = vmatprep.subr.mxu0 0.0
      %280 = vmatpush1.msra.mxu0 0.0
      %281 = vmatprep.subr.mxu0 0.0
      %282 = vmatpush1.msra.mxu0 0.0
      %283 = vmatprep.subr.mxu0 0.0
      %284 = vmatpush1.msra.mxu0 0.0
      %285 = vmatprep.subr.mxu0 0.0
      %286 = vmatpush1.msra.mxu0 0.0
      %287 = vmatprep.subr.mxu0 0.0
      %288 = vmatpush1.msra.mxu0 0.0
      %289 = vmatprep.subr.mxu0 0.0
      %290 = vmatpush1.msra.mxu0 0.0
      %291 = vmatprep.subr.mxu0 0.0
      %292 = vmatpush1.msra.mxu0 0.0
      %293 = vmatprep.subr.mxu0 0.0
      %294 = vmatpush1.msra.mxu0 0.0
      %295 = vmatprep.subr.mxu0 0.0
      %296 = vmatpush1.msra.mxu0 0.0
      %297 = vmatprep.subr.mxu0 0.0
      %298 = vmatpush1.msra.mxu0 0.0
      %299 = vmatprep.subr.mxu0 0.0
      %300 = vmatpush1.msra.mxu0 0.0
      %301 = vmatprep.subr.mxu0 0.0
      %302 = vmatpush1.msra.mxu0 0.0
      %303 = vmatprep.subr.mxu0 0.0
      %304 = vmatpush1.msra.mxu0 0.0
      %305 = vmatprep.subr.mxu0 0.0
      %306 = vmatpush1.msra.mxu0 0.0
      %307 = vmatprep.mubr.f32.mxu0 0.0
      %308 = vmatmul.mubr.f32.gmra.mrb[0].mxu0 %v212
      %v309 = vpop.f32.mrb[0].mxu0
      %v310 = vadd.f32 %v241, %v309
      %v311 = vpop.f32.mrb[0].mxu0
      %312 = vmatprep.mubr.f32.mxu0 0.0
      %313 = vmatmul.mubr.f32.gmra.mrb[0].mxu0 %v213
      %v314 = vpop.f32.mrb[0].mxu0
      %v315 = vadd.f32 %v241, %v314
      %v316 = vpop.f32.mrb[0].mxu0
      %317 = vmatprep.mubr.f32.mxu0 0.0
      %318 = vmatmul.mubr.f32.gmra.mrb[0].mxu0 %v214
      %v319 = vpop.f32.mrb[0].mxu0
      %v320 = vadd.f32 %v241, %v319
      %v321 = vpop.f32.mrb[0].mxu0
      %322 = vmatprep.mubr.f32.mxu0 0.0
      %323 = vmatmul.mubr.f32.gmra.mrb[0].mxu0 %v215
      %v324 = vpop.f32.mrb[0].mxu0
      %v325 = vadd.f32 %v241, %v324
      %v326 = vpop.f32.mrb[0].mxu0
      %327 = vmatprep.mubr.f32.mxu0 0.0
      %328 = vmatmul.mubr.f32.gmra.mrb[0].mxu0 %v216
      %v329 = vpop.f32.mrb[0].mxu0
      %v330 = vadd.f32 %v241, %v329
      %v331 = vpop.f32.mrb[0].mxu0
      %332 = vmatprep.mubr.f32.mxu0 0.0
      %333 = vmatmul.mubr.f32.gmra.mrb[0].mxu0 %v217
      %v334 = vpop.f32.mrb[0].mxu0
      %v335 = vadd.f32 %v241, %v334
      %v336 = vpop.f32.mrb[0].mxu0
      %337 = vmatprep.mubr.f32.mxu0 0.0
      %338 = vmatmul.mubr.f32.gmra.mrb[0].mxu0 %v218
      %v339 = vpop.f32.mrb[0].mxu0
      %v340 = vadd.f32 %v241, %v339
      %v341 = vpop.f32.mrb[0].mxu0
      %342 = vmatprep.mubr.f32.mxu0 0.0
      %343 = vmatmul.mubr.f32.gmra.mrb[0].mxu0 %v219
      %v344 = vpop.f32.mrb[0].mxu0
      %v345 = vadd.f32 %v241, %v344
      %v346 = vpop.f32.mrb[0].mxu0
      %347 = vdwg.mxu0
      %348 = vst [vmem:[%s206] sm:$0xff] %v310
      %349 = vst [vmem:[%s206 + $0x8] sm:$0xff] %v315
      %350 = vst [vmem:[%s206 + $0x10] sm:$0xff] %v320
      %351 = vst [vmem:[%s206 + $0x18] sm:$0xff] %v325
      %352 = vst [vmem:[%s206 + $0x20] sm:$0xff] %v330
      %353 = vst [vmem:[%s206 + $0x28] sm:$0xff] %v335
      %354 = vst [vmem:[%s206 + $0x30] sm:$0xff] %v340
      %355 = vst [vmem:[%s206 + $0x38] sm:$0xff] %v345
      %v356 = vadd.f32 %v310, %v315
      %v357 = vadd.f32 %v356, %v320
      %v358 = vadd.f32 %v357, %v325
      %v359 = vadd.f32 %v358, %v330
      %v360 = vadd.f32 %v359, %v335
      %v361 = vadd.f32 %v360, %v340
      %v362 = vadd.f32 %v361, %v345
      %v363 = vrot.slane %v362, 4
      %v364 = vadd.f32 %v362, %v363
      %v365 = vrot.slane %v364, 2
      %v366 = vadd.f32 %v364, %v365
      %v367 = vrot.slane %v366, 1
      %v368 = vadd.f32 %v366, %v367
      %v369 = vmul.f32 %v310, %v310
      %v370 = vmul.f32 %v315, %v315
      %v371 = vmul.f32 %v320, %v320
      %v372 = vmul.f32 %v325, %v325
      %v373 = vmul.f32 %v330, %v330
      %v374 = vmul.f32 %v335, %v335
      %v375 = vmul.f32 %v340, %v340
      %v376 = vmul.f32 %v345, %v345
      %v377 = vadd.f32 %v369, %v370
      %v378 = vadd.f32 %v377, %v371
      %v379 = vadd.f32 %v378, %v372
      %v380 = vadd.f32 %v379, %v373
      %v381 = vadd.f32 %v380, %v374
      %v382 = vadd.f32 %v381, %v375
      %v383 = vadd.f32 %v382, %v376
      %v384 = vrot.slane %v383, 4
      %v385 = vadd.f32 %v383, %v384
      %v386 = vrot.slane %v385, 2
      %v387 = vadd.f32 %v385, %v386
      %v388 = vrot.slane %v387, 1
      %v389 = vadd.f32 %v387, %v388
      %vm390 = vcmask 1040384
      %v391 = vsel %vm390, %v368, %v389
      %392 = vst [vmem:[%s211] sm:$0x3] %v391
      %s393 = smul.u32 8, %s16
      %p394 = scmp.lt.s32.totalorder %s393, 15
      %s395 = scalar_select %p394, %s393, 15
      %s396 = smul.addr %s395, 8
      %s397 = scalar_lea.vmem %s3, %s396
      %p398 = scmp.lt.s32.totalorder %s16, 1
      %s399 = scalar_select %p398, %s16, 1
      %s400 = smul.addr %s399, 2
      %s401 = scalar_lea.vmem %s4, %s400
      // Predicated region
      $region33: #{bottleneck_forward.4} parent=31 // pred_check
        %p402 = pneg %p102
      $region34: #{bottleneck_forward.4} parent=31 // pred_check_branch
        %404 = sbr.rel (%p402) target = $region36
      $region35: #{bottleneck_forward.4} parent=31 // pred_region
        %s405 = smul.u32 8, %s16
      $region36: #{bottleneck_forward.4} parent=31 // pred_fallthru
        _
      // Predicated region
      $region37: #{bottleneck_forward.4} parent=31 // pred_check
        %p406 = pneg %p128
      $region38: #{bottleneck_forward.4} parent=31 // pred_check_branch
        %408 = sbr.rel (%p406) target = $region40
      $region39: #{bottleneck_forward.4} parent=31 // pred_region
        _
      $region40: #{bottleneck_forward.4} parent=31 // pred_fallthru
        _
    $region32: #{bottleneck_forward.4} parent=5 // pred_fallthru
      _
    %p409 = scmp.le.s32.totalorder 2, %s11
    // Predicated region
    $region41: #{bottleneck_forward.4} parent=5 // pred_check
      %p410 = pneg %p409
    $region42: #{bottleneck_forward.4} parent=5 // pred_check_branch
      %412 = sbr.rel (%p410) target = $region44
    $region43: #{bottleneck_forward.4} parent=5 // pred_region
      %s413 = ssub.s32 %s11, 2
      // Predicated region
      $region45: #{bottleneck_forward.4} parent=43 // pred_check
        %p414 = pneg %p108
      $region46: #{bottleneck_forward.4} parent=43 // pred_check_branch
        %416 = sbr.rel (%p414) target = $region48
      $region47: #{bottleneck_forward.4} parent=43 // pred_region
        %s417 = smul.u32 8, %s17
        %p418 = scmp.lt.s32.totalorder %s417, 15
        %s419 = scalar_select %p418, %s417, 15
        %s420 = smul.addr %s419, 8
        %s421 = scalar_lea.vmem %s3, %s420
      $region48: #{bottleneck_forward.4} parent=43 // pred_fallthru
        _
      // Predicated region
      $region49: #{bottleneck_forward.4} parent=43 // pred_check
        %p422 = pneg %p134
      $region50: #{bottleneck_forward.4} parent=43 // pred_check_branch
        %424 = sbr.rel (%p422) target = $region52
      $region51: #{bottleneck_forward.4} parent=43 // pred_region
        %p425 = scmp.lt.s32.totalorder %s17, 1
        %s426 = scalar_select %p425, %s17, 1
        %s427 = smul.addr %s426, 2
        %s428 = scalar_lea.vmem %s4, %s427
      $region52: #{bottleneck_forward.4} parent=43 // pred_fallthru
        _
    $region44: #{bottleneck_forward.4} parent=5 // pred_fallthru
      _
  $region6: #{bottleneck_forward.4} parent=0 // loop_footer
    %s15 = sadd.s32 1, %s11
  $region7: #{bottleneck_forward.4} parent=0 // loop_footer_branch
    %10 = sbr.rel target = $region3
  $region8: #{bottleneck_forward.4} parent=0 // loop_exit
    _

// kernel: bottleneck_forward.5
$region0: #{bottleneck_forward.5}
  #allocation0 [shape = 'u32[]', space=smem, size = 0x4, offset = 0x4, fixed_abs, tag = 'smem constant byte address 0x4 - core index']
  #allocation1 [shape = 'u32[144,128]{1,0:T(1,128)}', space=vmem, size = 0x12000, scoped, tag = 'internal scratch']
  %s0 = inlined_call_operand.vmem [shape: f32[128,128], index: 0, kind: input, shape index: {}]
  %s1 = inlined_call_operand.vmem [shape: f32[1,128], index: 1, kind: input, shape index: {}]
  %s2 = inlined_call_operand.vmem [shape: f32[1,128], index: 2, kind: input, shape index: {}]
  %s3 = inlined_call_operand.vmem [shape: f32[128,384], index: 3, kind: input, shape index: {}]
  %s4 = inlined_call_operand.vmem [shape: f32[1,128], index: 4, kind: input, shape index: {}]
  %s5 = inlined_call_operand.vmem [shape: f32[64,1], index: 5, kind: input, shape index: {}]
  %s6 = inlined_call_operand.vmem [shape: f32[64,1], index: 6, kind: input, shape index: {}]
  %s7 = inlined_call_operand.vmem [shape: f32[128,128], index: 7, kind: output, shape index: {0}]
  %s8 = inlined_call_operand.vmem [shape: f32[2,2,128], index: 8, kind: output, shape index: {1}]
  %9 = xla_tuple %s7, %s8
  %s10 = sld [smem:[#allocation0]]
  $region69: #{bottleneck_forward.5} parent=0
    _
  %s12 = ssub.s32 1, %s10
  %s13 = scalar_select 0, %s12, %s10
  loop: start=0, step=1, limit=4
  $region2: #{bottleneck_forward.5} parent=0 // loop_pre_header
    _
  $region3: #{bottleneck_forward.5} parent=0 // loop_header
    %s15 = sphi 0, %s19
    %p16 = scmp.ge.s32.totalorder %s15, 4
    %s25 = sphi 0, %s27
    %s28 = sphi 0, %s25
    %s29 = sphi 0, %s28
    %s45 = sphi 0, %s29
    %s49 = sphi 0, %s49
    %s51 = sphi 0, %s49
    %s52 = sphi 0, %s51
    %s66 = sphi 0, %s52
    %s70 = sphi 0, %s70
    %s72 = sphi 0, %s70
    %s73 = sphi 0, %s72
    %s87 = sphi 0, %s73
    %s91 = sphi 0, %s91
    %s93 = sphi 0, %s91
    %s94 = sphi 0, %s93
    %s108 = sphi 0, %s94
    %s112 = sphi 0, %s112
    %s114 = sphi 0, %s112
    %s115 = sphi 0, %s114
    %s129 = sphi 0, %s115
    %s133 = sphi 0, %s133
    %s135 = sphi 0, %s133
    %s136 = sphi 0, %s135
    %s150 = sphi 0, %s136
    %s154 = sphi 0, %s154
    %s156 = sphi 0, %s154
    %s157 = sphi 0, %s156
    %s171 = sphi 0, %s157
    %s177 = sphi 0, %s179
    %s180 = sphi 0, %s177
    %s181 = sphi 0, %s180
    %s197 = sphi 0, %s181
    %s203 = sphi 0, %s205
    %s206 = sphi 0, %s203
    %s207 = sphi 0, %s206
    %s223 = sphi 0, %s207
  $region4: #{bottleneck_forward.5} parent=0 // loop_header_branch
    %18 = sbr.rel (%p16) target = $region8
  $region5: #{bottleneck_forward.5} parent=0 // loop_body
    %s20 = ssub.s32 %s15, 1
    %s21 = ssub.s32 %s15, 2
    %s22 = sadd.s32 %s15, 1
    %s23 = ssub.s32 %s15, %s22
    %p24 = scmp.eq.s32.totalorder %s23, 0
    %s26 = sadd.s32 %s25, 1
    %s27 = scalar_select %p24, %s25, %s26
    %p30 = pneg %p24
    %p31 = scmp.eq.s32.totalorder %s15, 1
    %p32 = por %p30, %p31
    %p33 = scmp.ne.s32.totalorder %s25, %s28
    %p34 = scmp.eq.s32.totalorder %s15, 0
    %p35 = por %p33, %p34
    %p36 = scmp.ne.s32.totalorder %s25, %s28
    %p37 = scmp.eq.s32.totalorder %s20, 1
    %p38 = por %p36, %p37
    %p39 = scmp.ne.s32.totalorder %s28, %s29
    %p40 = scmp.eq.s32.totalorder %s20, 0
    %p41 = por %p39, %p40
    %p42 = scmp.ne.s32.totalorder %s28, %s29
    %p43 = scmp.eq.s32.totalorder %s21, 1
    %p44 = por %p42, %p43
    %p46 = scmp.ne.s32.totalorder %s29, %s45
    %p47 = scmp.eq.s32.totalorder %s21, 0
    %p48 = por %p46, %p47
    %s50 = sadd.s32 %s49, 1
    %p53 = scmp.eq.s32.totalorder %s15, 1
    %p54 = scmp.ne.s32.totalorder %s49, %s51
    %p55 = scmp.eq.s32.totalorder %s15, 0
    %p56 = por %p54, %p55
    %p57 = scmp.ne.s32.totalorder %s49, %s51
    %p58 = scmp.eq.s32.totalorder %s20, 1
    %p59 = por %p57, %p58
    %p60 = scmp.ne.s32.totalorder %s51, %s52
    %p61 = scmp.eq.s32.totalorder %s20, 0
    %p62 = por %p60, %p61
    %p63 = scmp.ne.s32.totalorder %s51, %s52
    %p64 = scmp.eq.s32.totalorder %s21, 1
    %p65 = por %p63, %p64
    %p67 = scmp.ne.s32.totalorder %s52, %s66
    %p68 = scmp.eq.s32.totalorder %s21, 0
    %p69 = por %p67, %p68
    %s71 = sadd.s32 %s70, 1
    %p74 = scmp.eq.s32.totalorder %s15, 1
    %p75 = scmp.ne.s32.totalorder %s70, %s72
    %p76 = scmp.eq.s32.totalorder %s15, 0
    %p77 = por %p75, %p76
    %p78 = scmp.ne.s32.totalorder %s70, %s72
    %p79 = scmp.eq.s32.totalorder %s20, 1
    %p80 = por %p78, %p79
    %p81 = scmp.ne.s32.totalorder %s72, %s73
    %p82 = scmp.eq.s32.totalorder %s20, 0
    %p83 = por %p81, %p82
    %p84 = scmp.ne.s32.totalorder %s72, %s73
    %p85 = scmp.eq.s32.totalorder %s21, 1
    %p86 = por %p84, %p85
    %p88 = scmp.ne.s32.totalorder %s73, %s87
    %p89 = scmp.eq.s32.totalorder %s21, 0
    %p90 = por %p88, %p89
    %s92 = sadd.s32 %s91, 1
    %p95 = scmp.eq.s32.totalorder %s15, 1
    %p96 = scmp.ne.s32.totalorder %s91, %s93
    %p97 = scmp.eq.s32.totalorder %s15, 0
    %p98 = por %p96, %p97
    %p99 = scmp.ne.s32.totalorder %s91, %s93
    %p100 = scmp.eq.s32.totalorder %s20, 1
    %p101 = por %p99, %p100
    %p102 = scmp.ne.s32.totalorder %s93, %s94
    %p103 = scmp.eq.s32.totalorder %s20, 0
    %p104 = por %p102, %p103
    %p105 = scmp.ne.s32.totalorder %s93, %s94
    %p106 = scmp.eq.s32.totalorder %s21, 1
    %p107 = por %p105, %p106
    %p109 = scmp.ne.s32.totalorder %s94, %s108
    %p110 = scmp.eq.s32.totalorder %s21, 0
    %p111 = por %p109, %p110
    %s113 = sadd.s32 %s112, 1
    %p116 = scmp.eq.s32.totalorder %s15, 1
    %p117 = scmp.ne.s32.totalorder %s112, %s114
    %p118 = scmp.eq.s32.totalorder %s15, 0
    %p119 = por %p117, %p118
    %p120 = scmp.ne.s32.totalorder %s112, %s114
    %p121 = scmp.eq.s32.totalorder %s20, 1
    %p122 = por %p120, %p121
    %p123 = scmp.ne.s32.totalorder %s114, %s115
    %p124 = scmp.eq.s32.totalorder %s20, 0
    %p125 = por %p123, %p124
    %p126 = scmp.ne.s32.totalorder %s114, %s115
    %p127 = scmp.eq.s32.totalorder %s21, 1
    %p128 = por %p126, %p127
    %p130 = scmp.ne.s32.totalorder %s115, %s129
    %p131 = scmp.eq.s32.totalorder %s21, 0
    %p132 = por %p130, %p131
    %s134 = sadd.s32 %s133, 1
    %p137 = scmp.eq.s32.totalorder %s15, 1
    %p138 = scmp.ne.s32.totalorder %s133, %s135
    %p139 = scmp.eq.s32.totalorder %s15, 0
    %p140 = por %p138, %p139
    %p141 = scmp.ne.s32.totalorder %s133, %s135
    %p142 = scmp.eq.s32.totalorder %s20, 1
    %p143 = por %p141, %p142
    %p144 = scmp.ne.s32.totalorder %s135, %s136
    %p145 = scmp.eq.s32.totalorder %s20, 0
    %p146 = por %p144, %p145
    %p147 = scmp.ne.s32.totalorder %s135, %s136
    %p148 = scmp.eq.s32.totalorder %s21, 1
    %p149 = por %p147, %p148
    %p151 = scmp.ne.s32.totalorder %s136, %s150
    %p152 = scmp.eq.s32.totalorder %s21, 0
    %p153 = por %p151, %p152
    %s155 = sadd.s32 %s154, 1
    %p158 = scmp.eq.s32.totalorder %s15, 1
    %p159 = scmp.ne.s32.totalorder %s154, %s156
    %p160 = scmp.eq.s32.totalorder %s15, 0
    %p161 = por %p159, %p160
    %p162 = scmp.ne.s32.totalorder %s154, %s156
    %p163 = scmp.eq.s32.totalorder %s20, 1
    %p164 = por %p162, %p163
    %p165 = scmp.ne.s32.totalorder %s156, %s157
    %p166 = scmp.eq.s32.totalorder %s20, 0
    %p167 = por %p165, %p166
    %p168 = scmp.ne.s32.totalorder %s156, %s157
    %p169 = scmp.eq.s32.totalorder %s21, 1
    %p170 = por %p168, %p169
    %p172 = scmp.ne.s32.totalorder %s157, %s171
    %p173 = scmp.eq.s32.totalorder %s21, 0
    %p174 = por %p172, %p173
    %s175 = ssub.s32 %s15, %s22
    %p176 = scmp.eq.s32.totalorder %s175, 0
    %s178 = sadd.s32 %s177, 1
    %s179 = scalar_select %p176, %s177, %s178
    %p182 = pneg %p176
    %p183 = scmp.eq.s32.totalorder %s15, 1
    %p184 = por %p182, %p183
    %p185 = scmp.ne.s32.totalorder %s177, %s180
    %p186 = scmp.eq.s32.totalorder %s15, 0
    %p187 = por %p185, %p186
    %p188 = scmp.ne.s32.totalorder %s177, %s180
    %p189 = scmp.eq.s32.totalorder %s20, 1
    %p190 = por %p188, %p189
    %p191 = scmp.ne.s32.totalorder %s180, %s181
    %p192 = scmp.eq.s32.totalorder %s20, 0
    %p193 = por %p191, %p192
    %p194 = scmp.ne.s32.totalorder %s180, %s181
    %p195 = scmp.eq.s32.totalorder %s21, 1
    %p196 = por %p194, %p195
    %p198 = scmp.ne.s32.totalorder %s181, %s197
    %p199 = scmp.eq.s32.totalorder %s21, 0
    %p200 = por %p198, %p199
    %s201 = ssub.s32 %s15, %s22
    %p202 = scmp.eq.s32.totalorder %s201, 0
    %s204 = sadd.s32 %s203, 1
    %s205 = scalar_select %p202, %s203, %s204
    %p208 = pneg %p202
    %p209 = scmp.eq.s32.totalorder %s15, 1
    %p210 = por %p208, %p209
    %p211 = scmp.ne.s32.totalorder %s203, %s206
    %p212 = scmp.eq.s32.totalorder %s15, 0
    %p213 = por %p211, %p212
    %p214 = scmp.ne.s32.totalorder %s203, %s206
    %p215 = scmp.eq.s32.totalorder %s20, 1
    %p216 = por %p214, %p215
    %p217 = scmp.ne.s32.totalorder %s206, %s207
    %p218 = scmp.eq.s32.totalorder %s20, 0
    %p219 = por %p217, %p218
    %p220 = scmp.ne.s32.totalorder %s206, %s207
    %p221 = scmp.eq.s32.totalorder %s21, 1
    %p222 = por %p220, %p221
    %p224 = scmp.ne.s32.totalorder %s207, %s223
    %p225 = scmp.eq.s32.totalorder %s21, 0
    %p226 = por %p224, %p225
    %p227 = scmp.le.s32.totalorder 1, %s15
    %p228 = scmp.lt.s32.totalorder %s15, 3
    %p229 = pnand %p227, %p228
    %p230 = pneg %p229
    // Predicated region
    $region9: #{bottleneck_forward.5} parent=5 // pred_check
      _
    $region10: #{bottleneck_forward.5} parent=5 // pred_check_branch
      %232 = sbr.rel (%p229) target = $region12
    $region11: #{bottleneck_forward.5} parent=5 // pred_region
      %s233 = ssub.s32 %s15, 1
      // Predicated region
      $region13: #{bottleneck_forward.5} parent=11 // pred_check
        %p234 = pneg %p62
      $region14: #{bottleneck_forward.5} parent=11 // pred_check_branch
        %236 = sbr.rel (%p234) target = $region16
      $region15: #{bottleneck_forward.5} parent=11 // pred_region
        _
      $region16: #{bottleneck_forward.5} parent=11 // pred_fallthru
        _
      // Predicated region
      $region17: #{bottleneck_forward.5} parent=11 // pred_check
        %p237 = pneg %p83
      $region18: #{bottleneck_forward.5} parent=11 // pred_check_branch
        %239 = sbr.rel (%p237) target = $region20
      $region19: #{bottleneck_forward.5} parent=11 // pred_region
        _
      $region20: #{bottleneck_forward.5} parent=11 // pred_fallthru
        _
      // Predicated region
      $region21: #{bottleneck_forward.5} parent=11 // pred_check
        %p240 = pneg %p104
      $region22: #{bottleneck_forward.5} parent=11 // pred_check_branch
        %242 = sbr.rel (%p240) target = $region24
      $region23: #{bottleneck_forward.5} parent=11 // pred_region
        _
      $region24: #{bottleneck_forward.5} parent=11 // pred_fallthru
        _
      // Predicated region
      $region25: #{bottleneck_forward.5} parent=11 // pred_check
        %p243 = pneg %p125
      $region26: #{bottleneck_forward.5} parent=11 // pred_check_branch
        %245 = sbr.rel (%p243) target = $region28
      $region27: #{bottleneck_forward.5} parent=11 // pred_region
        _
      $region28: #{bottleneck_forward.5} parent=11 // pred_fallthru
        _
      // Predicated region
      $region29: #{bottleneck_forward.5} parent=11 // pred_check
        %p246 = pneg %p146
      $region30: #{bottleneck_forward.5} parent=11 // pred_check_branch
        %248 = sbr.rel (%p246) target = $region32
      $region31: #{bottleneck_forward.5} parent=11 // pred_region
        _
      $region32: #{bottleneck_forward.5} parent=11 // pred_fallthru
        _
      // Predicated region
      $region33: #{bottleneck_forward.5} parent=11 // pred_check
        %p249 = pneg %p167
      $region34: #{bottleneck_forward.5} parent=11 // pred_check_branch
        %251 = sbr.rel (%p249) target = $region36
      $region35: #{bottleneck_forward.5} parent=11 // pred_region
        _
      $region36: #{bottleneck_forward.5} parent=11 // pred_fallthru
        _
    $region12: #{bottleneck_forward.5} parent=5 // pred_fallthru
      _
    %p252 = scmp.lt.s32.totalorder %s15, 2
    // Predicated region
    $region37: #{bottleneck_forward.5} parent=5 // pred_check
      %p253 = pneg %p252
    $region38: #{bottleneck_forward.5} parent=5 // pred_check_branch
      %255 = sbr.rel (%p253) target = $region40
    $region39: #{bottleneck_forward.5} parent=5 // pred_region
      // Predicated region
      $region41: #{bottleneck_forward.5} parent=39 // pred_check
        %p256 = pneg %p35
      $region42: #{bottleneck_forward.5} parent=39 // pred_check_branch
        %258 = sbr.rel (%p256) target = $region44
      $region43: #{bottleneck_forward.5} parent=39 // pred_region
        %s259 = smul.u32 8, %s15
        %p260 = scmp.lt.s32.totalorder %s259, 15
        %s261 = scalar_select %p260, %s259, 15
        %s262 = smul.addr %s261, 8
        %s263 = scalar_lea.vmem %s0, %s262
        %s264 = smul.u32 8, %s15
      $region44: #{bottleneck_forward.5} parent=39 // pred_fallthru
        _
    $region40: #{bottleneck_forward.5} parent=5 // pred_fallthru
      _
    %p265 = scmp.le.s32.totalorder 1, %s15
    %p266 = scmp.lt.s32.totalorder %s15, 3
    %p267 = pnand %p265, %p266
    %p268 = pneg %p267
    // Predicated region
    $region45: #{bottleneck_forward.5} parent=5 // pred_check
      _
    $region46: #{bottleneck_forward.5} parent=5 // pred_check_branch
      %270 = sbr.rel (%p267) target = $region48
    $region47: #{bottleneck_forward.5} parent=5 // pred_region
      %s271 = ssub.s32 %s15, 1
      %s272 = smul.u32 8, %s20
      %p273 = scmp.lt.s32.totalorder %s272, 15
      %s274 = scalar_select %p273, %s272, 15
      %s275 = smul.addr %s274, 8
      %s276 = scalar_lea.vmem %s0, %s275
      %p277 = pneg %p41
      %p278 = pneg %p38
      %p279 = pneg %p62
      %p280 = pneg %p59
      %p281 = pneg %p83
      %p282 = pneg %p80
      %p283 = pneg %p104
      %p284 = pneg %p101
      %p285 = pneg %p125
      %p286 = pneg %p122
      %p287 = pneg %p146
      %p288 = pneg %p143
      %p289 = pneg %p167
      %p290 = pneg %p164
      %p291 = pneg %p193
      %p292 = pneg %p190
      %s293 = smul.u32 8, %s20
      %p294 = scmp.lt.s32.totalorder %s293, 15
      %s295 = scalar_select %p294, %s293, 15
      %s296 = smul.addr %s295, 8
      %s297 = scalar_lea.vmem %s7, %s296
      %p298 = pneg %p219
      %p299 = pneg %p216
      %p300 = scmp.lt.s32.totalorder %s20, 1
      %s301 = scalar_select %p300, %s20, 1
      %s302 = smul.addr %s301, 2
      %s303 = scalar_lea.vmem %s8, %s302
      %s304 = smul.u32 8, %s20
      %p305 = scmp.lt.s32.totalorder %s304, 15
      %s306 = scalar_select %p305, %s304, 15
      %s307 = smul.addr %s306, 8
      %s308 = scalar_lea.vmem %s0, %s307
      %s309 = smul.u32 8, %s20
      %s310 = smul.u32 8, %s20
      %p311 = scmp.lt.s32.totalorder %s310, 15
      %s312 = scalar_select %p311, %s310, 15
      %s313 = smul.addr %s312, 8
      %s314 = scalar_lea.vmem %s7, %s313
      %s315 = smul.u32 8, %s20
      %p316 = scmp.lt.s32.totalorder %s20, 1
      %s317 = scalar_select %p316, %s20, 1
      %s318 = smul.addr %s317, 2
      %s319 = scalar_lea.vmem %s8, %s318
      %v320 = vld [vmem:[%s308] sm:$0xff]
      %v321 = vld [vmem:[%s308 + $0x8] sm:$0xff]
      %v322 = vld [vmem:[%s308 + $0x10] sm:$0xff]
      %v323 = vld [vmem:[%s308 + $0x18] sm:$0xff]
      %v324 = vld [vmem:[%s308 + $0x20] sm:$0xff]
      %v325 = vld [vmem:[%s308 + $0x28] sm:$0xff]
      %v326 = vld [vmem:[%s308 + $0x30] sm:$0xff]
      %v327 = vld [vmem:[%s308 + $0x38] sm:$0xff]
      %v328 = vld [vmem:[%s1] sm:$0x1]
      %v330 = vlaneseq
      %v331 = vshrl.u32 %v330, 7
      %v332 = vsub.s32 0, %v331
      %v333 = vrot.slane %v328, %v332
      %v335 = vmul.f32 %v320, %v333
      %v336 = vmul.f32 %v321, %v333
      %v337 = vmul.f32 %v322, %v333
      %v338 = vmul.f32 %v323, %v333
      %v339 = vmul.f32 %v324, %v333
      %v340 = vmul.f32 %v325, %v333
      %v341 = vmul.f32 %v326, %v333
      %v342 = vmul.f32 %v327, %v333
      %v343 = vld [vmem:[%s2] sm:$0x1]
      %v345 = vlaneseq
      %v346 = vshrl.u32 %v345, 7
      %v347 = vsub.s32 0, %v346
      %v348 = vrot.slane %v343, %v347
      %v350 = vadd.f32 %v335, %v348
      %v351 = vadd.f32 %v336, %v348
      %v352 = vadd.f32 %v337, %v348
      %v353 = vadd.f32 %v338, %v348
      %v354 = vadd.f32 %v339, %v348
      %v355 = vadd.f32 %v340, %v348
      %v356 = vadd.f32 %v341, %v348
      %v357 = vadd.f32 %v342, %v348
      %v358 = vmax.f32 %v350, 0.0
      %v359 = vmax.f32 %v351, 0.0
      %v360 = vmax.f32 %v352, 0.0
      %v361 = vmax.f32 %v353, 0.0
      %v362 = vmax.f32 %v354, 0.0
      %v363 = vmax.f32 %v355, 0.0
      %v364 = vmax.f32 %v356, 0.0
      %v365 = vmax.f32 %v357, 0.0
      %v366 = vld [vmem:[%s3] sm:$0xff]
      %v367 = vld [vmem:[%s3 + $0x8] sm:$0xff]
      %v368 = vld [vmem:[%s3 + $0x10] sm:$0xff]
      %v369 = vld [vmem:[%s3 + $0x18] sm:$0xff]
      %v370 = vld [vmem:[%s3 + $0x20] sm:$0xff]
      %v371 = vld [vmem:[%s3 + $0x28] sm:$0xff]
      %v372 = vld [vmem:[%s3 + $0x30] sm:$0xff]
      %v373 = vld [vmem:[%s3 + $0x38] sm:$0xff]
      %v374 = vld [vmem:[%s3 + $0x40] sm:$0xff]
      %v375 = vld [vmem:[%s3 + $0x48] sm:$0xff]
      %v376 = vld [vmem:[%s3 + $0x50] sm:$0xff]
      %v377 = vld [vmem:[%s3 + $0x58] sm:$0xff]
      %v378 = vld [vmem:[%s3 + $0x60] sm:$0xff]
      %v379 = vld [vmem:[%s3 + $0x68] sm:$0xff]
      %v380 = vld [vmem:[%s3 + $0x70] sm:$0xff]
      %v381 = vld [vmem:[%s3 + $0x78] sm:$0xff]
      %v382 = vld [vmem:[%s3 + $0x80] sm:$0xff]
      %v383 = vld [vmem:[%s3 + $0x88] sm:$0xff]
      %v384 = vld [vmem:[%s3 + $0x90] sm:$0xff]
      %v385 = vld [vmem:[%s3 + $0x98] sm:$0xff]
      %v386 = vld [vmem:[%s3 + $0xa0] sm:$0xff]
      %v387 = vld [vmem:[%s3 + $0xa8] sm:$0xff]
      %v388 = vld [vmem:[%s3 + $0xb0] sm:$0xff]
      %v389 = vld [vmem:[%s3 + $0xb8] sm:$0xff]
      %v390 = vld [vmem:[%s3 + $0xc0] sm:$0xff]
      %v391 = vld [vmem:[%s3 + $0xc8] sm:$0xff]
      %v392 = vld [vmem:[%s3 + $0xd0] sm:$0xff]
      %v393 = vld [vmem:[%s3 + $0xd8] sm:$0xff]
      %v394 = vld [vmem:[%s3 + $0xe0] sm:$0xff]
      %v395 = vld [vmem:[%s3 + $0xe8] sm:$0xff]
      %v396 = vld [vmem:[%s3 + $0xf0] sm:$0xff]
      %v397 = vld [vmem:[%s3 + $0xf8] sm:$0xff]
      %v398 = vld [vmem:[%s3 + $0x100] sm:$0xff]
      %v399 = vld [vmem:[%s3 + $0x108] sm:$0xff]
      %v400 = vld [vmem:[%s3 + $0x110] sm:$0xff]
      %v401 = vld [vmem:[%s3 + $0x118] sm:$0xff]
      %v402 = vld [vmem:[%s3 + $0x120] sm:$0xff]
      %v403 = vld [vmem:[%s3 + $0x128] sm:$0xff]
      %v404 = vld [vmem:[%s3 + $0x130] sm:$0xff]
      %v405 = vld [vmem:[%s3 + $0x138] sm:$0xff]
      %v406 = vld [vmem:[%s3 + $0x140] sm:$0xff]
      %v407 = vld [vmem:[%s3 + $0x148] sm:$0xff]
      %v408 = vld [vmem:[%s3 + $0x150] sm:$0xff]
      %v409 = vld [vmem:[%s3 + $0x158] sm:$0xff]
      %v410 = vld [vmem:[%s3 + $0x160] sm:$0xff]
      %v411 = vld [vmem:[%s3 + $0x168] sm:$0xff]
      %v412 = vld [vmem:[%s3 + $0x170] sm:$0xff]
      %v413 = vld [vmem:[%s3 + $0x178] sm:$0xff]
      %414 = vmatprep.subr.mxu0 %v367
      %415 = vmatpush1.msra.mxu0 %v366
      %416 = vmatprep.subr.mxu0 %v370
      %417 = vmatpush1.msra.mxu0 %v369
      %418 = vmatprep.subr.mxu0 %v373
      %419 = vmatpush1.msra.mxu0 %v372
      %420 = vmatprep.subr.mxu0 %v376
      %421 = vmatpush1.msra.mxu0 %v375
      %422 = vmatprep.subr.mxu0 %v379
      %423 = vmatpush1.msra.mxu0 %v378
      %424 = vmatprep.subr.mxu0 %v382
      %425 = vmatpush1.msra.mxu0 %v381
      %426 = vmatprep.subr.mxu0 %v385
      %427 = vmatpush1.msra.mxu0 %v384
      %428 = vmatprep.subr.mxu0 %v388
      %429 = vmatpush1.msra.mxu0 %v387
      %430 = vmatprep.subr.mxu0 %v391
      %431 = vmatpush1.msra.mxu0 %v390
      %432 = vmatprep.subr.mxu0 %v394
      %433 = vmatpush1.msra.mxu0 %v393
      %434 = vmatprep.subr.mxu0 %v397
      %435 = vmatpush1.msra.mxu0 %v396
      %436 = vmatprep.subr.mxu0 %v400
      %437 = vmatpush1.msra.mxu0 %v399
      %438 = vmatprep.subr.mxu0 %v403
      %439 = vmatpush1.msra.mxu0 %v402
      %440 = vmatprep.subr.mxu0 %v406
      %441 = vmatpush1.msra.mxu0 %v405
      %442 = vmatprep.subr.mxu0 %v409
      %443 = vmatpush1.msra.mxu0 %v408
      %444 = vmatprep.subr.mxu0 %v412
      %445 = vmatpush1.msra.mxu0 %v411
      %446 = vmatprep.subr.mxu0 0.0
      %447 = vmatpush1.msra.mxu0 0.0
      %448 = vmatprep.subr.mxu0 0.0
      %449 = vmatpush1.msra.mxu0 0.0
      %450 = vmatprep.subr.mxu0 0.0
      %451 = vmatpush1.msra.mxu0 0.0
      %452 = vmatprep.subr.mxu0 0.0
      %453 = vmatpush1.msra.mxu0 0.0
      %454 = vmatprep.subr.mxu0 0.0
      %455 = vmatpush1.msra.mxu0 0.0
      %456 = vmatprep.subr.mxu0 0.0
      %457 = vmatpush1.msra.mxu0 0.0
      %458 = vmatprep.subr.mxu0 0.0
      %459 = vmatpush1.msra.mxu0 0.0
      %460 = vmatprep.subr.mxu0 0.0
      %461 = vmatpush1.msra.mxu0 0.0
      %462 = vmatprep.subr.mxu0 0.0
      %463 = vmatpush1.msra.mxu0 0.0
      %464 = vmatprep.subr.mxu0 0.0
      %465 = vmatpush1.msra.mxu0 0.0
      %466 = vmatprep.subr.mxu0 0.0
      %467 = vmatpush1.msra.mxu0 0.0
      %468 = vmatprep.subr.mxu0 0.0
      %469 = vmatpush1.msra.mxu0 0.0
      %470 = vmatprep.subr.mxu0 0.0
      %471 = vmatpush1.msra.mxu0 0.0
      %472 = vmatprep.subr.mxu0 0.0
      %473 = vmatpush1.msra.mxu0 0.0
      %474 = vmatprep.subr.mxu0 0.0
      %475 = vmatpush1.msra.mxu0 0.0
      %476 = vmatprep.subr.mxu0 0.0
      %477 = vmatpush1.msra.mxu0 0.0
      %478 = vmatprep.mubr.f32.mxu0 0.0
      %479 = vmatmul.mubr.f32.gmra.mrb[0].mxu0 %v358
      %v480 = vpop.f32.mrb[0].mxu0
      %v481 = vadd.f32 0.0, %v480
      %v482 = vpop.f32.mrb[0].mxu0
      %v483 = vadd.f32 0.0, %v482
      %484 = vmatprep.mubr.f32.mxu0 0.0
      %485 = vmatmul.mubr.f32.gmra.mrb[0].mxu0 %v359
      %v486 = vpop.f32.mrb[0].mxu0
      %v487 = vadd.f32 0.0, %v486
      %v488 = vpop.f32.mrb[0].mxu0
      %v489 = vadd.f32 0.0, %v488
      %490 = vmatprep.mubr.f32.mxu0 0.0
      %491 = vmatmul.mubr.f32.gmra.mrb[0].mxu0 %v360
      %v492 = vpop.f32.mrb[0].mxu0
      %v493 = vadd.f32 0.0, %v492
      %v494 = vpop.f32.mrb[0].mxu0
      %v495 = vadd.f32 0.0, %v494
      %496 = vmatprep.mubr.f32.mxu0 0.0
      %497 = vmatmul.mubr.f32.gmra.mrb[0].mxu0 %v361
      %v498 = vpop.f32.mrb[0].mxu0
      %v499 = vadd.f32 0.0, %v498
      %v500 = vpop.f32.mrb[0].mxu0
      %v501 = vadd.f32 0.0, %v500
      %502 = vmatprep.mubr.f32.mxu0 0.0
      %503 = vmatmul.mubr.f32.gmra.mrb[0].mxu0 %v362
      %v504 = vpop.f32.mrb[0].mxu0
      %v505 = vadd.f32 0.0, %v504
      %v506 = vpop.f32.mrb[0].mxu0
      %v507 = vadd.f32 0.0, %v506
      %508 = vmatprep.mubr.f32.mxu0 0.0
      %509 = vmatmul.mubr.f32.gmra.mrb[0].mxu0 %v363
      %v510 = vpop.f32.mrb[0].mxu0
      %v511 = vadd.f32 0.0, %v510
      %v512 = vpop.f32.mrb[0].mxu0
      %v513 = vadd.f32 0.0, %v512
      %514 = vmatprep.mubr.f32.mxu0 0.0
      %515 = vmatmul.mubr.f32.gmra.mrb[0].mxu0 %v364
      %v516 = vpop.f32.mrb[0].mxu0
      %v517 = vadd.f32 0.0, %v516
      %v518 = vpop.f32.mrb[0].mxu0
      %v519 = vadd.f32 0.0, %v518
      %520 = vmatprep.mubr.f32.mxu0 0.0
      %521 = vmatmul.mubr.f32.gmra.mrb[0].mxu0 %v365
      %v522 = vpop.f32.mrb[0].mxu0
      %v523 = vadd.f32 0.0, %v522
      %v524 = vpop.f32.mrb[0].mxu0
      %v525 = vadd.f32 0.0, %v524
      %526 = vdwg.mxu0
      %527 = vmatprep.subr.mxu0 0.0
      %528 = vmatpush1.msra.mxu0 %v368
      %529 = vmatprep.subr.mxu0 0.0
      %530 = vmatpush1.msra.mxu0 %v371
      %531 = vmatprep.subr.mxu0 0.0
      %532 = vmatpush1.msra.mxu0 %v374
      %533 = vmatprep.subr.mxu0 0.0
      %534 = vmatpush1.msra.mxu0 %v377
      %535 = vmatprep.subr.mxu0 0.0
      %536 = vmatpush1.msra.mxu0 %v380
      %537 = vmatprep.subr.mxu0 0.0
      %538 = vmatpush1.msra.mxu0 %v383
      %539 = vmatprep.subr.mxu0 0.0
      %540 = vmatpush1.msra.mxu0 %v386
      %541 = vmatprep.subr.mxu0 0.0
      %542 = vmatpush1.msra.mxu0 %v389
      %543 = vmatprep.subr.mxu0 0.0
      %544 = vmatpush1.msra.mxu0 %v392
      %545 = vmatprep.subr.mxu0 0.0
      %546 = vmatpush1.msra.mxu0 %v395
      %547 = vmatprep.subr.mxu0 0.0
      %548 = vmatpush1.msra.mxu0 %v398
      %549 = vmatprep.subr.mxu0 0.0
      %550 = vmatpush1.msra.mxu0 %v401
      %551 = vmatprep.subr.mxu0 0.0
      %552 = vmatpush1.msra.mxu0 %v404
      %553 = vmatprep.subr.mxu0 0.0
      %554 = vmatpush1.msra.mxu0 %v407
      %555 = vmatprep.subr.mxu0 0.0
      %556 = vmatpush1.msra.mxu0 %v410
      %557 = vmatprep.subr.mxu0 0.0
      %558 = vmatpush1.msra.mxu0 %v413
      %559 = vmatprep.subr.mxu0 0.0
      %560 = vmatpush1.msra.mxu0 0.0
      %561 = vmatprep.subr.mxu0 0.0
      %562 = vmatpush1.msra.mxu0 0.0
      %563 = vmatprep.subr.mxu0 0.0
      %564 = vmatpush1.msra.mxu0 0.0
      %565 = vmatprep.subr.mxu0 0.0
      %566 = vmatpush1.msra.mxu0 0.0
      %567 = vmatprep.subr.mxu0 0.0
      %568 = vmatpush1.msra.mxu0 0.0
      %569 = vmatprep.subr.mxu0 0.0
      %570 = vmatpush1.msra.mxu0 0.0
      %571 = vmatprep.subr.mxu0 0.0
      %572 = vmatpush1.msra.mxu0 0.0
      %573 = vmatprep.subr.mxu0 0.0
      %574 = vmatpush1.msra.mxu0 0.0
      %575 = vmatprep.subr.mxu0 0.0
      %576 = vmatpush1.msra.mxu0 0.0
      %577 = vmatprep.subr.mxu0 0.0
      %578 = vmatpush1.msra.mxu0 0.0
      %579 = vmatprep.subr.mxu0 0.0
      %580 = vmatpush1.msra.mxu0 0.0
      %581 = vmatprep.subr.mxu0 0.0
      %582 = vmatpush1.msra.mxu0 0.0
      %583 = vmatprep.subr.mxu0 0.0
      %584 = vmatpush1.msra.mxu0 0.0
      %585 = vmatprep.subr.mxu0 0.0
      %586 = vmatpush1.msra.mxu0 0.0
      %587 = vmatprep.subr.mxu0 0.0
      %588 = vmatpush1.msra.mxu0 0.0
      %589 = vmatprep.subr.mxu0 0.0
      %590 = vmatpush1.msra.mxu0 0.0
      %591 = vmatprep.mubr.f32.mxu0 0.0
      %592 = vmatmul.mubr.f32.gmra.mrb[0].mxu0 %v358
      %v593 = vpop.f32.mrb[0].mxu0
      %v594 = vadd.f32 0.0, %v593
      %v595 = vpop.f32.mrb[0].mxu0
      %596 = vmatprep.mubr.f32.mxu0 0.0
      %597 = vmatmul.mubr.f32.gmra.mrb[0].mxu0 %v359
      %v598 = vpop.f32.mrb[0].mxu0
      %v599 = vadd.f32 0.0, %v598
      %v600 = vpop.f32.mrb[0].mxu0
      %601 = vmatprep.mubr.f32.mxu0 0.0
      %602 = vmatmul.mubr.f32.gmra.mrb[0].mxu0 %v360
      %v603 = vpop.f32.mrb[0].mxu0
      %v604 = vadd.f32 0.0, %v603
      %v605 = vpop.f32.mrb[0].mxu0
      %606 = vmatprep.mubr.f32.mxu0 0.0
      %607 = vmatmul.mubr.f32.gmra.mrb[0].mxu0 %v361
      %v608 = vpop.f32.mrb[0].mxu0
      %v609 = vadd.f32 0.0, %v608
      %v610 = vpop.f32.mrb[0].mxu0
      %611 = vmatprep.mubr.f32.mxu0 0.0
      %612 = vmatmul.mubr.f32.gmra.mrb[0].mxu0 %v362
      %v613 = vpop.f32.mrb[0].mxu0
      %v614 = vadd.f32 0.0, %v613
      %v615 = vpop.f32.mrb[0].mxu0
      %616 = vmatprep.mubr.f32.mxu0 0.0
      %617 = vmatmul.mubr.f32.gmra.mrb[0].mxu0 %v363
      %v618 = vpop.f32.mrb[0].mxu0
      %v619 = vadd.f32 0.0, %v618
      %v620 = vpop.f32.mrb[0].mxu0
      %621 = vmatprep.mubr.f32.mxu0 0.0
      %622 = vmatmul.mubr.f32.gmra.mrb[0].mxu0 %v364
      %v623 = vpop.f32.mrb[0].mxu0
      %v624 = vadd.f32 0.0, %v623
      %v625 = vpop.f32.mrb[0].mxu0
      %626 = vmatprep.mubr.f32.mxu0 0.0
      %627 = vmatmul.mubr.f32.gmra.mrb[0].mxu0 %v365
      %v628 = vpop.f32.mrb[0].mxu0
      %v629 = vadd.f32 0.0, %v628
      %v630 = vpop.f32.mrb[0].mxu0
      %631 = vdwg.mxu0
      %v632 = vld [vmem:[%s4] sm:$0x1]
      %v634 = vlaneseq
      %v635 = vshrl.u32 %v634, 7
      %v636 = vsub.s32 0, %v635
      %v637 = vrot.slane %v632, %v636
      %v639 = vadd.f32 %v483, %v637
      %v640 = vadd.f32 %v489, %v637
      %v641 = vadd.f32 %v495, %v637
      %v642 = vadd.f32 %v501, %v637
      %v643 = vadd.f32 %v507, %v637
      %v644 = vadd.f32 %v513, %v637
      %v645 = vadd.f32 %v519, %v637
      %v646 = vadd.f32 %v525, %v637
      %v647 = vrot.slane %v481, 7
      %v648 = vrot.slane %v487, 7
      %v649 = vrot.slane %v493, 7
      %v650 = vrot.slane %v499, 7
      %v651 = vrot.slane %v505, 7
      %v652 = vrot.slane %v511, 7
      %v653 = vrot.slane %v517, 7
      %v654 = vrot.slane %v523, 7
      %v655 = vlaneseq
      %v656 = vshrl.u32 %v655, 7
      %vm657 = vcmp.lt.s32.totalorder %v656, 1
      %v658 = vsel %vm657, %v653, %v654
      %v659 = vsel %vm657, %v652, %v653
      %v660 = vsel %vm657, %v651, %v652
      %v661 = vsel %vm657, %v650, %v651
      %v662 = vsel %vm657, %v649, %v650
      %v663 = vsel %vm657, %v648, %v649
      %v664 = vsel %vm657, %v647, %v648
      %v665 = vsel %vm657, %v654, %v647
      %v666 = vld [vmem:[%s5] sm:$0xff]
      %v667 = vld [vmem:[%s5 + $0x8] sm:$0xff]
      %v668 = vld [vmem:[%s5 + $0x10] sm:$0xff]
      %v669 = vld [vmem:[%s5 + $0x18] sm:$0xff]
      %v670 = vld [vmem:[%s5 + $0x20] sm:$0xff]
      %v671 = vld [vmem:[%s5 + $0x28] sm:$0xff]
      %v672 = vld [vmem:[%s5 + $0x30] sm:$0xff]
      %v673 = vld [vmem:[%s5 + $0x38] sm:$0xff]
      %675 = vset.pattern.permute.xlu0 0
      %676 = vperm.xlu0 %675, %v666
      %v677 = vpop.permute.xlu0 %676
      %680 = vset.pattern.permute.xlu0 0
      %681 = vperm.xlu0 %680, %v667
      %v682 = vpop.permute.xlu0 %681
      %685 = vset.pattern.permute.xlu0 0
      %686 = vperm.xlu0 %685, %v668
      %v687 = vpop.permute.xlu0 %686
      %690 = vset.pattern.permute.xlu0 0
      %691 = vperm.xlu0 %690, %v669
      %v692 = vpop.permute.xlu0 %691
      %695 = vset.pattern.permute.xlu0 0
      %696 = vperm.xlu0 %695, %v670
      %v697 = vpop.permute.xlu0 %696
      %700 = vset.pattern.permute.xlu0 0
      %701 = vperm.xlu0 %700, %v671
      %v702 = vpop.permute.xlu0 %701
      %705 = vset.pattern.permute.xlu0 0
      %706 = vperm.xlu0 %705, %v672
      %v707 = vpop.permute.xlu0 %706
      %710 = vset.pattern.permute.xlu0 0
      %711 = vperm.xlu0 %710, %v673
      %v712 = vpop.permute.xlu0 %711
      %v714 = vmul.f32 %v665, %v677
      %v715 = vmul.f32 %v664, %v682
      %v716 = vmul.f32 %v663, %v687
      %v717 = vmul.f32 %v662, %v692
      %v718 = vmul.f32 %v661, %v697
      %v719 = vmul.f32 %v660, %v702
      %v720 = vmul.f32 %v659, %v707
      %v721 = vmul.f32 %v658, %v712
      %v722 = vadd.f32 %v639, %v714
      %v723 = vadd.f32 %v640, %v715
      %v724 = vadd.f32 %v641, %v716
      %v725 = vadd.f32 %v642, %v717
      %v726 = vadd.f32 %v643, %v718
      %v727 = vadd.f32 %v644, %v719
      %v728 = vadd.f32 %v645, %v720
      %v729 = vadd.f32 %v646, %v721
      %v730 = vrot.slane %v594, 1
      %v731 = vrot.slane %v599, 1
      %v732 = vrot.slane %v604, 1
      %v733 = vrot.slane %v609, 1
      %v734 = vrot.slane %v614, 1
      %v735 = vrot.slane %v619, 1
      %v736 = vrot.slane %v624, 1
      %v737 = vrot.slane %v629, 1
      %vm738 = vcmp.lt.s32.totalorder %v656, 7
      %v739 = vsel %vm738, %v736, %v737
      %v740 = vsel %vm738, %v735, %v736
      %v741 = vsel %vm738, %v734, %v735
      %v742 = vsel %vm738, %v733, %v734
      %v743 = vsel %vm738, %v732, %v733
      %v744 = vsel %vm738, %v731, %v732
      %v745 = vsel %vm738, %v730, %v731
      %v746 = vsel %vm738, %v737, %v730
      %v747 = vld [vmem:[%s6] sm:$0xff]
      %v748 = vld [vmem:[%s6 + $0x8] sm:$0xff]
      %v749 = vld [vmem:[%s6 + $0x10] sm:$0xff]
      %v750 = vld [vmem:[%s6 + $0x18] sm:$0xff]
      %v751 = vld [vmem:[%s6 + $0x20] sm:$0xff]
      %v752 = vld [vmem:[%s6 + $0x28] sm:$0xff]
      %v753 = vld [vmem:[%s6 + $0x30] sm:$0xff]
      %v754 = vld [vmem:[%s6 + $0x38] sm:$0xff]
      %756 = vset.pattern.permute.xlu0 0
      %757 = vperm.xlu0 %756, %v747
      %v758 = vpop.permute.xlu0 %757
      %761 = vset.pattern.permute.xlu0 0
      %762 = vperm.xlu0 %761, %v748
      %v763 = vpop.permute.xlu0 %762
      %766 = vset.pattern.permute.xlu0 0
      %767 = vperm.xlu0 %766, %v749
      %v768 = vpop.permute.xlu0 %767
      %771 = vset.pattern.permute.xlu0 0
      %772 = vperm.xlu0 %771, %v750
      %v773 = vpop.permute.xlu0 %772
      %776 = vset.pattern.permute.xlu0 0
      %777 = vperm.xlu0 %776, %v751
      %v778 = vpop.permute.xlu0 %777
      %781 = vset.pattern.permute.xlu0 0
      %782 = vperm.xlu0 %781, %v752
      %v783 = vpop.permute.xlu0 %782
      %786 = vset.pattern.permute.xlu0 0
      %787 = vperm.xlu0 %786, %v753
      %v788 = vpop.permute.xlu0 %787
      %791 = vset.pattern.permute.xlu0 0
      %792 = vperm.xlu0 %791, %v754
      %v793 = vpop.permute.xlu0 %792
      %v795 = vmul.f32 %v745, %v758
      %v796 = vmul.f32 %v744, %v763
      %v797 = vmul.f32 %v743, %v768
      %v798 = vmul.f32 %v742, %v773
      %v799 = vmul.f32 %v741, %v778
      %v800 = vmul.f32 %v740, %v783
      %v801 = vmul.f32 %v739, %v788
      %v802 = vmul.f32 %v746, %v793
      %v803 = vadd.f32 %v722, %v795
      %v804 = vadd.f32 %v723, %v796
      %v805 = vadd.f32 %v724, %v797
      %v806 = vadd.f32 %v725, %v798
      %v807 = vadd.f32 %v726, %v799
      %v808 = vadd.f32 %v727, %v800
      %v809 = vadd.f32 %v728, %v801
      %v810 = vadd.f32 %v729, %v802
      %811 = vst [vmem:[%s314] sm:$0xff] %v803
      %812 = vst [vmem:[%s314 + $0x8] sm:$0xff] %v804
      %813 = vst [vmem:[%s314 + $0x10] sm:$0xff] %v805
      %814 = vst [vmem:[%s314 + $0x18] sm:$0xff] %v806
      %815 = vst [vmem:[%s314 + $0x20] sm:$0xff] %v807
      %816 = vst [vmem:[%s314 + $0x28] sm:$0xff] %v808
      %817 = vst [vmem:[%s314 + $0x30] sm:$0xff] %v809
      %818 = vst [vmem:[%s314 + $0x38] sm:$0xff] %v810
      %v819 = vadd.f32 %v803, %v804
      %v820 = vadd.f32 %v819, %v805
      %v821 = vadd.f32 %v820, %v806
      %v822 = vadd.f32 %v821, %v807
      %v823 = vadd.f32 %v822, %v808
      %v824 = vadd.f32 %v823, %v809
      %v825 = vadd.f32 %v824, %v810
      %v826 = vrot.slane %v825, 4
      %v827 = vadd.f32 %v825, %v826
      %v828 = vrot.slane %v827, 2
      %v829 = vadd.f32 %v827, %v828
      %v830 = vrot.slane %v829, 1
      %v831 = vadd.f32 %v829, %v830
      %v832 = vmul.f32 %v803, %v803
      %v833 = vmul.f32 %v804, %v804
      %v834 = vmul.f32 %v805, %v805
      %v835 = vmul.f32 %v806, %v806
      %v836 = vmul.f32 %v807, %v807
      %v837 = vmul.f32 %v808, %v808
      %v838 = vmul.f32 %v809, %v809
      %v839 = vmul.f32 %v810, %v810
      %v840 = vadd.f32 %v832, %v833
      %v841 = vadd.f32 %v840, %v834
      %v842 = vadd.f32 %v841, %v835
      %v843 = vadd.f32 %v842, %v836
      %v844 = vadd.f32 %v843, %v837
      %v845 = vadd.f32 %v844, %v838
      %v846 = vadd.f32 %v845, %v839
      %v847 = vrot.slane %v846, 4
      %v848 = vadd.f32 %v846, %v847
      %v849 = vrot.slane %v848, 2
      %v850 = vadd.f32 %v848, %v849
      %v851 = vrot.slane %v850, 1
      %v852 = vadd.f32 %v850, %v851
      %vm853 = vcmask 1040384
      %v854 = vsel %vm853, %v831, %v852
      %855 = vst [vmem:[%s319] sm:$0x3] %v854
      %s856 = smul.u32 8, %s20
      %p857 = scmp.lt.s32.totalorder %s856, 15
      %s858 = scalar_select %p857, %s856, 15
      %s859 = smul.addr %s858, 8
      %s860 = scalar_lea.vmem %s7, %s859
      %p861 = scmp.lt.s32.totalorder %s20, 1
      %s862 = scalar_select %p861, %s20, 1
      %s863 = smul.addr %s862, 2
      %s864 = scalar_lea.vmem %s8, %s863
      // Predicated region
      $region49: #{bottleneck_forward.5} parent=47 // pred_check
        %p865 = pneg %p190
      $region50: #{bottleneck_forward.5} parent=47 // pred_check_branch
        %867 = sbr.rel (%p865) target = $region52
      $region51: #{bottleneck_forward.5} parent=47 // pred_region
        %s868 = smul.u32 8, %s20
      $region52: #{bottleneck_forward.5} parent=47 // pred_fallthru
        _
      // Predicated region
      $region53: #{bottleneck_forward.5} parent=47 // pred_check
        %p869 = pneg %p216
      $region54: #{bottleneck_forward.5} parent=47 // pred_check_branch
        %871 = sbr.rel (%p869) target = $region56
      $region55: #{bottleneck_forward.5} parent=47 // pred_region
        _
      $region56: #{bottleneck_forward.5} parent=47 // pred_fallthru
        _
    $region48: #{bottleneck_forward.5} parent=5 // pred_fallthru
      _
    %p872 = scmp.le.s32.totalorder 2, %s15
    // Predicated region
    $region57: #{bottleneck_forward.5} parent=5 // pred_check
      %p873 = pneg %p872
    $region58: #{bottleneck_forward.5} parent=5 // pred_check_branch
      %875 = sbr.rel (%p873) target = $region60
    $region59: #{bottleneck_forward.5} parent=5 // pred_region
      %s876 = ssub.s32 %s15, 2
      // Predicated region
      $region61: #{bottleneck_forward.5} parent=59 // pred_check
        %p877 = pneg %p196
      $region62: #{bottleneck_forward.5} parent=59 // pred_check_branch
        %879 = sbr.rel (%p877) target = $region64
      $region63: #{bottleneck_forward.5} parent=59 // pred_region
        %s880 = smul.u32 8, %s21
        %p881 = scmp.lt.s32.totalorder %s880, 15
        %s882 = scalar_select %p881, %s880, 15
        %s883 = smul.addr %s882, 8
        %s884 = scalar_lea.vmem %s7, %s883
      $region64: #{bottleneck_forward.5} parent=59 // pred_fallthru
        _
      // Predicated region
      $region65: #{bottleneck_forward.5} parent=59 // pred_check
        %p885 = pneg %p222
      $region66: #{bottleneck_forward.5} parent=59 // pred_check_branch
        %887 = sbr.rel (%p885) target = $region68
      $region67: #{bottleneck_forward.5} parent=59 // pred_region
        %p888 = scmp.lt.s32.totalorder %s21, 1
        %s889 = scalar_select %p888, %s21, 1
        %s890 = smul.addr %s889, 2
        %s891 = scalar_lea.vmem %s8, %s890
      $region68: #{bottleneck_forward.5} parent=59 // pred_fallthru
        _
    $region60: #{bottleneck_forward.5} parent=5 // pred_fallthru
      _
  $region6: #{bottleneck_forward.5} parent=0 // loop_footer
    %s19 = sadd.s32 1, %s15
  $region7: #{bottleneck_forward.5} parent=0 // loop_footer_branch
    %14 = sbr.rel target = $region3
  $region8: #{bottleneck_forward.5} parent=0 // loop_exit
    _

// kernel: bottleneck_forward.7
$region0: #{bottleneck_forward.7}
  #allocation0 [shape = 'u32[]', space=smem, size = 0x4, offset = 0x4, fixed_abs, tag = 'smem constant byte address 0x4 - core index']
  #allocation1 [shape = 'u32[144,128]{1,0:T(1,128)}', space=vmem, size = 0x12000, scoped, tag = 'internal scratch']
  %s0 = inlined_call_operand.vmem [shape: f32[128,256], index: 0, kind: input, shape index: {}]
  %s1 = inlined_call_operand.vmem [shape: f32[1,256], index: 1, kind: input, shape index: {}]
  %s2 = inlined_call_operand.vmem [shape: f32[1,256], index: 2, kind: input, shape index: {}]
  %s3 = inlined_call_operand.vmem [shape: f32[128,128], index: 3, kind: input, shape index: {}]
  %s4 = inlined_call_operand.vmem [shape: f32[128,256], index: 4, kind: input, shape index: {}]
  %s5 = inlined_call_operand.vmem [shape: f32[1,256], index: 5, kind: input, shape index: {}]
  %s6 = inlined_call_operand.hbm [shape: f32[128,256], index: 6, kind: output, shape index: {}]
  %s7 = sld [smem:[#allocation0]]
  $region57: #{bottleneck_forward.7} parent=0
    _
  %s9 = ssub.s32 1, %s7
  %s10 = scalar_select 0, %s9, %s7
  $region1: #{bottleneck_forward.7} parent=0
    #allocation2 [shape = 'u8[131072]{0}', space=vmem, size = 0x20000, scoped, tag = 'output window, operand 0']
    #allocation3 [shape = 's32[2]{0}', space=sflag, size = 0x8, scoped, tag = 'scoped memory for bottleneck_forward.7']
    %11 = vsyncpa [#allocation3], 0
    %s12 = scalar_lea.sflag [#allocation3], 1
    %13 = vsyncpa %s12, 0
    loop: start=0, step=1, limit=4
    $region2: #{bottleneck_forward.7} parent=1 // loop_pre_header
      _
    $region3: #{bottleneck_forward.7} parent=1 // loop_header
      %s15 = sphi 0, %s19
      %p16 = scmp.ge.s32.totalorder %s15, 4
      %s25 = sphi 0, %s27
      %s28 = sphi 0, %s25
      %s29 = sphi 0, %s28
      %s45 = sphi 0, %s29
      %s49 = sphi 0, %s49
      %s51 = sphi 0, %s49
      %s52 = sphi 0, %s51
      %s66 = sphi 0, %s52
      %s70 = sphi 0, %s70
      %s72 = sphi 0, %s70
      %s73 = sphi 0, %s72
      %s87 = sphi 0, %s73
      %s93 = sphi 0, %s95
      %s96 = sphi 0, %s93
      %s97 = sphi 0, %s96
      %s113 = sphi 0, %s97
      %s117 = sphi 0, %s117
      %s119 = sphi 0, %s117
      %s120 = sphi 0, %s119
      %s134 = sphi 0, %s120
      %s138 = sphi 0, %s138
      %s140 = sphi 0, %s138
      %s141 = sphi 0, %s140
      %s155 = sphi 0, %s141
      %s161 = sphi 0, %s163
      %s164 = sphi 0, %s161
      %s165 = sphi 0, %s164
      %s181 = sphi 0, %s165
    $region4: #{bottleneck_forward.7} parent=1 // loop_header_branch
      %18 = sbr.rel (%p16) target = $region8
    $region5: #{bottleneck_forward.7} parent=1 // loop_body
      %s20 = ssub.s32 %s15, 1
      %s21 = ssub.s32 %s15, 2
      %s22 = sadd.s32 %s15, 1
      %s23 = ssub.s32 %s15, %s22
      %p24 = scmp.eq.s32.totalorder %s23, 0
      %s26 = sadd.s32 %s25, 1
      %s27 = scalar_select %p24, %s25, %s26
      %p30 = pneg %p24
      %p31 = scmp.eq.s32.totalorder %s15, 1
      %p32 = por %p30, %p31
      %p33 = scmp.ne.s32.totalorder %s25, %s28
      %p34 = scmp.eq.s32.totalorder %s15, 0
      %p35 = por %p33, %p34
      %p36 = scmp.ne.s32.totalorder %s25, %s28
      %p37 = scmp.eq.s32.totalorder %s20, 1
      %p38 = por %p36, %p37
      %p39 = scmp.ne.s32.totalorder %s28, %s29
      %p40 = scmp.eq.s32.totalorder %s20, 0
      %p41 = por %p39, %p40
      %p42 = scmp.ne.s32.totalorder %s28, %s29
      %p43 = scmp.eq.s32.totalorder %s21, 1
      %p44 = por %p42, %p43
      %p46 = scmp.ne.s32.totalorder %s29, %s45
      %p47 = scmp.eq.s32.totalorder %s21, 0
      %p48 = por %p46, %p47
      %s50 = sadd.s32 %s49, 1
      %p53 = scmp.eq.s32.totalorder %s15, 1
      %p54 = scmp.ne.s32.totalorder %s49, %s51
      %p55 = scmp.eq.s32.totalorder %s15, 0
      %p56 = por %p54, %p55
      %p57 = scmp.ne.s32.totalorder %s49, %s51
      %p58 = scmp.eq.s32.totalorder %s20, 1
      %p59 = por %p57, %p58
      %p60 = scmp.ne.s32.totalorder %s51, %s52
      %p61 = scmp.eq.s32.totalorder %s20, 0
      %p62 = por %p60, %p61
      %p63 = scmp.ne.s32.totalorder %s51, %s52
      %p64 = scmp.eq.s32.totalorder %s21, 1
      %p65 = por %p63, %p64
      %p67 = scmp.ne.s32.totalorder %s52, %s66
      %p68 = scmp.eq.s32.totalorder %s21, 0
      %p69 = por %p67, %p68
      %s71 = sadd.s32 %s70, 1
      %p74 = scmp.eq.s32.totalorder %s15, 1
      %p75 = scmp.ne.s32.totalorder %s70, %s72
      %p76 = scmp.eq.s32.totalorder %s15, 0
      %p77 = por %p75, %p76
      %p78 = scmp.ne.s32.totalorder %s70, %s72
      %p79 = scmp.eq.s32.totalorder %s20, 1
      %p80 = por %p78, %p79
      %p81 = scmp.ne.s32.totalorder %s72, %s73
      %p82 = scmp.eq.s32.totalorder %s20, 0
      %p83 = por %p81, %p82
      %p84 = scmp.ne.s32.totalorder %s72, %s73
      %p85 = scmp.eq.s32.totalorder %s21, 1
      %p86 = por %p84, %p85
      %p88 = scmp.ne.s32.totalorder %s73, %s87
      %p89 = scmp.eq.s32.totalorder %s21, 0
      %p90 = por %p88, %p89
      %s91 = ssub.s32 %s15, %s22
      %p92 = scmp.eq.s32.totalorder %s91, 0
      %s94 = sadd.s32 %s93, 1
      %s95 = scalar_select %p92, %s93, %s94
      %p98 = pneg %p92
      %p99 = scmp.eq.s32.totalorder %s15, 1
      %p100 = por %p98, %p99
      %p101 = scmp.ne.s32.totalorder %s93, %s96
      %p102 = scmp.eq.s32.totalorder %s15, 0
      %p103 = por %p101, %p102
      %p104 = scmp.ne.s32.totalorder %s93, %s96
      %p105 = scmp.eq.s32.totalorder %s20, 1
      %p106 = por %p104, %p105
      %p107 = scmp.ne.s32.totalorder %s96, %s97
      %p108 = scmp.eq.s32.totalorder %s20, 0
      %p109 = por %p107, %p108
      %p110 = scmp.ne.s32.totalorder %s96, %s97
      %p111 = scmp.eq.s32.totalorder %s21, 1
      %p112 = por %p110, %p111
      %p114 = scmp.ne.s32.totalorder %s97, %s113
      %p115 = scmp.eq.s32.totalorder %s21, 0
      %p116 = por %p114, %p115
      %s118 = sadd.s32 %s117, 1
      %p121 = scmp.eq.s32.totalorder %s15, 1
      %p122 = scmp.ne.s32.totalorder %s117, %s119
      %p123 = scmp.eq.s32.totalorder %s15, 0
      %p124 = por %p122, %p123
      %p125 = scmp.ne.s32.totalorder %s117, %s119
      %p126 = scmp.eq.s32.totalorder %s20, 1
      %p127 = por %p125, %p126
      %p128 = scmp.ne.s32.totalorder %s119, %s120
      %p129 = scmp.eq.s32.totalorder %s20, 0
      %p130 = por %p128, %p129
      %p131 = scmp.ne.s32.totalorder %s119, %s120
      %p132 = scmp.eq.s32.totalorder %s21, 1
      %p133 = por %p131, %p132
      %p135 = scmp.ne.s32.totalorder %s120, %s134
      %p136 = scmp.eq.s32.totalorder %s21, 0
      %p137 = por %p135, %p136
      %s139 = sadd.s32 %s138, 1
      %p142 = scmp.eq.s32.totalorder %s15, 1
      %p143 = scmp.ne.s32.totalorder %s138, %s140
      %p144 = scmp.eq.s32.totalorder %s15, 0
      %p145 = por %p143, %p144
      %p146 = scmp.ne.s32.totalorder %s138, %s140
      %p147 = scmp.eq.s32.totalorder %s20, 1
      %p148 = por %p146, %p147
      %p149 = scmp.ne.s32.totalorder %s140, %s141
      %p150 = scmp.eq.s32.totalorder %s20, 0
      %p151 = por %p149, %p150
      %p152 = scmp.ne.s32.totalorder %s140, %s141
      %p153 = scmp.eq.s32.totalorder %s21, 1
      %p154 = por %p152, %p153
      %p156 = scmp.ne.s32.totalorder %s141, %s155
      %p157 = scmp.eq.s32.totalorder %s21, 0
      %p158 = por %p156, %p157
      %s159 = ssub.s32 %s15, %s22
      %p160 = scmp.eq.s32.totalorder %s159, 0
      %s162 = sadd.s32 %s161, 1
      %s163 = scalar_select %p160, %s161, %s162
      %p166 = pneg %p160
      %p167 = scmp.eq.s32.totalorder %s15, 1
      %p168 = por %p166, %p167
      %p169 = scmp.ne.s32.totalorder %s161, %s164
      %p170 = scmp.eq.s32.totalorder %s15, 0
      %p171 = por %p169, %p170
      %p172 = scmp.ne.s32.totalorder %s161, %s164
      %p173 = scmp.eq.s32.totalorder %s20, 1
      %p174 = por %p172, %p173
      %p175 = scmp.ne.s32.totalorder %s164, %s165
      %p176 = scmp.eq.s32.totalorder %s20, 0
      %p177 = por %p175, %p176
      %p178 = scmp.ne.s32.totalorder %s164, %s165
      %p179 = scmp.eq.s32.totalorder %s21, 1
      %p180 = por %p178, %p179
      %p182 = scmp.ne.s32.totalorder %s165, %s181
      %p183 = scmp.eq.s32.totalorder %s21, 0
      %p184 = por %p182, %p183
      %p185 = scmp.le.s32.totalorder 1, %s15
      %p186 = scmp.lt.s32.totalorder %s15, 3
      %p187 = pnand %p185, %p186
      %p188 = pneg %p187
      // Predicated region
      $region9: #{bottleneck_forward.7} parent=5 // pred_check
        _
      $region10: #{bottleneck_forward.7} parent=5 // pred_check_branch
        %190 = sbr.rel (%p187) target = $region12
      $region11: #{bottleneck_forward.7} parent=5 // pred_region
        %s191 = ssub.s32 %s15, 1
        // Predicated region
        $region13: #{bottleneck_forward.7} parent=11 // pred_check
          %p192 = pneg %p62
        $region14: #{bottleneck_forward.7} parent=11 // pred_check_branch
          %194 = sbr.rel (%p192) target = $region16
        $region15: #{bottleneck_forward.7} parent=11 // pred_region
          _
        $region16: #{bottleneck_forward.7} parent=11 // pred_fallthru
          _
        // Predicated region
        $region17: #{bottleneck_forward.7} parent=11 // pred_check
          %p195 = pneg %p83
        $region18: #{bottleneck_forward.7} parent=11 // pred_check_branch
          %197 = sbr.rel (%p195) target = $region20
        $region19: #{bottleneck_forward.7} parent=11 // pred_region
          _
        $region20: #{bottleneck_forward.7} parent=11 // pred_fallthru
          _
        // Predicated region
        $region21: #{bottleneck_forward.7} parent=11 // pred_check
          %p198 = pneg %p130
        $region22: #{bottleneck_forward.7} parent=11 // pred_check_branch
          %200 = sbr.rel (%p198) target = $region24
        $region23: #{bottleneck_forward.7} parent=11 // pred_region
          _
        $region24: #{bottleneck_forward.7} parent=11 // pred_fallthru
          _
        // Predicated region
        $region25: #{bottleneck_forward.7} parent=11 // pred_check
          %p201 = pneg %p151
        $region26: #{bottleneck_forward.7} parent=11 // pred_check_branch
          %203 = sbr.rel (%p201) target = $region28
        $region27: #{bottleneck_forward.7} parent=11 // pred_region
          _
        $region28: #{bottleneck_forward.7} parent=11 // pred_fallthru
          _
      $region12: #{bottleneck_forward.7} parent=5 // pred_fallthru
        _
      %p204 = scmp.lt.s32.totalorder %s15, 2
      // Predicated region
      $region29: #{bottleneck_forward.7} parent=5 // pred_check
        %p205 = pneg %p204
      $region30: #{bottleneck_forward.7} parent=5 // pred_check_branch
        %207 = sbr.rel (%p205) target = $region32
      $region31: #{bottleneck_forward.7} parent=5 // pred_region
        // Predicated region
        $region33: #{bottleneck_forward.7} parent=31 // pred_check
          %p208 = pneg %p35
        $region34: #{bottleneck_forward.7} parent=31 // pred_check_branch
          %210 = sbr.rel (%p208) target = $region36
        $region35: #{bottleneck_forward.7} parent=31 // pred_region
          %s211 = smul.u32 8, %s15
          %p212 = scmp.lt.s32.totalorder %s211, 15
          %s213 = scalar_select %p212, %s211, 15
          %s214 = smul.addr %s213, 2
          %s215 = smul.addr %s214, 8
          %s216 = scalar_lea.vmem %s0, %s215
          %s217 = smul.u32 8, %s15
        $region36: #{bottleneck_forward.7} parent=31 // pred_fallthru
          _
        // Predicated region
        $region37: #{bottleneck_forward.7} parent=31 // pred_check
          %p218 = pneg %p103
        $region38: #{bottleneck_forward.7} parent=31 // pred_check_branch
          %220 = sbr.rel (%p218) target = $region40
        $region39: #{bottleneck_forward.7} parent=31 // pred_region
          %s221 = smul.u32 8, %s15
          %p222 = scmp.lt.s32.totalorder %s221, 15
          %s223 = scalar_select %p222, %s221, 15
          %s224 = smul.addr %s223, 8
          %s225 = scalar_lea.vmem %s3, %s224
          %s226 = smul.u32 8, %s15
        $region40: #{bottleneck_forward.7} parent=31 // pred_fallthru
          _
      $region32: #{bottleneck_forward.7} parent=5 // pred_fallthru
        _
      %p227 = scmp.le.s32.totalorder 1, %s15
      %p228 = scmp.lt.s32.totalorder %s15, 3
      %p229 = pnand %p227, %p228
      %p230 = pneg %p229
      // Predicated region
      $region41: #{bottleneck_forward.7} parent=5 // pred_check
        _
      $region42: #{bottleneck_forward.7} parent=5 // pred_check_branch
        %232 = sbr.rel (%p229) target = $region44
      $region43: #{bottleneck_forward.7} parent=5 // pred_region
        %s233 = ssub.s32 %s15, 1
        %s234 = smul.u32 8, %s20
        %p235 = scmp.lt.s32.totalorder %s234, 15
        %s236 = scalar_select %p235, %s234, 15
        %s237 = smul.addr %s236, 2
        %s238 = smul.addr %s237, 8
        %s239 = scalar_lea.vmem %s0, %s238
        %p240 = pneg %p41
        %p241 = pneg %p38
        %p242 = pneg %p62
        %p243 = pneg %p59
        %p244 = pneg %p83
        %p245 = pneg %p80
        %s246 = smul.u32 8, %s20
        %p247 = scmp.lt.s32.totalorder %s246, 15
        %s248 = scalar_select %p247, %s246, 15
        %s249 = smul.addr %s248, 8
        %s250 = scalar_lea.vmem %s3, %s249
        %p251 = pneg %p109
        %p252 = pneg %p106
        %p253 = pneg %p130
        %p254 = pneg %p127
        %p255 = pneg %p151
        %p256 = pneg %p148
        %p257 = pneg %p177
        %p258 = pneg %p174
        %s259 = sand.u32 %s164, 1
        %s260 = scalar_lea.sflag [#allocation3], %s259
        %s261 = sand.u32 %s164, 1
        %s262 = smul.addr %s261, 128
        %s263 = scalar_lea.vmem [#allocation2], %s262
        %s264 = smul.u32 8, %s20
        %p265 = scmp.lt.s32.totalorder %s264, 15
        %s266 = scalar_select %p265, %s264, 15
        %s267 = smul.addr %s266, 2
        %s268 = smul.addr %s267, 8
        %s269 = scalar_lea.vmem %s0, %s268
        %s270 = smul.u32 8, %s20
        %s271 = smul.u32 8, %s20
        %p272 = scmp.lt.s32.totalorder %s271, 15
        %s273 = scalar_select %p272, %s271, 15
        %s274 = smul.addr %s273, 8
        %s275 = scalar_lea.vmem %s3, %s274
        %s276 = smul.u32 8, %s20
        %s277 = smul.u32 8, %s20
        %v278 = vld [vmem:[%s269] sm:$0xff]
        %v279 = vld [vmem:[%s269 + $0x8] sm:$0xff]
        %v280 = vld [vmem:[%s269 + $0x10] sm:$0xff]
        %v281 = vld [vmem:[%s269 + $0x18] sm:$0xff]
        %v282 = vld [vmem:[%s269 + $0x20] sm:$0xff]
        %v283 = vld [vmem:[%s269 + $0x28] sm:$0xff]
        %v284 = vld [vmem:[%s269 + $0x30] sm:$0xff]
        %v285 = vld [vmem:[%s269 + $0x38] sm:$0xff]
        %v286 = vld [vmem:[%s269 + $0x40] sm:$0xff]
        %v287 = vld [vmem:[%s269 + $0x48] sm:$0xff]
        %v288 = vld [vmem:[%s269 + $0x50] sm:$0xff]
        %v289 = vld [vmem:[%s269 + $0x58] sm:$0xff]
        %v290 = vld [vmem:[%s269 + $0x60] sm:$0xff]
        %v291 = vld [vmem:[%s269 + $0x68] sm:$0xff]
        %v292 = vld [vmem:[%s269 + $0x70] sm:$0xff]
        %v293 = vld [vmem:[%s269 + $0x78] sm:$0xff]
        %v294 = vld [vmem:[%s1] sm:$0x3]
        %v296 = vlaneseq
        %v297 = vshrl.u32 %v296, 7
        %v298 = vsub.s32 0, %v297
        %v299 = vrot.slane %v294, %v298
        %v300 = vlaneseq
        %v301 = vshrl.u32 %v300, 7
        %v302 = vsub.s32 1, %v301
        %v303 = vrot.slane %v294, %v302
        %v306 = vmul.f32 %v278, %v299
        %v307 = vmul.f32 %v279, %v303
        %v308 = vmul.f32 %v280, %v299
        %v309 = vmul.f32 %v281, %v303
        %v310 = vmul.f32 %v282, %v299
        %v311 = vmul.f32 %v283, %v303
        %v312 = vmul.f32 %v284, %v299
        %v313 = vmul.f32 %v285, %v303
        %v314 = vmul.f32 %v286, %v299
        %v315 = vmul.f32 %v287, %v303
        %v316 = vmul.f32 %v288, %v299
        %v317 = vmul.f32 %v289, %v303
        %v318 = vmul.f32 %v290, %v299
        %v319 = vmul.f32 %v291, %v303
        %v320 = vmul.f32 %v292, %v299
        %v321 = vmul.f32 %v293, %v303
        %v322 = vld [vmem:[%s2] sm:$0x3]
        %v324 = vlaneseq
        %v325 = vshrl.u32 %v324, 7
        %v326 = vsub.s32 0, %v325
        %v327 = vrot.slane %v322, %v326
        %v328 = vlaneseq
        %v329 = vshrl.u32 %v328, 7
        %v330 = vsub.s32 1, %v329
        %v331 = vrot.slane %v322, %v330
        %v334 = vadd.f32 %v306, %v327
        %v335 = vadd.f32 %v307, %v331
        %v336 = vadd.f32 %v308, %v327
        %v337 = vadd.f32 %v309, %v331
        %v338 = vadd.f32 %v310, %v327
        %v339 = vadd.f32 %v311, %v331
        %v340 = vadd.f32 %v312, %v327
        %v341 = vadd.f32 %v313, %v331
        %v342 = vadd.f32 %v314, %v327
        %v343 = vadd.f32 %v315, %v331
        %v344 = vadd.f32 %v316, %v327
        %v345 = vadd.f32 %v317, %v331
        %v346 = vadd.f32 %v318, %v327
        %v347 = vadd.f32 %v319, %v331
        %v348 = vadd.f32 %v320, %v327
        %v349 = vadd.f32 %v321, %v331
        %v350 = vmax.f32 %v334, 0.0
        %v351 = vmax.f32 %v335, 0.0
        %v352 = vmax.f32 %v336, 0.0
        %v353 = vmax.f32 %v337, 0.0
        %v354 = vmax.f32 %v338, 0.0
        %v355 = vmax.f32 %v339, 0.0
        %v356 = vmax.f32 %v340, 0.0
        %v357 = vmax.f32 %v341, 0.0
        %v358 = vmax.f32 %v342, 0.0
        %v359 = vmax.f32 %v343, 0.0
        %v360 = vmax.f32 %v344, 0.0
        %v361 = vmax.f32 %v345, 0.0
        %v362 = vmax.f32 %v346, 0.0
        %v363 = vmax.f32 %v347, 0.0
        %v364 = vmax.f32 %v348, 0.0
        %v365 = vmax.f32 %v349, 0.0
        %v366 = vld [vmem:[%s275] sm:$0xff]
        %v367 = vld [vmem:[%s275 + $0x8] sm:$0xff]
        %v368 = vld [vmem:[%s275 + $0x10] sm:$0xff]
        %v369 = vld [vmem:[%s275 + $0x18] sm:$0xff]
        %v370 = vld [vmem:[%s275 + $0x20] sm:$0xff]
        %v371 = vld [vmem:[%s275 + $0x28] sm:$0xff]
        %v372 = vld [vmem:[%s275 + $0x30] sm:$0xff]
        %v373 = vld [vmem:[%s275 + $0x38] sm:$0xff]
        %v374 = vld [vmem:[%s4] sm:$0xff]
        %v375 = vld [vmem:[%s4 + $0x8] sm:$0xff]
        %v376 = vld [vmem:[%s4 + $0x10] sm:$0xff]
        %v377 = vld [vmem:[%s4 + $0x18] sm:$0xff]
        %v378 = vld [vmem:[%s4 + $0x20] sm:$0xff]
        %v379 = vld [vmem:[%s4 + $0x28] sm:$0xff]
        %v380 = vld [vmem:[%s4 + $0x30] sm:$0xff]
        %v381 = vld [vmem:[%s4 + $0x38] sm:$0xff]
        %v382 = vld [vmem:[%s4 + $0x40] sm:$0xff]
        %v383 = vld [vmem:[%s4 + $0x48] sm:$0xff]
        %v384 = vld [vmem:[%s4 + $0x50] sm:$0xff]
        %v385 = vld [vmem:[%s4 + $0x58] sm:$0xff]
        %v386 = vld [vmem:[%s4 + $0x60] sm:$0xff]
        %v387 = vld [vmem:[%s4 + $0x68] sm:$0xff]
        %v388 = vld [vmem:[%s4 + $0x70] sm:$0xff]
        %v389 = vld [vmem:[%s4 + $0x78] sm:$0xff]
        %v390 = vld [vmem:[%s4 + $0x80] sm:$0xff]
        %v391 = vld [vmem:[%s4 + $0x88] sm:$0xff]
        %v392 = vld [vmem:[%s4 + $0x90] sm:$0xff]
        %v393 = vld [vmem:[%s4 + $0x98] sm:$0xff]
        %v394 = vld [vmem:[%s4 + $0xa0] sm:$0xff]
        %v395 = vld [vmem:[%s4 + $0xa8] sm:$0xff]
        %v396 = vld [vmem:[%s4 + $0xb0] sm:$0xff]
        %v397 = vld [vmem:[%s4 + $0xb8] sm:$0xff]
        %v398 = vld [vmem:[%s4 + $0xc0] sm:$0xff]
        %v399 = vld [vmem:[%s4 + $0xc8] sm:$0xff]
        %v400 = vld [vmem:[%s4 + $0xd0] sm:$0xff]
        %v401 = vld [vmem:[%s4 + $0xd8] sm:$0xff]
        %v402 = vld [vmem:[%s4 + $0xe0] sm:$0xff]
        %v403 = vld [vmem:[%s4 + $0xe8] sm:$0xff]
        %v404 = vld [vmem:[%s4 + $0xf0] sm:$0xff]
        %v405 = vld [vmem:[%s4 + $0xf8] sm:$0xff]
        %v406 = vld [vmem:[%s5] sm:$0x3]
        %v408 = vlaneseq
        %v409 = vshrl.u32 %v408, 7
        %v410 = vsub.s32 0, %v409
        %v411 = vrot.slane %v406, %v410
        %v412 = vlaneseq
        %v413 = vshrl.u32 %v412, 7
        %v414 = vsub.s32 1, %v413
        %v415 = vrot.slane %v406, %v414
        %418 = vmatprep.subr.mxu0 %v375
        %419 = vmatpush1.msra.mxu0 %v374
        %420 = vmatprep.subr.mxu0 %v377
        %421 = vmatpush1.msra.mxu0 %v376
        %422 = vmatprep.subr.mxu0 %v379
        %423 = vmatpush1.msra.mxu0 %v378
        %424 = vmatprep.subr.mxu0 %v381
        %425 = vmatpush1.msra.mxu0 %v380
        %426 = vmatprep.subr.mxu0 %v383
        %427 = vmatpush1.msra.mxu0 %v382
        %428 = vmatprep.subr.mxu0 %v385
        %429 = vmatpush1.msra.mxu0 %v384
        %430 = vmatprep.subr.mxu0 %v387
        %431 = vmatpush1.msra.mxu0 %v386
        %432 = vmatprep.subr.mxu0 %v389
        %433 = vmatpush1.msra.mxu0 %v388
        %434 = vmatprep.subr.mxu0 %v391
        %435 = vmatpush1.msra.mxu0 %v390
        %436 = vmatprep.subr.mxu0 %v393
        %437 = vmatpush1.msra.mxu0 %v392
        %438 = vmatprep.subr.mxu0 %v395
        %439 = vmatpush1.msra.mxu0 %v394
        %440 = vmatprep.subr.mxu0 %v397
        %441 = vmatpush1.msra.mxu0 %v396
        %442 = vmatprep.subr.mxu0 %v399
        %443 = vmatpush1.msra.mxu0 %v398
        %444 = vmatprep.subr.mxu0 %v401
        %445 = vmatpush1.msra.mxu0 %v400
        %446 = vmatprep.subr.mxu0 %v403
        %447 = vmatpush1.msra.mxu0 %v402
        %448 = vmatprep.subr.mxu0 %v405
        %449 = vmatpush1.msra.mxu0 %v404
        %450 = vmatprep.subr.mxu0 0.0
        %451 = vmatpush1.msra.mxu0 0.0
        %452 = vmatprep.subr.mxu0 0.0
        %453 = vmatpush1.msra.mxu0 0.0
        %454 = vmatprep.subr.mxu0 0.0
        %455 = vmatpush1.msra.mxu0 0.0
        %456 = vmatprep.subr.mxu0 0.0
        %457 = vmatpush1.msra.mxu0 0.0
        %458 = vmatprep.subr.mxu0 0.0
        %459 = vmatpush1.msra.mxu0 0.0
        %460 = vmatprep.subr.mxu0 0.0
        %461 = vmatpush1.msra.mxu0 0.0
        %462 = vmatprep.subr.mxu0 0.0
        %463 = vmatpush1.msra.mxu0 0.0
        %464 = vmatprep.subr.mxu0 0.0
        %465 = vmatpush1.msra.mxu0 0.0
        %466 = vmatprep.subr.mxu0 0.0
        %467 = vmatpush1.msra.mxu0 0.0
        %468 = vmatprep.subr.mxu0 0.0
        %469 = vmatpush1.msra.mxu0 0.0
        %470 = vmatprep.subr.mxu0 0.0
        %471 = vmatpush1.msra.mxu0 0.0
        %472 = vmatprep.subr.mxu0 0.0
        %473 = vmatpush1.msra.mxu0 0.0
        %474 = vmatprep.subr.mxu0 0.0
        %475 = vmatpush1.msra.mxu0 0.0
        %476 = vmatprep.subr.mxu0 0.0
        %477 = vmatpush1.msra.mxu0 0.0
        %478 = vmatprep.subr.mxu0 0.0
        %479 = vmatpush1.msra.mxu0 0.0
        %480 = vmatprep.subr.mxu0 0.0
        %481 = vmatpush1.msra.mxu0 0.0
        %482 = vmatprep.mubr.f32.mxu0 0.0
        %483 = vmatmul.mubr.f32.gmra.mrb[0].mxu0 %v366
        %v484 = vpop.f32.mrb[0].mxu0
        %v485 = vadd.f32 %v411, %v484
        %v486 = vpop.f32.mrb[0].mxu0
        %v487 = vadd.f32 %v415, %v486
        %488 = vmatprep.mubr.f32.mxu0 0.0
        %489 = vmatmul.mubr.f32.gmra.mrb[0].mxu0 %v367
        %v490 = vpop.f32.mrb[0].mxu0
        %v491 = vadd.f32 %v411, %v490
        %v492 = vpop.f32.mrb[0].mxu0
        %v493 = vadd.f32 %v415, %v492
        %494 = vmatprep.mubr.f32.mxu0 0.0
        %495 = vmatmul.mubr.f32.gmra.mrb[0].mxu0 %v368
        %v496 = vpop.f32.mrb[0].mxu0
        %v497 = vadd.f32 %v411, %v496
        %v498 = vpop.f32.mrb[0].mxu0
        %v499 = vadd.f32 %v415, %v498
        %500 = vmatprep.mubr.f32.mxu0 0.0
        %501 = vmatmul.mubr.f32.gmra.mrb[0].mxu0 %v369
        %v502 = vpop.f32.mrb[0].mxu0
        %v503 = vadd.f32 %v411, %v502
        %v504 = vpop.f32.mrb[0].mxu0
        %v505 = vadd.f32 %v415, %v504
        %506 = vmatprep.mubr.f32.mxu0 0.0
        %507 = vmatmul.mubr.f32.gmra.mrb[0].mxu0 %v370
        %v508 = vpop.f32.mrb[0].mxu0
        %v509 = vadd.f32 %v411, %v508
        %v510 = vpop.f32.mrb[0].mxu0
        %v511 = vadd.f32 %v415, %v510
        %512 = vmatprep.mubr.f32.mxu0 0.0
        %513 = vmatmul.mubr.f32.gmra.mrb[0].mxu0 %v371
        %v514 = vpop.f32.mrb[0].mxu0
        %v515 = vadd.f32 %v411, %v514
        %v516 = vpop.f32.mrb[0].mxu0
        %v517 = vadd.f32 %v415, %v516
        %518 = vmatprep.mubr.f32.mxu0 0.0
        %519 = vmatmul.mubr.f32.gmra.mrb[0].mxu0 %v372
        %v520 = vpop.f32.mrb[0].mxu0
        %v521 = vadd.f32 %v411, %v520
        %v522 = vpop.f32.mrb[0].mxu0
        %v523 = vadd.f32 %v415, %v522
        %524 = vmatprep.mubr.f32.mxu0 0.0
        %525 = vmatmul.mubr.f32.gmra.mrb[0].mxu0 %v373
        %v526 = vpop.f32.mrb[0].mxu0
        %v527 = vadd.f32 %v411, %v526
        %v528 = vpop.f32.mrb[0].mxu0
        %v529 = vadd.f32 %v415, %v528
        %530 = vdwg.mxu0
        %v531 = vadd.f32 %v350, %v485
        %v532 = vadd.f32 %v351, %v487
        %v533 = vadd.f32 %v352, %v491
        %v534 = vadd.f32 %v353, %v493
        %v535 = vadd.f32 %v354, %v497
        %v536 = vadd.f32 %v355, %v499
        %v537 = vadd.f32 %v356, %v503
        %v538 = vadd.f32 %v357, %v505
        %v539 = vadd.f32 %v358, %v509
        %v540 = vadd.f32 %v359, %v511
        %v541 = vadd.f32 %v360, %v515
        %v542 = vadd.f32 %v361, %v517
        %v543 = vadd.f32 %v362, %v521
        %v544 = vadd.f32 %v363, %v523
        %v545 = vadd.f32 %v364, %v527
        %v546 = vadd.f32 %v365, %v529
        %547 = vst [vmem:[%s263] sm:$0xff] %v531
        %548 = vst [vmem:[%s263 + $0x8] sm:$0xff] %v532
        %549 = vst [vmem:[%s263 + $0x10] sm:$0xff] %v533
        %550 = vst [vmem:[%s263 + $0x18] sm:$0xff] %v534
        %551 = vst [vmem:[%s263 + $0x20] sm:$0xff] %v535
        %552 = vst [vmem:[%s263 + $0x28] sm:$0xff] %v536
        %553 = vst [vmem:[%s263 + $0x30] sm:$0xff] %v537
        %554 = vst [vmem:[%s263 + $0x38] sm:$0xff] %v538
        %555 = vst [vmem:[%s263 + $0x40] sm:$0xff] %v539
        %556 = vst [vmem:[%s263 + $0x48] sm:$0xff] %v540
        %557 = vst [vmem:[%s263 + $0x50] sm:$0xff] %v541
        %558 = vst [vmem:[%s263 + $0x58] sm:$0xff] %v542
        %559 = vst [vmem:[%s263 + $0x60] sm:$0xff] %v543
        %560 = vst [vmem:[%s263 + $0x68] sm:$0xff] %v544
        %561 = vst [vmem:[%s263 + $0x70] sm:$0xff] %v545
        %562 = vst [vmem:[%s263 + $0x78] sm:$0xff] %v546
        %s563 = sand.u32 %s164, 1
        %s564 = scalar_lea.sflag [#allocation3], %s563
        %s565 = sand.u32 %s164, 1
        %s566 = smul.addr %s565, 128
        %s567 = scalar_lea.vmem [#allocation2], %s566
        // Predicated region
        $region45: #{bottleneck_forward.7} parent=43 // pred_check
          %p568 = pneg %p174
        $region46: #{bottleneck_forward.7} parent=43 // pred_check_branch
          %570 = sbr.rel (%p568) target = $region48
        $region47: #{bottleneck_forward.7} parent=43 // pred_region
          %s571 = smul.u32 8, %s20
          %s573 = ssub.s32 2048, 2048
          %574 = vsyncadd %s564, %s573
          %s575 = smul.addr %s571, 2
          %s576 = smul.addr %s575, 128
          %s577 = scalar_lea.hbm %s6, %s576
          %s578 = sshll.u32 %s567, 4
          %s579 = int_to_ptr.vmem [resolvable:$true] %s578
          %584 = dma.vmem_to_hbm [thread:$0]  %s579, 2048, %s577, %s564, 256, 256, 16
        $region48: #{bottleneck_forward.7} parent=43 // pred_fallthru
          _
      $region44: #{bottleneck_forward.7} parent=5 // pred_fallthru
        _
      %p585 = scmp.le.s32.totalorder 2, %s15
      // Predicated region
      $region49: #{bottleneck_forward.7} parent=5 // pred_check
        %p586 = pneg %p585
      $region50: #{bottleneck_forward.7} parent=5 // pred_check_branch
        %588 = sbr.rel (%p586) target = $region52
      $region51: #{bottleneck_forward.7} parent=5 // pred_region
        %s589 = ssub.s32 %s15, 2
        // Predicated region
        $region53: #{bottleneck_forward.7} parent=51 // pred_check
          %p590 = pneg %p180
        $region54: #{bottleneck_forward.7} parent=51 // pred_check_branch
          %592 = sbr.rel (%p590) target = $region56
        $region55: #{bottleneck_forward.7} parent=51 // pred_region
          %s593 = sand.u32 %s165, 1
          %s594 = scalar_lea.sflag [#allocation3], %s593
          %s595 = sand.u32 %s165, 1
          %s596 = smul.addr %s595, 128
          %s597 = scalar_lea.vmem [#allocation2], %s596
          %598 = dma.done %s594, 2048
        $region56: #{bottleneck_forward.7} parent=51 // pred_fallthru
          _
      $region52: #{bottleneck_forward.7} parent=5 // pred_fallthru
        _
    $region6: #{bottleneck_forward.7} parent=1 // loop_footer
      %s19 = sadd.s32 1, %s15
    $region7: #{bottleneck_forward.7} parent=1 // loop_footer_branch
      %14 = sbr.rel target = $region3
    $region8: #{bottleneck_forward.7} parent=1 // loop_exit
      _
    %599 = vsyncpa [#allocation3], 1
    %s600 = scalar_lea.sflag [#allocation3], 1
    %601 = vsyncpa %s600, 1

</llo_original>
